<compile_context>
chip_gen: v7x
topology: tpu7x:2x2x1
jax: 0.10.0
libtpu: 0.0.40
codegen_flags: <defaults>
</compile_context>

<pallas_src>
import jax
import jax.numpy as jnp
from jax.experimental import pallas as pl
from jax.experimental.pallas import tpu as pltpu

EMB = 64              # embedding_dim
HID = 128             # hidden_dim
NHEAD = 4
HEAD = EMB // NHEAD
SEQ = 7               # 5 public + 2 private cards
NCARDS = 52           # padding index == 52
QKV = 3 * EMB         # 192
F_H1 = 6 * EMB        # 384
F_H3 = 2 * HID        # 256
NACT = 5
STAGE_DIM = 32
POS_DIM = 32
MISC_RAW = 9 + STAGE_DIM + POS_DIM   # 73 (stacks+bets+mask+stage+pos; pot unused as in reference)
MISC_PAD = 128        # lane-dense misc input
OUT_PAD = 128         # lane-dense logits output (sliced to NACT in the wrapper)
LEAK = 0.2
LN_EPS = 1e-5
HEAD_SCALE = 0.1      # TODO(synk): ScaledLinear definition unavailable; fixed output scale assumed.
DEFAULT_TILE_B = 256  # sweep 256-512 on v6e/v7x; keep <= 256 on v5e.

BF16 = jnp.bfloat16
F32 = jnp.float32

# row layout of the consolidated (16, 384) f32 bias/LayerNorm array
ROW_BQKV, ROW_BO, ROW_LNG, ROW_LNB = 0, 1, 2, 3
ROW_B1, ROW_B2, ROW_B3, ROW_B4, ROW_B5, ROW_B6, ROW_B7 = 4, 5, 6, 7, 8, 9, 10
VEC_ROWS = 16

KERNEL_WEIGHTS = ["wqkv", "bones", "wo", "w1c", "w1m",
                  "w2", "w3", "w4", "w5", "w6", "w7", "vecs"]


def _leaky(x):
    return jnp.where(x >= 0, x, LEAK * x)


def deepcfr_kernel(cards_ref, misc_ref,
                   wqkv_ref, bones_ref, wo_ref, w1c_ref, w1m_ref,
                   w2_ref, w3_ref, w4_ref, w5_ref, w6_ref, w7_ref,
                   vecs_ref, out_ref):
    # cards_ref: (SEQ, TB, 64) bf16 (seq-major, batch tile along sublanes)
    # misc_ref : (TB, 128) f32
    # out_ref  : (TB, 128) f32 (padded logits)
    tb = cards_ref.shape[1]

    def mm(a, w):  # bf16 MXU matmul, f32 accumulation
        return jnp.dot(a.astype(BF16), w, preferred_element_type=F32)

    vecs = vecs_ref[...]                              # (16, 384) f32, consolidated vectors
    bqkv = vecs[ROW_BQKV:ROW_BQKV + 1, :QKV]
    bo = vecs[ROW_BO:ROW_BO + 1, :EMB]
    lng = vecs[ROW_LNG:ROW_LNG + 1, :EMB]
    lnb = vecs[ROW_LNB:ROW_LNB + 1, :EMB]
    b1 = vecs[ROW_B1:ROW_B1 + 1, :F_H1]
    b2 = vecs[ROW_B2:ROW_B2 + 1, :F_H1]
    b3 = vecs[ROW_B3:ROW_B3 + 1, :F_H3]
    b4 = vecs[ROW_B4:ROW_B4 + 1, :HID]
    b5 = vecs[ROW_B5:ROW_B5 + 1, :HID]
    b6 = vecs[ROW_B6:ROW_B6 + 1, :HID]
    b7 = vecs[ROW_B7:ROW_B7 + 1, :OUT_PAD]

    # ---- all 7 card positions stacked along M; ONE fused QKV matmul ----
    # (1/sqrt(head_dim) already folded into the Q columns of wqkv/bqkv)
    x_all = cards_ref[...].reshape(SEQ * tb, EMB)                               # bf16 (7TB, 64)
    qkv = jnp.dot(x_all, wqkv_ref[...], preferred_element_type=F32) + bqkv      # (7TB, 192) f32

    qs = [qkv[i * tb:(i + 1) * tb, 0:EMB] for i in range(SEQ)]
    ks = [qkv[i * tb:(i + 1) * tb, EMB:2 * EMB] for i in range(SEQ)]
    vs = [qkv[i * tb:(i + 1) * tb, 2 * EMB:QKV] for i in range(SEQ)]

    bones = bones_ref[...]          # (64, 64) bf16 block-diagonal head mask
    wo = wo_ref[...]

    # ---- attention: per query position ONE batched bf16 score matmul ----
    #   scores_j[b, d] = sum_{d' in head(d)} q_i[b, d'] * k_j[b, d']
    # (per-head score broadcast over each head's 16 lanes -> softmax / context
    #  are pure element-wise ops, no per-head lane slicing, no 3-D contractions)
    ctx_list = []
    for i in range(SEQ):
        qk = jnp.concatenate([qs[i] * ks[j] for j in range(SEQ)], axis=0)       # (7TB, 64) f32
        s = jnp.dot(qk.astype(BF16), bones, preferred_element_type=F32)         # (7TB, 64) f32
        s_j = [s[j * tb:(j + 1) * tb] for j in range(SEQ)]
        m = s_j[0]
        for j in range(1, SEQ):
            m = jnp.maximum(m, s_j[j])
        l = jnp.zeros_like(m)
        ctx = jnp.zeros_like(m)
        for j in range(SEQ):
            p = jnp.exp(s_j[j] - m)       # identical within a head's 16 lanes
            l = l + p
            ctx = ctx + p * vs[j]
        ctx_list.append(ctx * pl.reciprocal(l, approx=True))
    ctx_all = jnp.concatenate(ctx_list, axis=0)                                 # (7TB, 64) f32

    # ---- output projection + residual + LayerNorm for ALL positions at once ----
    o_all = mm(ctx_all, wo) + bo
    y = x_all.astype(F32) + o_all
    mu = jnp.mean(y, axis=-1, keepdims=True)
    var = jnp.mean((y - mu) ** 2, axis=-1, keepdims=True)
    y = (y - mu) * jax.lax.rsqrt(var + LN_EPS) * lng + lnb                      # (7TB, 64)

    # ---- features_net layer 1: misc/stage/pos block + per-position card blocks ----
    h1 = mm(misc_ref[...], w1m_ref[...]) + b1                                   # (TB, 384)
    for i in range(SEQ):
        h1 = h1 + mm(y[i * tb:(i + 1) * tb], w1c_ref[i])

    # ---- rest of features_net + main_net + (scaled) action head ----
    h1 = _leaky(h1)
    h2 = _leaky(mm(h1, w2_ref[...]) + b2)
    h3 = _leaky(mm(h2, w3_ref[...]) + b3)
    m1 = _leaky(mm(h3, w4_ref[...]) + b4)
    m2 = _leaky(mm(m1, w5_ref[...]) + b5)
    m3 = _leaky(mm(m2, w6_ref[...]) + b6)
    # HEAD_SCALE folded into w7/b7; logits padded to 128 lanes for dense stores.
    out_ref[...] = mm(m3, w7_ref[...]) + b7


def _prepare_kernel_weights(p):
    inv_s = 1.0 / (HEAD ** 0.5)
    head_id = jnp.arange(EMB, dtype=jnp.int32) // HEAD
    bones = (head_id[:, None] == head_id[None, :]).astype(BF16)              # (64, 64) bf16

    # fused QKV weight/bias; 1/sqrt(head_dim) folded into the Q columns.
    wqkv = jnp.concatenate([p["wq"] * inv_s, p["wk"], p["wv"]], axis=1)      # (64, 192)
    bqkv = jnp.concatenate([p["bq"] * inv_s, p["bk"], p["bv"]], axis=1)      # (1, 192)

    # misc/stage/pos row-blocks of features_net layer 1, zero-padded to 128 rows
    w1m = jnp.concatenate([p["w1m"], p["w1s"], p["w1p"]], axis=0)            # (73, 384)
    w1m = jnp.pad(w1m, ((0, MISC_PAD - MISC_RAW), (0, 0)))                   # (128, 384)

    # ScaledLinear scale folded into the head; logits padded to 128 lanes
    w7 = jnp.pad(p["w7"] * HEAD_SCALE, ((0, 0), (0, OUT_PAD - NACT)))        # (128, 128)
    b7 = jnp.pad(p["b7"] * HEAD_SCALE, ((0, 0), (0, OUT_PAD - NACT)))        # (1, 128)

    # pack all small (1, N) vectors into one padded (16, 384) f32 array
    def row(v):
        v = v.astype(F32)
        return jnp.pad(v, ((0, 0), (0, F_H1 - v.shape[1])))

    rows = [row(bqkv), row(p["bo"]), row(p["lng"]), row(p["lnb"]),
            row(p["b1"]), row(p["b2"]), row(p["b3"]), row(p["b4"]),
            row(p["b5"]), row(p["b6"]), row(b7)]
    vecs = jnp.concatenate(
        rows + [jnp.zeros((VEC_ROWS - len(rows), F_H1), F32)], axis=0)       # (16, 384)

    kw = {
        "wqkv": wqkv.astype(BF16),
        "bones": bones,
        "wo": p["wo"].astype(BF16),
        "w1c": p["w1c"].astype(BF16),
        "w1m": w1m.astype(BF16),
        "w2": p["w2"].astype(BF16),
        "w3": p["w3"].astype(BF16),
        "w4": p["w4"].astype(BF16),
        "w5": p["w5"].astype(BF16),
        "w6": p["w6"].astype(BF16),
        "w7": w7.astype(BF16),
        "vecs": vecs,
    }
    return [kw[name] for name in KERNEL_WEIGHTS]


def _pallas_forward(weights, cards_sbd, misc, tile_b):
    b_pad = cards_sbd.shape[1]
    grid = (b_pad // tile_b,)

    def full_spec(w):
        nd = w.ndim
        return pl.BlockSpec(w.shape, lambda i, _nd=nd: (0,) * _nd)

    in_specs = (
        [pl.BlockSpec((SEQ, tile_b, EMB), lambda i: (0, i, 0)),
         pl.BlockSpec((tile_b, MISC_PAD), lambda i: (i, 0))]
        + [full_spec(w) for w in weights]
    )
    out_spec = pl.BlockSpec((tile_b, OUT_PAD), lambda i: (i, 0))

    return pl.pallas_call(
        deepcfr_kernel,
        out_shape=jax.ShapeDtypeStruct((b_pad, OUT_PAD), F32),
        grid_spec=pltpu.PrefetchScalarGridSpec(
            num_scalar_prefetch=0,
            grid=grid,
            in_specs=in_specs,
            out_specs=out_spec,
        ),
        compiler_params=pltpu.CompilerParams(
            dimension_semantics=("parallel",),       # independent batch tiles (v7x: 2 TCs)
            vmem_limit_bytes=32 * 1024 * 1024,       # headroom for TILE_B up to 512
        ),
    )(cards_sbd, misc, *weights)


def _round_up(x, m):
    return ((x + m - 1) // m) * m


def forward(params, x, tile_b=None):
    """DeepCFRModel.forward: embedding gathers + feature concat run as XLA glue,
    attention + LayerNorm + the whole MLP stack run in one batch-tiled kernel."""
    public_cards, private_cards, stacks, _pot, bets, active_mask, stage, cur_pos = x
    B = public_cards.shape[0]

    # TODO(synk): padding card index (52) uses a learned table row; the reference
    # CardEmbedding may mask it (padding_idx) instead.
    all_cards = jnp.concatenate([public_cards, private_cards], axis=1)          # (B, 7)
    cards = params["card_table"][all_cards].astype(F32) + params["pe"][None]    # (B, 7, 64)
    cards_sbd = jnp.transpose(cards, (1, 0, 2)).astype(BF16)                    # (7, B, 64) bf16

    stage_feat = params["stage_table"][stage[:, 0]].astype(F32)                 # (B, 32)
    pos_feat = params["pos_table"][cur_pos[:, 0]].astype(F32)                   # (B, 32)
    misc = jnp.concatenate(
        [stacks.astype(F32), bets.astype(F32), active_mask.astype(F32),
         stage_feat, pos_feat], axis=1)                                         # (B, 73)
    misc = jnp.pad(misc, ((0, 0), (0, MISC_PAD - misc.shape[1])))               # (B, 128)

    if tile_b is None:
        # multiple of 16 (bf16 sublane packing); aim for >= 2 grid steps so a
        # v7x megacore can shard the batch across both TensorCores.
        tile_b = min(DEFAULT_TILE_B, max(16, _round_up((B + 1) // 2, 16)))
    b_pad = _round_up(B, tile_b)
    if b_pad != B:
        cards_sbd = jnp.pad(cards_sbd, ((0, 0), (0, b_pad - B), (0, 0)))
        misc = jnp.pad(misc, ((0, b_pad - B), (0, 0)))

    weights = _prepare_kernel_weights(params)
    logits = _pallas_forward(weights, cards_sbd, misc, tile_b)
    return logits[:B, :NACT]


# ------------------------- pure-JAX reference (f32) -------------------------

def reference_forward(params, x):
    public_cards, private_cards, stacks, _pot, bets, active_mask, stage, cur_pos = x
    B = public_cards.shape[0]
    all_cards = jnp.concatenate([public_cards, private_cards], axis=1)
    h = params["card_table"][all_cards].astype(F32) + params["pe"][None]
    q = h @ params["wq"] + params["bq"]
    k = h @ params["wk"] + params["bk"]
    v = h @ params["wv"] + params["bv"]
    qh = q.reshape(B, SEQ, NHEAD, HEAD)
    kh = k.reshape(B, SEQ, NHEAD, HEAD)
    vh = v.reshape(B, SEQ, NHEAD, HEAD)
    s = jnp.einsum("bqhd,bkhd->bhqk", qh, kh) / (HEAD ** 0.5)
    p = jax.nn.softmax(s, axis=-1)
    ctx = jnp.einsum("bhqk,bkhd->bqhd", p, vh).reshape(B, SEQ, EMB)
    o = ctx @ params["wo"] + params["bo"]
    y = h + o
    mu = y.mean(-1, keepdims=True)
    var = ((y - mu) ** 2).mean(-1, keepdims=True)
    y = (y - mu) / jnp.sqrt(var + LN_EPS) * params["lng"] + params["lnb"]

    stage_feat = params["stage_table"][stage[:, 0]].astype(F32)
    pos_feat = params["pos_table"][cur_pos[:, 0]].astype(F32)
    feats = jnp.concatenate(
        [y.reshape(B, SEQ * EMB), stacks.astype(F32), bets.astype(F32),
         active_mask.astype(F32), stage_feat, pos_feat], axis=1)
    w1 = jnp.concatenate(
        [params["w1c"].reshape(SEQ * EMB, F_H1), params["w1m"],
         params["w1s"], params["w1p"]], axis=0)
    h1 = _leaky(feats @ w1 + params["b1"])
    h2 = _leaky(h1 @ params["w2"] + params["b2"])
    h3 = _leaky(h2 @ params["w3"] + params["b3"])
    m1 = _leaky(h3 @ params["w4"] + params["b4"])
    m2 = _leaky(m1 @ params["w5"] + params["b5"])
    m3 = _leaky(m2 @ params["w6"] + params["b6"])
    return (m3 @ params["w7"] + params["b7"]) * HEAD_SCALE


# ------------------------------- parameters ---------------------------------

def _make_pe():
    pos = jnp.arange(SEQ, dtype=F32)[:, None]
    div = jnp.exp(jnp.arange(0, EMB, 2, dtype=F32) * (-jnp.log(10000.0) / EMB))
    pe = jnp.zeros((SEQ, EMB), F32)
    pe = pe.at[:, 0::2].set(jnp.sin(pos * div))
    pe = pe.at[:, 1::2].set(jnp.cos(pos * div))
    return pe


def make_params(key):
    keys = iter(jax.random.split(key, 24))

    def rnd(shape, fan_in):
        return jax.random.normal(next(keys), shape, F32) * (fan_in ** -0.5)

    p = {}
    p["card_table"] = rnd((NCARDS + 1, EMB), EMB)
    p["stage_table"] = rnd((4, STAGE_DIM), STAGE_DIM)
    p["pos_table"] = rnd((3, POS_DIM), POS_DIM)
    p["pe"] = _make_pe()
    # attention block (TODO(synk): MultiHeadAttentionBlock reconstructed as
    # 4-head self-attention + residual + LayerNorm)
    for nm in ("wq", "wk", "wv", "wo"):
        p[nm] = rnd((EMB, EMB), EMB)
    for nm in ("bq", "bk", "bv", "bo"):
        p[nm] = jnp.zeros((1, EMB), F32)
    p["lng"] = jnp.ones((1, EMB), F32)
    p["lnb"] = jnp.zeros((1, EMB), F32)
    # features_net layer 1: Linear(521, 384) split into per-source row blocks
    fan1 = SEQ * EMB + MISC_RAW
    p["w1c"] = rnd((SEQ, EMB, F_H1), fan1)
    p["w1m"] = rnd((9, F_H1), fan1)
    p["w1s"] = rnd((STAGE_DIM, F_H1), fan1)
    p["w1p"] = rnd((POS_DIM, F_H1), fan1)
    p["b1"] = jnp.zeros((1, F_H1), F32)
    p["w2"] = rnd((F_H1, F_H1), F_H1)
    p["b2"] = jnp.zeros((1, F_H1), F32)
    p["w3"] = rnd((F_H1, F_H3), F_H1)
    p["b3"] = jnp.zeros((1, F_H3), F32)
    # main_net
    p["w4"] = rnd((F_H3, HID), F_H3)
    p["b4"] = jnp.zeros((1, HID), F32)
    p["w5"] = rnd((HID, HID), HID)
    p["b5"] = jnp.zeros((1, HID), F32)
    p["w6"] = rnd((HID, HID), HID)
    p["b6"] = jnp.zeros((1, HID), F32)
    # action head
    p["w7"] = rnd((HID, NACT), HID)
    p["b7"] = jnp.zeros((1, NACT), F32)
    return p


if __name__ == "__main__":
    key = jax.random.PRNGKey(0)
    pkey, dkey = jax.random.split(key)
    params = make_params(pkey)

    B = 2
    ks = jax.random.split(dkey, 8)
    public_cards = jax.random.randint(ks[0], (B, 5), 0, NCARDS + 1)   # padding = 52
    private_cards = jax.random.randint(ks[1], (B, 2), 0, NCARDS)
    stacks = jax.random.uniform(ks[2], (B, 3), F32)
    pot = jax.random.uniform(ks[3], (B, 1), F32)                      # unused "_" input
    bets = jax.random.uniform(ks[4], (B, 3), F32)
    active_mask = (jax.random.uniform(ks[5], (B, 3)) > 0.3).astype(F32)
    stage = jax.random.randint(ks[6], (B, 1), 0, 4)
    cur_pos = jax.random.randint(ks[7], (B, 1), 0, 3)

    x = (public_cards, private_cards, stacks, pot, bets, active_mask, stage, cur_pos)
    out = jax.block_until_ready(forward(params, x))
    assert out.shape == (B, NACT) and out.dtype == jnp.float32

    ref = reference_forward(params, x)
    max_err = float(jnp.max(jnp.abs(out - ref)))
    assert max_err < 5e-2, f"kernel vs reference mismatch: max abs err = {max_err}"
    print("KERNEL_OK")
</pallas_src>

<mosaic_0001>
module attributes {stable_mosaic.version = 11 : i64} {
  func.func @deepcfr_kernel(%arg0: i32, %arg1: memref<7x16x64xbf16, #tpu.memory_space<vmem>>, %arg2: memref<16x128xf32, #tpu.memory_space<vmem>>, %arg3: memref<64x192xbf16, #tpu.memory_space<vmem>>, %arg4: memref<64x64xbf16, #tpu.memory_space<vmem>>, %arg5: memref<64x64xbf16, #tpu.memory_space<vmem>>, %arg6: memref<7x64x384xbf16, #tpu.memory_space<vmem>>, %arg7: memref<128x384xbf16, #tpu.memory_space<vmem>>, %arg8: memref<384x384xbf16, #tpu.memory_space<vmem>>, %arg9: memref<384x256xbf16, #tpu.memory_space<vmem>>, %arg10: memref<256x128xbf16, #tpu.memory_space<vmem>>, %arg11: memref<128x128xbf16, #tpu.memory_space<vmem>>, %arg12: memref<128x128xbf16, #tpu.memory_space<vmem>>, %arg13: memref<128x128xbf16, #tpu.memory_space<vmem>>, %arg14: memref<16x384xf32, #tpu.memory_space<vmem>>, %arg15: memref<16x128xf32, #tpu.memory_space<vmem>>) attributes {dimension_semantics = [#tpu.dimension_semantics<parallel>], iteration_bounds = array<i64: 1>, scalar_prefetch = 0 : i64, scratch_operands = 0 : i64, tpu.core_type = #tpu.core_type<tc>, window_params = [{transform_indices = @transform_0, window_bounds = array<i64: 7, 16, 64>}, {transform_indices = @transform_1, window_bounds = array<i64: 16, 128>}, {pipeline_mode = #tpu.pipeline_mode<synchronous>, transform_indices = @transform_2, window_bounds = array<i64: 64, 192>}, {pipeline_mode = #tpu.pipeline_mode<synchronous>, transform_indices = @transform_3, window_bounds = array<i64: 64, 64>}, {pipeline_mode = #tpu.pipeline_mode<synchronous>, transform_indices = @transform_4, window_bounds = array<i64: 64, 64>}, {pipeline_mode = #tpu.pipeline_mode<synchronous>, transform_indices = @transform_5, window_bounds = array<i64: 7, 64, 384>}, {pipeline_mode = #tpu.pipeline_mode<synchronous>, transform_indices = @transform_6, window_bounds = array<i64: 128, 384>}, {pipeline_mode = #tpu.pipeline_mode<synchronous>, transform_indices = @transform_7, window_bounds = array<i64: 384, 384>}, {pipeline_mode = #tpu.pipeline_mode<synchronous>, transform_indices = @transform_8, window_bounds = array<i64: 384, 256>}, {pipeline_mode = #tpu.pipeline_mode<synchronous>, transform_indices = @transform_9, window_bounds = array<i64: 256, 128>}, {pipeline_mode = #tpu.pipeline_mode<synchronous>, transform_indices = @transform_10, window_bounds = array<i64: 128, 128>}, {pipeline_mode = #tpu.pipeline_mode<synchronous>, transform_indices = @transform_11, window_bounds = array<i64: 128, 128>}, {pipeline_mode = #tpu.pipeline_mode<synchronous>, transform_indices = @transform_12, window_bounds = array<i64: 128, 128>}, {pipeline_mode = #tpu.pipeline_mode<synchronous>, transform_indices = @transform_13, window_bounds = array<i64: 16, 384>}, {transform_indices = @transform_14, window_bounds = array<i64: 16, 128>}]} {
    %c0 = arith.constant 0 : index
    %c0_0 = arith.constant 0 : index
    %0 = vector.load %arg14[%c0, %c0_0] : memref<16x384xf32, #tpu.memory_space<vmem>>, vector<16x384xf32>
    %1 = vector.extract_strided_slice %0 {offsets = [0, 0], sizes = [1, 192], strides = [1, 1]} : vector<16x384xf32> to vector<1x192xf32>
    %2 = vector.extract_strided_slice %0 {offsets = [1, 0], sizes = [1, 64], strides = [1, 1]} : vector<16x384xf32> to vector<1x64xf32>
    %3 = vector.extract_strided_slice %0 {offsets = [2, 0], sizes = [1, 64], strides = [1, 1]} : vector<16x384xf32> to vector<1x64xf32>
    %4 = vector.extract_strided_slice %0 {offsets = [3, 0], sizes = [1, 64], strides = [1, 1]} : vector<16x384xf32> to vector<1x64xf32>
    %5 = vector.extract_strided_slice %0 {offsets = [4, 0], sizes = [1, 384], strides = [1, 1]} : vector<16x384xf32> to vector<1x384xf32>
    %6 = vector.extract_strided_slice %0 {offsets = [5, 0], sizes = [1, 384], strides = [1, 1]} : vector<16x384xf32> to vector<1x384xf32>
    %7 = vector.extract_strided_slice %0 {offsets = [6, 0], sizes = [1, 256], strides = [1, 1]} : vector<16x384xf32> to vector<1x256xf32>
    %8 = vector.extract_strided_slice %0 {offsets = [7, 0], sizes = [1, 128], strides = [1, 1]} : vector<16x384xf32> to vector<1x128xf32>
    %9 = vector.extract_strided_slice %0 {offsets = [8, 0], sizes = [1, 128], strides = [1, 1]} : vector<16x384xf32> to vector<1x128xf32>
    %10 = vector.extract_strided_slice %0 {offsets = [9, 0], sizes = [1, 128], strides = [1, 1]} : vector<16x384xf32> to vector<1x128xf32>
    %11 = vector.extract_strided_slice %0 {offsets = [10, 0], sizes = [1, 128], strides = [1, 1]} : vector<16x384xf32> to vector<1x128xf32>
    %c0_1 = arith.constant 0 : index
    %c0_2 = arith.constant 0 : index
    %c0_3 = arith.constant 0 : index
    %12 = vector.load %arg1[%c0_1, %c0_2, %c0_3] : memref<7x16x64xbf16, #tpu.memory_space<vmem>>, vector<7x16x64xbf16>
    %13 = vector.shape_cast %12 : vector<7x16x64xbf16> to vector<112x64xbf16>
    %c0_4 = arith.constant 0 : index
    %c0_5 = arith.constant 0 : index
    %14 = vector.load %arg3[%c0_4, %c0_5] : memref<64x192xbf16, #tpu.memory_space<vmem>>, vector<64x192xbf16>
    %cst = arith.constant dense<0.000000e+00> : vector<112x192xf32>
    %15 = tpu.matmul %13, %14, %cst {dimension_numbers = #tpu.dot_dimension_numbers<[1], [0], [0], [1], [0, 0, 1, 1], [], []>} : vector<112x64xbf16>, vector<64x192xbf16>, vector<112x192xf32> -> vector<112x192xf32>
    %16 = vector.broadcast %1 : vector<1x192xf32> to vector<112x192xf32>
    %17 = arith.addf %15, %16 : vector<112x192xf32>
    %18 = vector.extract_strided_slice %17 {offsets = [0, 0], sizes = [16, 64], strides = [1, 1]} : vector<112x192xf32> to vector<16x64xf32>
    %19 = vector.extract_strided_slice %17 {offsets = [16, 0], sizes = [16, 64], strides = [1, 1]} : vector<112x192xf32> to vector<16x64xf32>
    %20 = vector.extract_strided_slice %17 {offsets = [32, 0], sizes = [16, 64], strides = [1, 1]} : vector<112x192xf32> to vector<16x64xf32>
    %21 = vector.extract_strided_slice %17 {offsets = [48, 0], sizes = [16, 64], strides = [1, 1]} : vector<112x192xf32> to vector<16x64xf32>
    %22 = vector.extract_strided_slice %17 {offsets = [64, 0], sizes = [16, 64], strides = [1, 1]} : vector<112x192xf32> to vector<16x64xf32>
    %23 = vector.extract_strided_slice %17 {offsets = [80, 0], sizes = [16, 64], strides = [1, 1]} : vector<112x192xf32> to vector<16x64xf32>
    %24 = vector.extract_strided_slice %17 {offsets = [96, 0], sizes = [16, 64], strides = [1, 1]} : vector<112x192xf32> to vector<16x64xf32>
    %25 = vector.extract_strided_slice %17 {offsets = [0, 64], sizes = [16, 64], strides = [1, 1]} : vector<112x192xf32> to vector<16x64xf32>
    %26 = vector.extract_strided_slice %17 {offsets = [16, 64], sizes = [16, 64], strides = [1, 1]} : vector<112x192xf32> to vector<16x64xf32>
    %27 = vector.extract_strided_slice %17 {offsets = [32, 64], sizes = [16, 64], strides = [1, 1]} : vector<112x192xf32> to vector<16x64xf32>
    %28 = vector.extract_strided_slice %17 {offsets = [48, 64], sizes = [16, 64], strides = [1, 1]} : vector<112x192xf32> to vector<16x64xf32>
    %29 = vector.extract_strided_slice %17 {offsets = [64, 64], sizes = [16, 64], strides = [1, 1]} : vector<112x192xf32> to vector<16x64xf32>
    %30 = vector.extract_strided_slice %17 {offsets = [80, 64], sizes = [16, 64], strides = [1, 1]} : vector<112x192xf32> to vector<16x64xf32>
    %31 = vector.extract_strided_slice %17 {offsets = [96, 64], sizes = [16, 64], strides = [1, 1]} : vector<112x192xf32> to vector<16x64xf32>
    %32 = vector.extract_strided_slice %17 {offsets = [0, 128], sizes = [16, 64], strides = [1, 1]} : vector<112x192xf32> to vector<16x64xf32>
    %33 = vector.extract_strided_slice %17 {offsets = [16, 128], sizes = [16, 64], strides = [1, 1]} : vector<112x192xf32> to vector<16x64xf32>
    %34 = vector.extract_strided_slice %17 {offsets = [32, 128], sizes = [16, 64], strides = [1, 1]} : vector<112x192xf32> to vector<16x64xf32>
    %35 = vector.extract_strided_slice %17 {offsets = [48, 128], sizes = [16, 64], strides = [1, 1]} : vector<112x192xf32> to vector<16x64xf32>
    %36 = vector.extract_strided_slice %17 {offsets = [64, 128], sizes = [16, 64], strides = [1, 1]} : vector<112x192xf32> to vector<16x64xf32>
    %37 = vector.extract_strided_slice %17 {offsets = [80, 128], sizes = [16, 64], strides = [1, 1]} : vector<112x192xf32> to vector<16x64xf32>
    %38 = vector.extract_strided_slice %17 {offsets = [96, 128], sizes = [16, 64], strides = [1, 1]} : vector<112x192xf32> to vector<16x64xf32>
    %c0_6 = arith.constant 0 : index
    %c0_7 = arith.constant 0 : index
    %39 = vector.load %arg4[%c0_6, %c0_7] : memref<64x64xbf16, #tpu.memory_space<vmem>>, vector<64x64xbf16>
    %c0_8 = arith.constant 0 : index
    %c0_9 = arith.constant 0 : index
    %40 = vector.load %arg5[%c0_8, %c0_9] : memref<64x64xbf16, #tpu.memory_space<vmem>>, vector<64x64xbf16>
    %41 = arith.mulf %18, %25 : vector<16x64xf32>
    %42 = arith.mulf %18, %26 : vector<16x64xf32>
    %43 = arith.mulf %18, %27 : vector<16x64xf32>
    %44 = arith.mulf %18, %28 : vector<16x64xf32>
    %45 = arith.mulf %18, %29 : vector<16x64xf32>
    %46 = arith.mulf %18, %30 : vector<16x64xf32>
    %47 = arith.mulf %18, %31 : vector<16x64xf32>
    %48 = tpu.concatenate %41, %42, %43, %44, %45, %46, %47 in 0 : vector<16x64xf32>, vector<16x64xf32>, vector<16x64xf32>, vector<16x64xf32>, vector<16x64xf32>, vector<16x64xf32>, vector<16x64xf32> -> vector<112x64xf32>
    %49 = arith.truncf %48 : vector<112x64xf32> to vector<112x64xbf16>
    %cst_10 = arith.constant dense<0.000000e+00> : vector<112x64xf32>
    %50 = tpu.matmul %49, %39, %cst_10 {dimension_numbers = #tpu.dot_dimension_numbers<[1], [0], [0], [1], [0, 0, 1, 1], [], []>} : vector<112x64xbf16>, vector<64x64xbf16>, vector<112x64xf32> -> vector<112x64xf32>
    %51 = vector.extract_strided_slice %50 {offsets = [0, 0], sizes = [16, 64], strides = [1, 1]} : vector<112x64xf32> to vector<16x64xf32>
    %52 = vector.extract_strided_slice %50 {offsets = [16, 0], sizes = [16, 64], strides = [1, 1]} : vector<112x64xf32> to vector<16x64xf32>
    %53 = vector.extract_strided_slice %50 {offsets = [32, 0], sizes = [16, 64], strides = [1, 1]} : vector<112x64xf32> to vector<16x64xf32>
    %54 = vector.extract_strided_slice %50 {offsets = [48, 0], sizes = [16, 64], strides = [1, 1]} : vector<112x64xf32> to vector<16x64xf32>
    %55 = vector.extract_strided_slice %50 {offsets = [64, 0], sizes = [16, 64], strides = [1, 1]} : vector<112x64xf32> to vector<16x64xf32>
    %56 = vector.extract_strided_slice %50 {offsets = [80, 0], sizes = [16, 64], strides = [1, 1]} : vector<112x64xf32> to vector<16x64xf32>
    %57 = vector.extract_strided_slice %50 {offsets = [96, 0], sizes = [16, 64], strides = [1, 1]} : vector<112x64xf32> to vector<16x64xf32>
    %58 = arith.maximumf %51, %52 : vector<16x64xf32>
    %59 = arith.maximumf %58, %53 : vector<16x64xf32>
    %60 = arith.maximumf %59, %54 : vector<16x64xf32>
    %61 = arith.maximumf %60, %55 : vector<16x64xf32>
    %62 = arith.maximumf %61, %56 : vector<16x64xf32>
    %63 = arith.maximumf %62, %57 : vector<16x64xf32>
    %cst_11 = arith.constant 0.000000e+00 : f32
    %64 = vector.broadcast %cst_11 : f32 to vector<16x64xf32>
    %cst_12 = arith.constant 0.000000e+00 : f32
    %65 = vector.broadcast %cst_12 : f32 to vector<16x64xf32>
    %66 = arith.subf %51, %63 : vector<16x64xf32>
    %67 = math.exp %66 : vector<16x64xf32>
    %68 = arith.addf %64, %67 : vector<16x64xf32>
    %69 = arith.mulf %67, %32 : vector<16x64xf32>
    %70 = arith.addf %65, %69 : vector<16x64xf32>
    %71 = arith.subf %52, %63 : vector<16x64xf32>
    %72 = math.exp %71 : vector<16x64xf32>
    %73 = arith.addf %68, %72 : vector<16x64xf32>
    %74 = arith.mulf %72, %33 : vector<16x64xf32>
    %75 = arith.addf %70, %74 : vector<16x64xf32>
    %76 = arith.subf %53, %63 : vector<16x64xf32>
    %77 = math.exp %76 : vector<16x64xf32>
    %78 = arith.addf %73, %77 : vector<16x64xf32>
    %79 = arith.mulf %77, %34 : vector<16x64xf32>
    %80 = arith.addf %75, %79 : vector<16x64xf32>
    %81 = arith.subf %54, %63 : vector<16x64xf32>
    %82 = math.exp %81 : vector<16x64xf32>
    %83 = arith.addf %78, %82 : vector<16x64xf32>
    %84 = arith.mulf %82, %35 : vector<16x64xf32>
    %85 = arith.addf %80, %84 : vector<16x64xf32>
    %86 = arith.subf %55, %63 : vector<16x64xf32>
    %87 = math.exp %86 : vector<16x64xf32>
    %88 = arith.addf %83, %87 : vector<16x64xf32>
    %89 = arith.mulf %87, %36 : vector<16x64xf32>
    %90 = arith.addf %85, %89 : vector<16x64xf32>
    %91 = arith.subf %56, %63 : vector<16x64xf32>
    %92 = math.exp %91 : vector<16x64xf32>
    %93 = arith.addf %88, %92 : vector<16x64xf32>
    %94 = arith.mulf %92, %37 : vector<16x64xf32>
    %95 = arith.addf %90, %94 : vector<16x64xf32>
    %96 = arith.subf %57, %63 : vector<16x64xf32>
    %97 = math.exp %96 : vector<16x64xf32>
    %98 = arith.addf %93, %97 : vector<16x64xf32>
    %99 = arith.mulf %97, %38 : vector<16x64xf32>
    %100 = arith.addf %95, %99 : vector<16x64xf32>
    %101 = tpu.reciprocal %98 {approx = true} : vector<16x64xf32> -> vector<16x64xf32>
    %102 = arith.mulf %100, %101 : vector<16x64xf32>
    %103 = arith.mulf %19, %25 : vector<16x64xf32>
    %104 = arith.mulf %19, %26 : vector<16x64xf32>
    %105 = arith.mulf %19, %27 : vector<16x64xf32>
    %106 = arith.mulf %19, %28 : vector<16x64xf32>
    %107 = arith.mulf %19, %29 : vector<16x64xf32>
    %108 = arith.mulf %19, %30 : vector<16x64xf32>
    %109 = arith.mulf %19, %31 : vector<16x64xf32>
    %110 = tpu.concatenate %103, %104, %105, %106, %107, %108, %109 in 0 : vector<16x64xf32>, vector<16x64xf32>, vector<16x64xf32>, vector<16x64xf32>, vector<16x64xf32>, vector<16x64xf32>, vector<16x64xf32> -> vector<112x64xf32>
    %111 = arith.truncf %110 : vector<112x64xf32> to vector<112x64xbf16>
    %cst_13 = arith.constant dense<0.000000e+00> : vector<112x64xf32>
    %112 = tpu.matmul %111, %39, %cst_13 {dimension_numbers = #tpu.dot_dimension_numbers<[1], [0], [0], [1], [0, 0, 1, 1], [], []>} : vector<112x64xbf16>, vector<64x64xbf16>, vector<112x64xf32> -> vector<112x64xf32>
    %113 = vector.extract_strided_slice %112 {offsets = [0, 0], sizes = [16, 64], strides = [1, 1]} : vector<112x64xf32> to vector<16x64xf32>
    %114 = vector.extract_strided_slice %112 {offsets = [16, 0], sizes = [16, 64], strides = [1, 1]} : vector<112x64xf32> to vector<16x64xf32>
    %115 = vector.extract_strided_slice %112 {offsets = [32, 0], sizes = [16, 64], strides = [1, 1]} : vector<112x64xf32> to vector<16x64xf32>
    %116 = vector.extract_strided_slice %112 {offsets = [48, 0], sizes = [16, 64], strides = [1, 1]} : vector<112x64xf32> to vector<16x64xf32>
    %117 = vector.extract_strided_slice %112 {offsets = [64, 0], sizes = [16, 64], strides = [1, 1]} : vector<112x64xf32> to vector<16x64xf32>
    %118 = vector.extract_strided_slice %112 {offsets = [80, 0], sizes = [16, 64], strides = [1, 1]} : vector<112x64xf32> to vector<16x64xf32>
    %119 = vector.extract_strided_slice %112 {offsets = [96, 0], sizes = [16, 64], strides = [1, 1]} : vector<112x64xf32> to vector<16x64xf32>
    %120 = arith.maximumf %113, %114 : vector<16x64xf32>
    %121 = arith.maximumf %120, %115 : vector<16x64xf32>
    %122 = arith.maximumf %121, %116 : vector<16x64xf32>
    %123 = arith.maximumf %122, %117 : vector<16x64xf32>
    %124 = arith.maximumf %123, %118 : vector<16x64xf32>
    %125 = arith.maximumf %124, %119 : vector<16x64xf32>
    %cst_14 = arith.constant 0.000000e+00 : f32
    %126 = vector.broadcast %cst_14 : f32 to vector<16x64xf32>
    %cst_15 = arith.constant 0.000000e+00 : f32
    %127 = vector.broadcast %cst_15 : f32 to vector<16x64xf32>
    %128 = arith.subf %113, %125 : vector<16x64xf32>
    %129 = math.exp %128 : vector<16x64xf32>
    %130 = arith.addf %126, %129 : vector<16x64xf32>
    %131 = arith.mulf %129, %32 : vector<16x64xf32>
    %132 = arith.addf %127, %131 : vector<16x64xf32>
    %133 = arith.subf %114, %125 : vector<16x64xf32>
    %134 = math.exp %133 : vector<16x64xf32>
    %135 = arith.addf %130, %134 : vector<16x64xf32>
    %136 = arith.mulf %134, %33 : vector<16x64xf32>
    %137 = arith.addf %132, %136 : vector<16x64xf32>
    %138 = arith.subf %115, %125 : vector<16x64xf32>
    %139 = math.exp %138 : vector<16x64xf32>
    %140 = arith.addf %135, %139 : vector<16x64xf32>
    %141 = arith.mulf %139, %34 : vector<16x64xf32>
    %142 = arith.addf %137, %141 : vector<16x64xf32>
    %143 = arith.subf %116, %125 : vector<16x64xf32>
    %144 = math.exp %143 : vector<16x64xf32>
    %145 = arith.addf %140, %144 : vector<16x64xf32>
    %146 = arith.mulf %144, %35 : vector<16x64xf32>
    %147 = arith.addf %142, %146 : vector<16x64xf32>
    %148 = arith.subf %117, %125 : vector<16x64xf32>
    %149 = math.exp %148 : vector<16x64xf32>
    %150 = arith.addf %145, %149 : vector<16x64xf32>
    %151 = arith.mulf %149, %36 : vector<16x64xf32>
    %152 = arith.addf %147, %151 : vector<16x64xf32>
    %153 = arith.subf %118, %125 : vector<16x64xf32>
    %154 = math.exp %153 : vector<16x64xf32>
    %155 = arith.addf %150, %154 : vector<16x64xf32>
    %156 = arith.mulf %154, %37 : vector<16x64xf32>
    %157 = arith.addf %152, %156 : vector<16x64xf32>
    %158 = arith.subf %119, %125 : vector<16x64xf32>
    %159 = math.exp %158 : vector<16x64xf32>
    %160 = arith.addf %155, %159 : vector<16x64xf32>
    %161 = arith.mulf %159, %38 : vector<16x64xf32>
    %162 = arith.addf %157, %161 : vector<16x64xf32>
    %163 = tpu.reciprocal %160 {approx = true} : vector<16x64xf32> -> vector<16x64xf32>
    %164 = arith.mulf %162, %163 : vector<16x64xf32>
    %165 = arith.mulf %20, %25 : vector<16x64xf32>
    %166 = arith.mulf %20, %26 : vector<16x64xf32>
    %167 = arith.mulf %20, %27 : vector<16x64xf32>
    %168 = arith.mulf %20, %28 : vector<16x64xf32>
    %169 = arith.mulf %20, %29 : vector<16x64xf32>
    %170 = arith.mulf %20, %30 : vector<16x64xf32>
    %171 = arith.mulf %20, %31 : vector<16x64xf32>
    %172 = tpu.concatenate %165, %166, %167, %168, %169, %170, %171 in 0 : vector<16x64xf32>, vector<16x64xf32>, vector<16x64xf32>, vector<16x64xf32>, vector<16x64xf32>, vector<16x64xf32>, vector<16x64xf32> -> vector<112x64xf32>
    %173 = arith.truncf %172 : vector<112x64xf32> to vector<112x64xbf16>
    %cst_16 = arith.constant dense<0.000000e+00> : vector<112x64xf32>
    %174 = tpu.matmul %173, %39, %cst_16 {dimension_numbers = #tpu.dot_dimension_numbers<[1], [0], [0], [1], [0, 0, 1, 1], [], []>} : vector<112x64xbf16>, vector<64x64xbf16>, vector<112x64xf32> -> vector<112x64xf32>
    %175 = vector.extract_strided_slice %174 {offsets = [0, 0], sizes = [16, 64], strides = [1, 1]} : vector<112x64xf32> to vector<16x64xf32>
    %176 = vector.extract_strided_slice %174 {offsets = [16, 0], sizes = [16, 64], strides = [1, 1]} : vector<112x64xf32> to vector<16x64xf32>
    %177 = vector.extract_strided_slice %174 {offsets = [32, 0], sizes = [16, 64], strides = [1, 1]} : vector<112x64xf32> to vector<16x64xf32>
    %178 = vector.extract_strided_slice %174 {offsets = [48, 0], sizes = [16, 64], strides = [1, 1]} : vector<112x64xf32> to vector<16x64xf32>
    %179 = vector.extract_strided_slice %174 {offsets = [64, 0], sizes = [16, 64], strides = [1, 1]} : vector<112x64xf32> to vector<16x64xf32>
    %180 = vector.extract_strided_slice %174 {offsets = [80, 0], sizes = [16, 64], strides = [1, 1]} : vector<112x64xf32> to vector<16x64xf32>
    %181 = vector.extract_strided_slice %174 {offsets = [96, 0], sizes = [16, 64], strides = [1, 1]} : vector<112x64xf32> to vector<16x64xf32>
    %182 = arith.maximumf %175, %176 : vector<16x64xf32>
    %183 = arith.maximumf %182, %177 : vector<16x64xf32>
    %184 = arith.maximumf %183, %178 : vector<16x64xf32>
    %185 = arith.maximumf %184, %179 : vector<16x64xf32>
    %186 = arith.maximumf %185, %180 : vector<16x64xf32>
    %187 = arith.maximumf %186, %181 : vector<16x64xf32>
    %cst_17 = arith.constant 0.000000e+00 : f32
    %188 = vector.broadcast %cst_17 : f32 to vector<16x64xf32>
    %cst_18 = arith.constant 0.000000e+00 : f32
    %189 = vector.broadcast %cst_18 : f32 to vector<16x64xf32>
    %190 = arith.subf %175, %187 : vector<16x64xf32>
    %191 = math.exp %190 : vector<16x64xf32>
    %192 = arith.addf %188, %191 : vector<16x64xf32>
    %193 = arith.mulf %191, %32 : vector<16x64xf32>
    %194 = arith.addf %189, %193 : vector<16x64xf32>
    %195 = arith.subf %176, %187 : vector<16x64xf32>
    %196 = math.exp %195 : vector<16x64xf32>
    %197 = arith.addf %192, %196 : vector<16x64xf32>
    %198 = arith.mulf %196, %33 : vector<16x64xf32>
    %199 = arith.addf %194, %198 : vector<16x64xf32>
    %200 = arith.subf %177, %187 : vector<16x64xf32>
    %201 = math.exp %200 : vector<16x64xf32>
    %202 = arith.addf %197, %201 : vector<16x64xf32>
    %203 = arith.mulf %201, %34 : vector<16x64xf32>
    %204 = arith.addf %199, %203 : vector<16x64xf32>
    %205 = arith.subf %178, %187 : vector<16x64xf32>
    %206 = math.exp %205 : vector<16x64xf32>
    %207 = arith.addf %202, %206 : vector<16x64xf32>
    %208 = arith.mulf %206, %35 : vector<16x64xf32>
    %209 = arith.addf %204, %208 : vector<16x64xf32>
    %210 = arith.subf %179, %187 : vector<16x64xf32>
    %211 = math.exp %210 : vector<16x64xf32>
    %212 = arith.addf %207, %211 : vector<16x64xf32>
    %213 = arith.mulf %211, %36 : vector<16x64xf32>
    %214 = arith.addf %209, %213 : vector<16x64xf32>
    %215 = arith.subf %180, %187 : vector<16x64xf32>
    %216 = math.exp %215 : vector<16x64xf32>
    %217 = arith.addf %212, %216 : vector<16x64xf32>
    %218 = arith.mulf %216, %37 : vector<16x64xf32>
    %219 = arith.addf %214, %218 : vector<16x64xf32>
    %220 = arith.subf %181, %187 : vector<16x64xf32>
    %221 = math.exp %220 : vector<16x64xf32>
    %222 = arith.addf %217, %221 : vector<16x64xf32>
    %223 = arith.mulf %221, %38 : vector<16x64xf32>
    %224 = arith.addf %219, %223 : vector<16x64xf32>
    %225 = tpu.reciprocal %222 {approx = true} : vector<16x64xf32> -> vector<16x64xf32>
    %226 = arith.mulf %224, %225 : vector<16x64xf32>
    %227 = arith.mulf %21, %25 : vector<16x64xf32>
    %228 = arith.mulf %21, %26 : vector<16x64xf32>
    %229 = arith.mulf %21, %27 : vector<16x64xf32>
    %230 = arith.mulf %21, %28 : vector<16x64xf32>
    %231 = arith.mulf %21, %29 : vector<16x64xf32>
    %232 = arith.mulf %21, %30 : vector<16x64xf32>
    %233 = arith.mulf %21, %31 : vector<16x64xf32>
    %234 = tpu.concatenate %227, %228, %229, %230, %231, %232, %233 in 0 : vector<16x64xf32>, vector<16x64xf32>, vector<16x64xf32>, vector<16x64xf32>, vector<16x64xf32>, vector<16x64xf32>, vector<16x64xf32> -> vector<112x64xf32>
    %235 = arith.truncf %234 : vector<112x64xf32> to vector<112x64xbf16>
    %cst_19 = arith.constant dense<0.000000e+00> : vector<112x64xf32>
    %236 = tpu.matmul %235, %39, %cst_19 {dimension_numbers = #tpu.dot_dimension_numbers<[1], [0], [0], [1], [0, 0, 1, 1], [], []>} : vector<112x64xbf16>, vector<64x64xbf16>, vector<112x64xf32> -> vector<112x64xf32>
    %237 = vector.extract_strided_slice %236 {offsets = [0, 0], sizes = [16, 64], strides = [1, 1]} : vector<112x64xf32> to vector<16x64xf32>
    %238 = vector.extract_strided_slice %236 {offsets = [16, 0], sizes = [16, 64], strides = [1, 1]} : vector<112x64xf32> to vector<16x64xf32>
    %239 = vector.extract_strided_slice %236 {offsets = [32, 0], sizes = [16, 64], strides = [1, 1]} : vector<112x64xf32> to vector<16x64xf32>
    %240 = vector.extract_strided_slice %236 {offsets = [48, 0], sizes = [16, 64], strides = [1, 1]} : vector<112x64xf32> to vector<16x64xf32>
    %241 = vector.extract_strided_slice %236 {offsets = [64, 0], sizes = [16, 64], strides = [1, 1]} : vector<112x64xf32> to vector<16x64xf32>
    %242 = vector.extract_strided_slice %236 {offsets = [80, 0], sizes = [16, 64], strides = [1, 1]} : vector<112x64xf32> to vector<16x64xf32>
    %243 = vector.extract_strided_slice %236 {offsets = [96, 0], sizes = [16, 64], strides = [1, 1]} : vector<112x64xf32> to vector<16x64xf32>
    %244 = arith.maximumf %237, %238 : vector<16x64xf32>
    %245 = arith.maximumf %244, %239 : vector<16x64xf32>
    %246 = arith.maximumf %245, %240 : vector<16x64xf32>
    %247 = arith.maximumf %246, %241 : vector<16x64xf32>
    %248 = arith.maximumf %247, %242 : vector<16x64xf32>
    %249 = arith.maximumf %248, %243 : vector<16x64xf32>
    %cst_20 = arith.constant 0.000000e+00 : f32
    %250 = vector.broadcast %cst_20 : f32 to vector<16x64xf32>
    %cst_21 = arith.constant 0.000000e+00 : f32
    %251 = vector.broadcast %cst_21 : f32 to vector<16x64xf32>
    %252 = arith.subf %237, %249 : vector<16x64xf32>
    %253 = math.exp %252 : vector<16x64xf32>
    %254 = arith.addf %250, %253 : vector<16x64xf32>
    %255 = arith.mulf %253, %32 : vector<16x64xf32>
    %256 = arith.addf %251, %255 : vector<16x64xf32>
    %257 = arith.subf %238, %249 : vector<16x64xf32>
    %258 = math.exp %257 : vector<16x64xf32>
    %259 = arith.addf %254, %258 : vector<16x64xf32>
    %260 = arith.mulf %258, %33 : vector<16x64xf32>
    %261 = arith.addf %256, %260 : vector<16x64xf32>
    %262 = arith.subf %239, %249 : vector<16x64xf32>
    %263 = math.exp %262 : vector<16x64xf32>
    %264 = arith.addf %259, %263 : vector<16x64xf32>
    %265 = arith.mulf %263, %34 : vector<16x64xf32>
    %266 = arith.addf %261, %265 : vector<16x64xf32>
    %267 = arith.subf %240, %249 : vector<16x64xf32>
    %268 = math.exp %267 : vector<16x64xf32>
    %269 = arith.addf %264, %268 : vector<16x64xf32>
    %270 = arith.mulf %268, %35 : vector<16x64xf32>
    %271 = arith.addf %266, %270 : vector<16x64xf32>
    %272 = arith.subf %241, %249 : vector<16x64xf32>
    %273 = math.exp %272 : vector<16x64xf32>
    %274 = arith.addf %269, %273 : vector<16x64xf32>
    %275 = arith.mulf %273, %36 : vector<16x64xf32>
    %276 = arith.addf %271, %275 : vector<16x64xf32>
    %277 = arith.subf %242, %249 : vector<16x64xf32>
    %278 = math.exp %277 : vector<16x64xf32>
    %279 = arith.addf %274, %278 : vector<16x64xf32>
    %280 = arith.mulf %278, %37 : vector<16x64xf32>
    %281 = arith.addf %276, %280 : vector<16x64xf32>
    %282 = arith.subf %243, %249 : vector<16x64xf32>
    %283 = math.exp %282 : vector<16x64xf32>
    %284 = arith.addf %279, %283 : vector<16x64xf32>
    %285 = arith.mulf %283, %38 : vector<16x64xf32>
    %286 = arith.addf %281, %285 : vector<16x64xf32>
    %287 = tpu.reciprocal %284 {approx = true} : vector<16x64xf32> -> vector<16x64xf32>
    %288 = arith.mulf %286, %287 : vector<16x64xf32>
    %289 = arith.mulf %22, %25 : vector<16x64xf32>
    %290 = arith.mulf %22, %26 : vector<16x64xf32>
    %291 = arith.mulf %22, %27 : vector<16x64xf32>
    %292 = arith.mulf %22, %28 : vector<16x64xf32>
    %293 = arith.mulf %22, %29 : vector<16x64xf32>
    %294 = arith.mulf %22, %30 : vector<16x64xf32>
    %295 = arith.mulf %22, %31 : vector<16x64xf32>
    %296 = tpu.concatenate %289, %290, %291, %292, %293, %294, %295 in 0 : vector<16x64xf32>, vector<16x64xf32>, vector<16x64xf32>, vector<16x64xf32>, vector<16x64xf32>, vector<16x64xf32>, vector<16x64xf32> -> vector<112x64xf32>
    %297 = arith.truncf %296 : vector<112x64xf32> to vector<112x64xbf16>
    %cst_22 = arith.constant dense<0.000000e+00> : vector<112x64xf32>
    %298 = tpu.matmul %297, %39, %cst_22 {dimension_numbers = #tpu.dot_dimension_numbers<[1], [0], [0], [1], [0, 0, 1, 1], [], []>} : vector<112x64xbf16>, vector<64x64xbf16>, vector<112x64xf32> -> vector<112x64xf32>
    %299 = vector.extract_strided_slice %298 {offsets = [0, 0], sizes = [16, 64], strides = [1, 1]} : vector<112x64xf32> to vector<16x64xf32>
    %300 = vector.extract_strided_slice %298 {offsets = [16, 0], sizes = [16, 64], strides = [1, 1]} : vector<112x64xf32> to vector<16x64xf32>
    %301 = vector.extract_strided_slice %298 {offsets = [32, 0], sizes = [16, 64], strides = [1, 1]} : vector<112x64xf32> to vector<16x64xf32>
    %302 = vector.extract_strided_slice %298 {offsets = [48, 0], sizes = [16, 64], strides = [1, 1]} : vector<112x64xf32> to vector<16x64xf32>
    %303 = vector.extract_strided_slice %298 {offsets = [64, 0], sizes = [16, 64], strides = [1, 1]} : vector<112x64xf32> to vector<16x64xf32>
    %304 = vector.extract_strided_slice %298 {offsets = [80, 0], sizes = [16, 64], strides = [1, 1]} : vector<112x64xf32> to vector<16x64xf32>
    %305 = vector.extract_strided_slice %298 {offsets = [96, 0], sizes = [16, 64], strides = [1, 1]} : vector<112x64xf32> to vector<16x64xf32>
    %306 = arith.maximumf %299, %300 : vector<16x64xf32>
    %307 = arith.maximumf %306, %301 : vector<16x64xf32>
    %308 = arith.maximumf %307, %302 : vector<16x64xf32>
    %309 = arith.maximumf %308, %303 : vector<16x64xf32>
    %310 = arith.maximumf %309, %304 : vector<16x64xf32>
    %311 = arith.maximumf %310, %305 : vector<16x64xf32>
    %cst_23 = arith.constant 0.000000e+00 : f32
    %312 = vector.broadcast %cst_23 : f32 to vector<16x64xf32>
    %cst_24 = arith.constant 0.000000e+00 : f32
    %313 = vector.broadcast %cst_24 : f32 to vector<16x64xf32>
    %314 = arith.subf %299, %311 : vector<16x64xf32>
    %315 = math.exp %314 : vector<16x64xf32>
    %316 = arith.addf %312, %315 : vector<16x64xf32>
    %317 = arith.mulf %315, %32 : vector<16x64xf32>
    %318 = arith.addf %313, %317 : vector<16x64xf32>
    %319 = arith.subf %300, %311 : vector<16x64xf32>
    %320 = math.exp %319 : vector<16x64xf32>
    %321 = arith.addf %316, %320 : vector<16x64xf32>
    %322 = arith.mulf %320, %33 : vector<16x64xf32>
    %323 = arith.addf %318, %322 : vector<16x64xf32>
    %324 = arith.subf %301, %311 : vector<16x64xf32>
    %325 = math.exp %324 : vector<16x64xf32>
    %326 = arith.addf %321, %325 : vector<16x64xf32>
    %327 = arith.mulf %325, %34 : vector<16x64xf32>
    %328 = arith.addf %323, %327 : vector<16x64xf32>
    %329 = arith.subf %302, %311 : vector<16x64xf32>
    %330 = math.exp %329 : vector<16x64xf32>
    %331 = arith.addf %326, %330 : vector<16x64xf32>
    %332 = arith.mulf %330, %35 : vector<16x64xf32>
    %333 = arith.addf %328, %332 : vector<16x64xf32>
    %334 = arith.subf %303, %311 : vector<16x64xf32>
    %335 = math.exp %334 : vector<16x64xf32>
    %336 = arith.addf %331, %335 : vector<16x64xf32>
    %337 = arith.mulf %335, %36 : vector<16x64xf32>
    %338 = arith.addf %333, %337 : vector<16x64xf32>
    %339 = arith.subf %304, %311 : vector<16x64xf32>
    %340 = math.exp %339 : vector<16x64xf32>
    %341 = arith.addf %336, %340 : vector<16x64xf32>
    %342 = arith.mulf %340, %37 : vector<16x64xf32>
    %343 = arith.addf %338, %342 : vector<16x64xf32>
    %344 = arith.subf %305, %311 : vector<16x64xf32>
    %345 = math.exp %344 : vector<16x64xf32>
    %346 = arith.addf %341, %345 : vector<16x64xf32>
    %347 = arith.mulf %345, %38 : vector<16x64xf32>
    %348 = arith.addf %343, %347 : vector<16x64xf32>
    %349 = tpu.reciprocal %346 {approx = true} : vector<16x64xf32> -> vector<16x64xf32>
    %350 = arith.mulf %348, %349 : vector<16x64xf32>
    %351 = arith.mulf %23, %25 : vector<16x64xf32>
    %352 = arith.mulf %23, %26 : vector<16x64xf32>
    %353 = arith.mulf %23, %27 : vector<16x64xf32>
    %354 = arith.mulf %23, %28 : vector<16x64xf32>
    %355 = arith.mulf %23, %29 : vector<16x64xf32>
    %356 = arith.mulf %23, %30 : vector<16x64xf32>
    %357 = arith.mulf %23, %31 : vector<16x64xf32>
    %358 = tpu.concatenate %351, %352, %353, %354, %355, %356, %357 in 0 : vector<16x64xf32>, vector<16x64xf32>, vector<16x64xf32>, vector<16x64xf32>, vector<16x64xf32>, vector<16x64xf32>, vector<16x64xf32> -> vector<112x64xf32>
    %359 = arith.truncf %358 : vector<112x64xf32> to vector<112x64xbf16>
    %cst_25 = arith.constant dense<0.000000e+00> : vector<112x64xf32>
    %360 = tpu.matmul %359, %39, %cst_25 {dimension_numbers = #tpu.dot_dimension_numbers<[1], [0], [0], [1], [0, 0, 1, 1], [], []>} : vector<112x64xbf16>, vector<64x64xbf16>, vector<112x64xf32> -> vector<112x64xf32>
    %361 = vector.extract_strided_slice %360 {offsets = [0, 0], sizes = [16, 64], strides = [1, 1]} : vector<112x64xf32> to vector<16x64xf32>
    %362 = vector.extract_strided_slice %360 {offsets = [16, 0], sizes = [16, 64], strides = [1, 1]} : vector<112x64xf32> to vector<16x64xf32>
    %363 = vector.extract_strided_slice %360 {offsets = [32, 0], sizes = [16, 64], strides = [1, 1]} : vector<112x64xf32> to vector<16x64xf32>
    %364 = vector.extract_strided_slice %360 {offsets = [48, 0], sizes = [16, 64], strides = [1, 1]} : vector<112x64xf32> to vector<16x64xf32>
    %365 = vector.extract_strided_slice %360 {offsets = [64, 0], sizes = [16, 64], strides = [1, 1]} : vector<112x64xf32> to vector<16x64xf32>
    %366 = vector.extract_strided_slice %360 {offsets = [80, 0], sizes = [16, 64], strides = [1, 1]} : vector<112x64xf32> to vector<16x64xf32>
    %367 = vector.extract_strided_slice %360 {offsets = [96, 0], sizes = [16, 64], strides = [1, 1]} : vector<112x64xf32> to vector<16x64xf32>
    %368 = arith.maximumf %361, %362 : vector<16x64xf32>
    %369 = arith.maximumf %368, %363 : vector<16x64xf32>
    %370 = arith.maximumf %369, %364 : vector<16x64xf32>
    %371 = arith.maximumf %370, %365 : vector<16x64xf32>
    %372 = arith.maximumf %371, %366 : vector<16x64xf32>
    %373 = arith.maximumf %372, %367 : vector<16x64xf32>
    %cst_26 = arith.constant 0.000000e+00 : f32
    %374 = vector.broadcast %cst_26 : f32 to vector<16x64xf32>
    %cst_27 = arith.constant 0.000000e+00 : f32
    %375 = vector.broadcast %cst_27 : f32 to vector<16x64xf32>
    %376 = arith.subf %361, %373 : vector<16x64xf32>
    %377 = math.exp %376 : vector<16x64xf32>
    %378 = arith.addf %374, %377 : vector<16x64xf32>
    %379 = arith.mulf %377, %32 : vector<16x64xf32>
    %380 = arith.addf %375, %379 : vector<16x64xf32>
    %381 = arith.subf %362, %373 : vector<16x64xf32>
    %382 = math.exp %381 : vector<16x64xf32>
    %383 = arith.addf %378, %382 : vector<16x64xf32>
    %384 = arith.mulf %382, %33 : vector<16x64xf32>
    %385 = arith.addf %380, %384 : vector<16x64xf32>
    %386 = arith.subf %363, %373 : vector<16x64xf32>
    %387 = math.exp %386 : vector<16x64xf32>
    %388 = arith.addf %383, %387 : vector<16x64xf32>
    %389 = arith.mulf %387, %34 : vector<16x64xf32>
    %390 = arith.addf %385, %389 : vector<16x64xf32>
    %391 = arith.subf %364, %373 : vector<16x64xf32>
    %392 = math.exp %391 : vector<16x64xf32>
    %393 = arith.addf %388, %392 : vector<16x64xf32>
    %394 = arith.mulf %392, %35 : vector<16x64xf32>
    %395 = arith.addf %390, %394 : vector<16x64xf32>
    %396 = arith.subf %365, %373 : vector<16x64xf32>
    %397 = math.exp %396 : vector<16x64xf32>
    %398 = arith.addf %393, %397 : vector<16x64xf32>
    %399 = arith.mulf %397, %36 : vector<16x64xf32>
    %400 = arith.addf %395, %399 : vector<16x64xf32>
    %401 = arith.subf %366, %373 : vector<16x64xf32>
    %402 = math.exp %401 : vector<16x64xf32>
    %403 = arith.addf %398, %402 : vector<16x64xf32>
    %404 = arith.mulf %402, %37 : vector<16x64xf32>
    %405 = arith.addf %400, %404 : vector<16x64xf32>
    %406 = arith.subf %367, %373 : vector<16x64xf32>
    %407 = math.exp %406 : vector<16x64xf32>
    %408 = arith.addf %403, %407 : vector<16x64xf32>
    %409 = arith.mulf %407, %38 : vector<16x64xf32>
    %410 = arith.addf %405, %409 : vector<16x64xf32>
    %411 = tpu.reciprocal %408 {approx = true} : vector<16x64xf32> -> vector<16x64xf32>
    %412 = arith.mulf %410, %411 : vector<16x64xf32>
    %413 = arith.mulf %24, %25 : vector<16x64xf32>
    %414 = arith.mulf %24, %26 : vector<16x64xf32>
    %415 = arith.mulf %24, %27 : vector<16x64xf32>
    %416 = arith.mulf %24, %28 : vector<16x64xf32>
    %417 = arith.mulf %24, %29 : vector<16x64xf32>
    %418 = arith.mulf %24, %30 : vector<16x64xf32>
    %419 = arith.mulf %24, %31 : vector<16x64xf32>
    %420 = tpu.concatenate %413, %414, %415, %416, %417, %418, %419 in 0 : vector<16x64xf32>, vector<16x64xf32>, vector<16x64xf32>, vector<16x64xf32>, vector<16x64xf32>, vector<16x64xf32>, vector<16x64xf32> -> vector<112x64xf32>
    %421 = arith.truncf %420 : vector<112x64xf32> to vector<112x64xbf16>
    %cst_28 = arith.constant dense<0.000000e+00> : vector<112x64xf32>
    %422 = tpu.matmul %421, %39, %cst_28 {dimension_numbers = #tpu.dot_dimension_numbers<[1], [0], [0], [1], [0, 0, 1, 1], [], []>} : vector<112x64xbf16>, vector<64x64xbf16>, vector<112x64xf32> -> vector<112x64xf32>
    %423 = vector.extract_strided_slice %422 {offsets = [0, 0], sizes = [16, 64], strides = [1, 1]} : vector<112x64xf32> to vector<16x64xf32>
    %424 = vector.extract_strided_slice %422 {offsets = [16, 0], sizes = [16, 64], strides = [1, 1]} : vector<112x64xf32> to vector<16x64xf32>
    %425 = vector.extract_strided_slice %422 {offsets = [32, 0], sizes = [16, 64], strides = [1, 1]} : vector<112x64xf32> to vector<16x64xf32>
    %426 = vector.extract_strided_slice %422 {offsets = [48, 0], sizes = [16, 64], strides = [1, 1]} : vector<112x64xf32> to vector<16x64xf32>
    %427 = vector.extract_strided_slice %422 {offsets = [64, 0], sizes = [16, 64], strides = [1, 1]} : vector<112x64xf32> to vector<16x64xf32>
    %428 = vector.extract_strided_slice %422 {offsets = [80, 0], sizes = [16, 64], strides = [1, 1]} : vector<112x64xf32> to vector<16x64xf32>
    %429 = vector.extract_strided_slice %422 {offsets = [96, 0], sizes = [16, 64], strides = [1, 1]} : vector<112x64xf32> to vector<16x64xf32>
    %430 = arith.maximumf %423, %424 : vector<16x64xf32>
    %431 = arith.maximumf %430, %425 : vector<16x64xf32>
    %432 = arith.maximumf %431, %426 : vector<16x64xf32>
    %433 = arith.maximumf %432, %427 : vector<16x64xf32>
    %434 = arith.maximumf %433, %428 : vector<16x64xf32>
    %435 = arith.maximumf %434, %429 : vector<16x64xf32>
    %cst_29 = arith.constant 0.000000e+00 : f32
    %436 = vector.broadcast %cst_29 : f32 to vector<16x64xf32>
    %cst_30 = arith.constant 0.000000e+00 : f32
    %437 = vector.broadcast %cst_30 : f32 to vector<16x64xf32>
    %438 = arith.subf %423, %435 : vector<16x64xf32>
    %439 = math.exp %438 : vector<16x64xf32>
    %440 = arith.addf %436, %439 : vector<16x64xf32>
    %441 = arith.mulf %439, %32 : vector<16x64xf32>
    %442 = arith.addf %437, %441 : vector<16x64xf32>
    %443 = arith.subf %424, %435 : vector<16x64xf32>
    %444 = math.exp %443 : vector<16x64xf32>
    %445 = arith.addf %440, %444 : vector<16x64xf32>
    %446 = arith.mulf %444, %33 : vector<16x64xf32>
    %447 = arith.addf %442, %446 : vector<16x64xf32>
    %448 = arith.subf %425, %435 : vector<16x64xf32>
    %449 = math.exp %448 : vector<16x64xf32>
    %450 = arith.addf %445, %449 : vector<16x64xf32>
    %451 = arith.mulf %449, %34 : vector<16x64xf32>
    %452 = arith.addf %447, %451 : vector<16x64xf32>
    %453 = arith.subf %426, %435 : vector<16x64xf32>
    %454 = math.exp %453 : vector<16x64xf32>
    %455 = arith.addf %450, %454 : vector<16x64xf32>
    %456 = arith.mulf %454, %35 : vector<16x64xf32>
    %457 = arith.addf %452, %456 : vector<16x64xf32>
    %458 = arith.subf %427, %435 : vector<16x64xf32>
    %459 = math.exp %458 : vector<16x64xf32>
    %460 = arith.addf %455, %459 : vector<16x64xf32>
    %461 = arith.mulf %459, %36 : vector<16x64xf32>
    %462 = arith.addf %457, %461 : vector<16x64xf32>
    %463 = arith.subf %428, %435 : vector<16x64xf32>
    %464 = math.exp %463 : vector<16x64xf32>
    %465 = arith.addf %460, %464 : vector<16x64xf32>
    %466 = arith.mulf %464, %37 : vector<16x64xf32>
    %467 = arith.addf %462, %466 : vector<16x64xf32>
    %468 = arith.subf %429, %435 : vector<16x64xf32>
    %469 = math.exp %468 : vector<16x64xf32>
    %470 = arith.addf %465, %469 : vector<16x64xf32>
    %471 = arith.mulf %469, %38 : vector<16x64xf32>
    %472 = arith.addf %467, %471 : vector<16x64xf32>
    %473 = tpu.reciprocal %470 {approx = true} : vector<16x64xf32> -> vector<16x64xf32>
    %474 = arith.mulf %472, %473 : vector<16x64xf32>
    %475 = tpu.concatenate %102, %164, %226, %288, %350, %412, %474 in 0 : vector<16x64xf32>, vector<16x64xf32>, vector<16x64xf32>, vector<16x64xf32>, vector<16x64xf32>, vector<16x64xf32>, vector<16x64xf32> -> vector<112x64xf32>
    %476 = arith.truncf %475 : vector<112x64xf32> to vector<112x64xbf16>
    %cst_31 = arith.constant dense<0.000000e+00> : vector<112x64xf32>
    %477 = tpu.matmul %476, %40, %cst_31 {dimension_numbers = #tpu.dot_dimension_numbers<[1], [0], [0], [1], [0, 0, 1, 1], [], []>} : vector<112x64xbf16>, vector<64x64xbf16>, vector<112x64xf32> -> vector<112x64xf32>
    %478 = vector.broadcast %2 : vector<1x64xf32> to vector<112x64xf32>
    %479 = arith.addf %477, %478 : vector<112x64xf32>
    %480 = arith.extf %13 : vector<112x64xbf16> to vector<112x64xf32>
    %481 = arith.addf %480, %479 : vector<112x64xf32>
    %cst_32 = arith.constant dense<0.000000e+00> : vector<112xf32>
    %482 = vector.multi_reduction <add>, %481, %cst_32 [1] : vector<112x64xf32> to vector<112xf32>
    %483 = vector.shape_cast %482 : vector<112xf32> to vector<112x1xf32>
    %cst_33 = arith.constant 6.400000e+01 : f32
    %484 = vector.broadcast %cst_33 : f32 to vector<112x1xf32>
    %485 = arith.divf %483, %484 : vector<112x1xf32>
    %486 = vector.broadcast %485 : vector<112x1xf32> to vector<112x64xf32>
    %487 = arith.subf %481, %486 : vector<112x64xf32>
    %488 = arith.mulf %487, %487 : vector<112x64xf32>
    %cst_34 = arith.constant dense<0.000000e+00> : vector<112xf32>
    %489 = vector.multi_reduction <add>, %488, %cst_34 [1] : vector<112x64xf32> to vector<112xf32>
    %490 = vector.shape_cast %489 : vector<112xf32> to vector<112x1xf32>
    %cst_35 = arith.constant 6.400000e+01 : f32
    %491 = vector.broadcast %cst_35 : f32 to vector<112x1xf32>
    %492 = arith.divf %490, %491 : vector<112x1xf32>
    %493 = vector.broadcast %485 : vector<112x1xf32> to vector<112x64xf32>
    %494 = arith.subf %481, %493 : vector<112x64xf32>
    %cst_36 = arith.constant 9.99999974E-6 : f32
    %495 = vector.broadcast %cst_36 : f32 to vector<112x1xf32>
    %496 = arith.addf %492, %495 : vector<112x1xf32>
    %497 = math.rsqrt %496 : vector<112x1xf32>
    %498 = vector.broadcast %497 : vector<112x1xf32> to vector<112x64xf32>
    %499 = arith.mulf %494, %498 : vector<112x64xf32>
    %500 = vector.broadcast %3 : vector<1x64xf32> to vector<112x64xf32>
    %501 = arith.mulf %499, %500 : vector<112x64xf32>
    %502 = vector.broadcast %4 : vector<1x64xf32> to vector<112x64xf32>
    %503 = arith.addf %501, %502 : vector<112x64xf32>
    %c0_37 = arith.constant 0 : index
    %c0_38 = arith.constant 0 : index
    %504 = vector.load %arg2[%c0_37, %c0_38] : memref<16x128xf32, #tpu.memory_space<vmem>>, vector<16x128xf32>
    %c0_39 = arith.constant 0 : index
    %c0_40 = arith.constant 0 : index
    %505 = vector.load %arg7[%c0_39, %c0_40] : memref<128x384xbf16, #tpu.memory_space<vmem>>, vector<128x384xbf16>
    %506 = arith.truncf %504 : vector<16x128xf32> to vector<16x128xbf16>
    %cst_41 = arith.constant dense<0.000000e+00> : vector<16x384xf32>
    %507 = tpu.matmul %506, %505, %cst_41 {dimension_numbers = #tpu.dot_dimension_numbers<[1], [0], [0], [1], [0, 0, 1, 1], [], []>} : vector<16x128xbf16>, vector<128x384xbf16>, vector<16x384xf32> -> vector<16x384xf32>
    %508 = vector.broadcast %5 : vector<1x384xf32> to vector<16x384xf32>
    %509 = arith.addf %507, %508 : vector<16x384xf32>
    %510 = vector.extract_strided_slice %503 {offsets = [0, 0], sizes = [16, 64], strides = [1, 1]} : vector<112x64xf32> to vector<16x64xf32>
    %c0_42 = arith.constant 0 : index
    %c0_43 = arith.constant 0 : index
    %c0_44 = arith.constant 0 : index
    %511 = vector.load %arg6[%c0_42, %c0_43, %c0_44] : memref<7x64x384xbf16, #tpu.memory_space<vmem>>, vector<1x64x384xbf16>
    %512 = vector.shape_cast %511 : vector<1x64x384xbf16> to vector<64x384xbf16>
    %513 = arith.truncf %510 : vector<16x64xf32> to vector<16x64xbf16>
    %cst_45 = arith.constant dense<0.000000e+00> : vector<16x384xf32>
    %514 = tpu.matmul %513, %512, %cst_45 {dimension_numbers = #tpu.dot_dimension_numbers<[1], [0], [0], [1], [0, 0, 1, 1], [], []>} : vector<16x64xbf16>, vector<64x384xbf16>, vector<16x384xf32> -> vector<16x384xf32>
    %515 = arith.addf %509, %514 : vector<16x384xf32>
    %516 = vector.extract_strided_slice %503 {offsets = [16, 0], sizes = [16, 64], strides = [1, 1]} : vector<112x64xf32> to vector<16x64xf32>
    %c1 = arith.constant 1 : index
    %c0_46 = arith.constant 0 : index
    %c0_47 = arith.constant 0 : index
    %517 = vector.load %arg6[%c1, %c0_46, %c0_47] : memref<7x64x384xbf16, #tpu.memory_space<vmem>>, vector<1x64x384xbf16>
    %518 = vector.shape_cast %517 : vector<1x64x384xbf16> to vector<64x384xbf16>
    %519 = arith.truncf %516 : vector<16x64xf32> to vector<16x64xbf16>
    %cst_48 = arith.constant dense<0.000000e+00> : vector<16x384xf32>
    %520 = tpu.matmul %519, %518, %cst_48 {dimension_numbers = #tpu.dot_dimension_numbers<[1], [0], [0], [1], [0, 0, 1, 1], [], []>} : vector<16x64xbf16>, vector<64x384xbf16>, vector<16x384xf32> -> vector<16x384xf32>
    %521 = arith.addf %515, %520 : vector<16x384xf32>
    %522 = vector.extract_strided_slice %503 {offsets = [32, 0], sizes = [16, 64], strides = [1, 1]} : vector<112x64xf32> to vector<16x64xf32>
    %c2 = arith.constant 2 : index
    %c0_49 = arith.constant 0 : index
    %c0_50 = arith.constant 0 : index
    %523 = vector.load %arg6[%c2, %c0_49, %c0_50] : memref<7x64x384xbf16, #tpu.memory_space<vmem>>, vector<1x64x384xbf16>
    %524 = vector.shape_cast %523 : vector<1x64x384xbf16> to vector<64x384xbf16>
    %525 = arith.truncf %522 : vector<16x64xf32> to vector<16x64xbf16>
    %cst_51 = arith.constant dense<0.000000e+00> : vector<16x384xf32>
    %526 = tpu.matmul %525, %524, %cst_51 {dimension_numbers = #tpu.dot_dimension_numbers<[1], [0], [0], [1], [0, 0, 1, 1], [], []>} : vector<16x64xbf16>, vector<64x384xbf16>, vector<16x384xf32> -> vector<16x384xf32>
    %527 = arith.addf %521, %526 : vector<16x384xf32>
    %528 = vector.extract_strided_slice %503 {offsets = [48, 0], sizes = [16, 64], strides = [1, 1]} : vector<112x64xf32> to vector<16x64xf32>
    %c3 = arith.constant 3 : index
    %c0_52 = arith.constant 0 : index
    %c0_53 = arith.constant 0 : index
    %529 = vector.load %arg6[%c3, %c0_52, %c0_53] : memref<7x64x384xbf16, #tpu.memory_space<vmem>>, vector<1x64x384xbf16>
    %530 = vector.shape_cast %529 : vector<1x64x384xbf16> to vector<64x384xbf16>
    %531 = arith.truncf %528 : vector<16x64xf32> to vector<16x64xbf16>
    %cst_54 = arith.constant dense<0.000000e+00> : vector<16x384xf32>
    %532 = tpu.matmul %531, %530, %cst_54 {dimension_numbers = #tpu.dot_dimension_numbers<[1], [0], [0], [1], [0, 0, 1, 1], [], []>} : vector<16x64xbf16>, vector<64x384xbf16>, vector<16x384xf32> -> vector<16x384xf32>
    %533 = arith.addf %527, %532 : vector<16x384xf32>
    %534 = vector.extract_strided_slice %503 {offsets = [64, 0], sizes = [16, 64], strides = [1, 1]} : vector<112x64xf32> to vector<16x64xf32>
    %c4 = arith.constant 4 : index
    %c0_55 = arith.constant 0 : index
    %c0_56 = arith.constant 0 : index
    %535 = vector.load %arg6[%c4, %c0_55, %c0_56] : memref<7x64x384xbf16, #tpu.memory_space<vmem>>, vector<1x64x384xbf16>
    %536 = vector.shape_cast %535 : vector<1x64x384xbf16> to vector<64x384xbf16>
    %537 = arith.truncf %534 : vector<16x64xf32> to vector<16x64xbf16>
    %cst_57 = arith.constant dense<0.000000e+00> : vector<16x384xf32>
    %538 = tpu.matmul %537, %536, %cst_57 {dimension_numbers = #tpu.dot_dimension_numbers<[1], [0], [0], [1], [0, 0, 1, 1], [], []>} : vector<16x64xbf16>, vector<64x384xbf16>, vector<16x384xf32> -> vector<16x384xf32>
    %539 = arith.addf %533, %538 : vector<16x384xf32>
    %540 = vector.extract_strided_slice %503 {offsets = [80, 0], sizes = [16, 64], strides = [1, 1]} : vector<112x64xf32> to vector<16x64xf32>
    %c5 = arith.constant 5 : index
    %c0_58 = arith.constant 0 : index
    %c0_59 = arith.constant 0 : index
    %541 = vector.load %arg6[%c5, %c0_58, %c0_59] : memref<7x64x384xbf16, #tpu.memory_space<vmem>>, vector<1x64x384xbf16>
    %542 = vector.shape_cast %541 : vector<1x64x384xbf16> to vector<64x384xbf16>
    %543 = arith.truncf %540 : vector<16x64xf32> to vector<16x64xbf16>
    %cst_60 = arith.constant dense<0.000000e+00> : vector<16x384xf32>
    %544 = tpu.matmul %543, %542, %cst_60 {dimension_numbers = #tpu.dot_dimension_numbers<[1], [0], [0], [1], [0, 0, 1, 1], [], []>} : vector<16x64xbf16>, vector<64x384xbf16>, vector<16x384xf32> -> vector<16x384xf32>
    %545 = arith.addf %539, %544 : vector<16x384xf32>
    %546 = vector.extract_strided_slice %503 {offsets = [96, 0], sizes = [16, 64], strides = [1, 1]} : vector<112x64xf32> to vector<16x64xf32>
    %c6 = arith.constant 6 : index
    %c0_61 = arith.constant 0 : index
    %c0_62 = arith.constant 0 : index
    %547 = vector.load %arg6[%c6, %c0_61, %c0_62] : memref<7x64x384xbf16, #tpu.memory_space<vmem>>, vector<1x64x384xbf16>
    %548 = vector.shape_cast %547 : vector<1x64x384xbf16> to vector<64x384xbf16>
    %549 = arith.truncf %546 : vector<16x64xf32> to vector<16x64xbf16>
    %cst_63 = arith.constant dense<0.000000e+00> : vector<16x384xf32>
    %550 = tpu.matmul %549, %548, %cst_63 {dimension_numbers = #tpu.dot_dimension_numbers<[1], [0], [0], [1], [0, 0, 1, 1], [], []>} : vector<16x64xbf16>, vector<64x384xbf16>, vector<16x384xf32> -> vector<16x384xf32>
    %551 = arith.addf %545, %550 : vector<16x384xf32>
    %cst_64 = arith.constant 0.000000e+00 : f32
    %552 = vector.broadcast %cst_64 : f32 to vector<16x384xf32>
    %553 = arith.cmpf oge, %551, %552 : vector<16x384xf32>
    %cst_65 = arith.constant 2.000000e-01 : f32
    %554 = vector.broadcast %cst_65 : f32 to vector<16x384xf32>
    %555 = arith.mulf %554, %551 : vector<16x384xf32>
    %556 = arith.select %553, %551, %555 : vector<16x384xi1>, vector<16x384xf32>
    %c0_66 = arith.constant 0 : index
    %c0_67 = arith.constant 0 : index
    %557 = vector.load %arg8[%c0_66, %c0_67] : memref<384x384xbf16, #tpu.memory_space<vmem>>, vector<384x384xbf16>
    %558 = arith.truncf %556 : vector<16x384xf32> to vector<16x384xbf16>
    %cst_68 = arith.constant dense<0.000000e+00> : vector<16x384xf32>
    %559 = tpu.matmul %558, %557, %cst_68 {dimension_numbers = #tpu.dot_dimension_numbers<[1], [0], [0], [1], [0, 0, 1, 1], [], []>} : vector<16x384xbf16>, vector<384x384xbf16>, vector<16x384xf32> -> vector<16x384xf32>
    %560 = vector.broadcast %6 : vector<1x384xf32> to vector<16x384xf32>
    %561 = arith.addf %559, %560 : vector<16x384xf32>
    %cst_69 = arith.constant 0.000000e+00 : f32
    %562 = vector.broadcast %cst_69 : f32 to vector<16x384xf32>
    %563 = arith.cmpf oge, %561, %562 : vector<16x384xf32>
    %cst_70 = arith.constant 2.000000e-01 : f32
    %564 = vector.broadcast %cst_70 : f32 to vector<16x384xf32>
    %565 = arith.mulf %564, %561 : vector<16x384xf32>
    %566 = arith.select %563, %561, %565 : vector<16x384xi1>, vector<16x384xf32>
    %c0_71 = arith.constant 0 : index
    %c0_72 = arith.constant 0 : index
    %567 = vector.load %arg9[%c0_71, %c0_72] : memref<384x256xbf16, #tpu.memory_space<vmem>>, vector<384x256xbf16>
    %568 = arith.truncf %566 : vector<16x384xf32> to vector<16x384xbf16>
    %cst_73 = arith.constant dense<0.000000e+00> : vector<16x256xf32>
    %569 = tpu.matmul %568, %567, %cst_73 {dimension_numbers = #tpu.dot_dimension_numbers<[1], [0], [0], [1], [0, 0, 1, 1], [], []>} : vector<16x384xbf16>, vector<384x256xbf16>, vector<16x256xf32> -> vector<16x256xf32>
    %570 = vector.broadcast %7 : vector<1x256xf32> to vector<16x256xf32>
    %571 = arith.addf %569, %570 : vector<16x256xf32>
    %cst_74 = arith.constant 0.000000e+00 : f32
    %572 = vector.broadcast %cst_74 : f32 to vector<16x256xf32>
    %573 = arith.cmpf oge, %571, %572 : vector<16x256xf32>
    %cst_75 = arith.constant 2.000000e-01 : f32
    %574 = vector.broadcast %cst_75 : f32 to vector<16x256xf32>
    %575 = arith.mulf %574, %571 : vector<16x256xf32>
    %576 = arith.select %573, %571, %575 : vector<16x256xi1>, vector<16x256xf32>
    %c0_76 = arith.constant 0 : index
    %c0_77 = arith.constant 0 : index
    %577 = vector.load %arg10[%c0_76, %c0_77] : memref<256x128xbf16, #tpu.memory_space<vmem>>, vector<256x128xbf16>
    %578 = arith.truncf %576 : vector<16x256xf32> to vector<16x256xbf16>
    %cst_78 = arith.constant dense<0.000000e+00> : vector<16x128xf32>
    %579 = tpu.matmul %578, %577, %cst_78 {dimension_numbers = #tpu.dot_dimension_numbers<[1], [0], [0], [1], [0, 0, 1, 1], [], []>} : vector<16x256xbf16>, vector<256x128xbf16>, vector<16x128xf32> -> vector<16x128xf32>
    %580 = vector.broadcast %8 : vector<1x128xf32> to vector<16x128xf32>
    %581 = arith.addf %579, %580 : vector<16x128xf32>
    %cst_79 = arith.constant 0.000000e+00 : f32
    %582 = vector.broadcast %cst_79 : f32 to vector<16x128xf32>
    %583 = arith.cmpf oge, %581, %582 : vector<16x128xf32>
    %cst_80 = arith.constant 2.000000e-01 : f32
    %584 = vector.broadcast %cst_80 : f32 to vector<16x128xf32>
    %585 = arith.mulf %584, %581 : vector<16x128xf32>
    %586 = arith.select %583, %581, %585 : vector<16x128xi1>, vector<16x128xf32>
    %c0_81 = arith.constant 0 : index
    %c0_82 = arith.constant 0 : index
    %587 = vector.load %arg11[%c0_81, %c0_82] : memref<128x128xbf16, #tpu.memory_space<vmem>>, vector<128x128xbf16>
    %588 = arith.truncf %586 : vector<16x128xf32> to vector<16x128xbf16>
    %cst_83 = arith.constant dense<0.000000e+00> : vector<16x128xf32>
    %589 = tpu.matmul %588, %587, %cst_83 {dimension_numbers = #tpu.dot_dimension_numbers<[1], [0], [0], [1], [0, 0, 1, 1], [], []>} : vector<16x128xbf16>, vector<128x128xbf16>, vector<16x128xf32> -> vector<16x128xf32>
    %590 = vector.broadcast %9 : vector<1x128xf32> to vector<16x128xf32>
    %591 = arith.addf %589, %590 : vector<16x128xf32>
    %cst_84 = arith.constant 0.000000e+00 : f32
    %592 = vector.broadcast %cst_84 : f32 to vector<16x128xf32>
    %593 = arith.cmpf oge, %591, %592 : vector<16x128xf32>
    %cst_85 = arith.constant 2.000000e-01 : f32
    %594 = vector.broadcast %cst_85 : f32 to vector<16x128xf32>
    %595 = arith.mulf %594, %591 : vector<16x128xf32>
    %596 = arith.select %593, %591, %595 : vector<16x128xi1>, vector<16x128xf32>
    %c0_86 = arith.constant 0 : index
    %c0_87 = arith.constant 0 : index
    %597 = vector.load %arg12[%c0_86, %c0_87] : memref<128x128xbf16, #tpu.memory_space<vmem>>, vector<128x128xbf16>
    %598 = arith.truncf %596 : vector<16x128xf32> to vector<16x128xbf16>
    %cst_88 = arith.constant dense<0.000000e+00> : vector<16x128xf32>
    %599 = tpu.matmul %598, %597, %cst_88 {dimension_numbers = #tpu.dot_dimension_numbers<[1], [0], [0], [1], [0, 0, 1, 1], [], []>} : vector<16x128xbf16>, vector<128x128xbf16>, vector<16x128xf32> -> vector<16x128xf32>
    %600 = vector.broadcast %10 : vector<1x128xf32> to vector<16x128xf32>
    %601 = arith.addf %599, %600 : vector<16x128xf32>
    %cst_89 = arith.constant 0.000000e+00 : f32
    %602 = vector.broadcast %cst_89 : f32 to vector<16x128xf32>
    %603 = arith.cmpf oge, %601, %602 : vector<16x128xf32>
    %cst_90 = arith.constant 2.000000e-01 : f32
    %604 = vector.broadcast %cst_90 : f32 to vector<16x128xf32>
    %605 = arith.mulf %604, %601 : vector<16x128xf32>
    %606 = arith.select %603, %601, %605 : vector<16x128xi1>, vector<16x128xf32>
    %c0_91 = arith.constant 0 : index
    %c0_92 = arith.constant 0 : index
    %607 = vector.load %arg13[%c0_91, %c0_92] : memref<128x128xbf16, #tpu.memory_space<vmem>>, vector<128x128xbf16>
    %608 = arith.truncf %606 : vector<16x128xf32> to vector<16x128xbf16>
    %cst_93 = arith.constant dense<0.000000e+00> : vector<16x128xf32>
    %609 = tpu.matmul %608, %607, %cst_93 {dimension_numbers = #tpu.dot_dimension_numbers<[1], [0], [0], [1], [0, 0, 1, 1], [], []>} : vector<16x128xbf16>, vector<128x128xbf16>, vector<16x128xf32> -> vector<16x128xf32>
    %610 = vector.broadcast %11 : vector<1x128xf32> to vector<16x128xf32>
    %611 = arith.addf %609, %610 : vector<16x128xf32>
    %c0_94 = arith.constant 0 : index
    %c0_95 = arith.constant 0 : index
    %612 = vector.load %arg15[%c0_94, %c0_95] : memref<16x128xf32, #tpu.memory_space<vmem>>, vector<16x128xf32>
    tpu.vector_store %arg15[%c0_94, %c0_95], %611 {strides = array<i32>} : memref<16x128xf32, #tpu.memory_space<vmem>>, vector<16x128xf32>,
    return
  }
  func.func @transform_0(%arg0: i32) -> (i32, i32, i32) {
    %c0_i32 = arith.constant 0 : i32
    %c0_i32_0 = arith.constant 0 : i32
    %c0_i32_1 = arith.constant 0 : i32
    return %c0_i32, %arg0, %c0_i32_0 : i32, i32, i32
  }
  func.func @transform_1(%arg0: i32) -> (i32, i32) {
    %c0_i32 = arith.constant 0 : i32
    %c0_i32_0 = arith.constant 0 : i32
    return %arg0, %c0_i32 : i32, i32
  }
  func.func @transform_2(%arg0: i32) -> (i32, i32) {
    %c0_i32 = arith.constant 0 : i32
    %c0_i32_0 = arith.constant 0 : i32
    %c0_i32_1 = arith.constant 0 : i32
    return %c0_i32, %c0_i32_0 : i32, i32
  }
  func.func @transform_3(%arg0: i32) -> (i32, i32) {
    %c0_i32 = arith.constant 0 : i32
    %c0_i32_0 = arith.constant 0 : i32
    %c0_i32_1 = arith.constant 0 : i32
    return %c0_i32, %c0_i32_0 : i32, i32
  }
  func.func @transform_4(%arg0: i32) -> (i32, i32) {
    %c0_i32 = arith.constant 0 : i32
    %c0_i32_0 = arith.constant 0 : i32
    %c0_i32_1 = arith.constant 0 : i32
    return %c0_i32, %c0_i32_0 : i32, i32
  }
  func.func @transform_5(%arg0: i32) -> (i32, i32, i32) {
    %c0_i32 = arith.constant 0 : i32
    %c0_i32_0 = arith.constant 0 : i32
    %c0_i32_1 = arith.constant 0 : i32
    %c0_i32_2 = arith.constant 0 : i32
    return %c0_i32, %c0_i32_0, %c0_i32_1 : i32, i32, i32
  }
  func.func @transform_6(%arg0: i32) -> (i32, i32) {
    %c0_i32 = arith.constant 0 : i32
    %c0_i32_0 = arith.constant 0 : i32
    %c0_i32_1 = arith.constant 0 : i32
    return %c0_i32, %c0_i32_0 : i32, i32
  }
  func.func @transform_7(%arg0: i32) -> (i32, i32) {
    %c0_i32 = arith.constant 0 : i32
    %c0_i32_0 = arith.constant 0 : i32
    %c0_i32_1 = arith.constant 0 : i32
    return %c0_i32, %c0_i32_0 : i32, i32
  }
  func.func @transform_8(%arg0: i32) -> (i32, i32) {
    %c0_i32 = arith.constant 0 : i32
    %c0_i32_0 = arith.constant 0 : i32
    %c0_i32_1 = arith.constant 0 : i32
    return %c0_i32, %c0_i32_0 : i32, i32
  }
  func.func @transform_9(%arg0: i32) -> (i32, i32) {
    %c0_i32 = arith.constant 0 : i32
    %c0_i32_0 = arith.constant 0 : i32
    %c0_i32_1 = arith.constant 0 : i32
    return %c0_i32, %c0_i32_0 : i32, i32
  }
  func.func @transform_10(%arg0: i32) -> (i32, i32) {
    %c0_i32 = arith.constant 0 : i32
    %c0_i32_0 = arith.constant 0 : i32
    %c0_i32_1 = arith.constant 0 : i32
    return %c0_i32, %c0_i32_0 : i32, i32
  }
  func.func @transform_11(%arg0: i32) -> (i32, i32) {
    %c0_i32 = arith.constant 0 : i32
    %c0_i32_0 = arith.constant 0 : i32
    %c0_i32_1 = arith.constant 0 : i32
    return %c0_i32, %c0_i32_0 : i32, i32
  }
  func.func @transform_12(%arg0: i32) -> (i32, i32) {
    %c0_i32 = arith.constant 0 : i32
    %c0_i32_0 = arith.constant 0 : i32
    %c0_i32_1 = arith.constant 0 : i32
    return %c0_i32, %c0_i32_0 : i32, i32
  }
  func.func @transform_13(%arg0: i32) -> (i32, i32) {
    %c0_i32 = arith.constant 0 : i32
    %c0_i32_0 = arith.constant 0 : i32
    %c0_i32_1 = arith.constant 0 : i32
    return %c0_i32, %c0_i32_0 : i32, i32
  }
  func.func @transform_14(%arg0: i32) -> (i32, i32) {
    %c0_i32 = arith.constant 0 : i32
    %c0_i32_0 = arith.constant 0 : i32
    return %arg0, %c0_i32 : i32, i32
  }
}

</mosaic_0001>

<llo_original>
// kernel: tpu_custom_call.1
$region0: #{tpu_custom_call.1}
  #allocation0 [shape = 'u32[]', space=smem, size = 0x4, offset = 0x4, fixed_abs, tag = 'smem constant byte address 0x4 - core index']
  #allocation1 [shape = 'u32[144,128]{1,0:T(1,128)}', space=vmem, size = 0x12000, scoped, tag = 'internal scratch']
  %s0 = inlined_call_operand.hbm [shape: bf16[7,16,64], index: 0, kind: input, shape index: {}]
  %s1 = inlined_call_operand.hbm [shape: f32[16,128], index: 1, kind: input, shape index: {}]
  %s2 = inlined_call_operand.hbm [shape: bf16[64,192], index: 2, kind: input, shape index: {}]
  %s3 = inlined_call_operand.hbm [shape: bf16[64,64], index: 3, kind: input, shape index: {}]
  %s4 = inlined_call_operand.hbm [shape: bf16[64,64], index: 4, kind: input, shape index: {}]
  %s5 = inlined_call_operand.hbm [shape: bf16[7,64,384], index: 5, kind: input, shape index: {}]
  %s6 = inlined_call_operand.hbm [shape: bf16[128,384], index: 6, kind: input, shape index: {}]
  %s7 = inlined_call_operand.hbm [shape: bf16[384,384], index: 7, kind: input, shape index: {}]
  %s8 = inlined_call_operand.hbm [shape: bf16[384,256], index: 8, kind: input, shape index: {}]
  %s9 = inlined_call_operand.hbm [shape: bf16[256,128], index: 9, kind: input, shape index: {}]
  %s10 = inlined_call_operand.hbm [shape: bf16[128,128], index: 10, kind: input, shape index: {}]
  %s11 = inlined_call_operand.hbm [shape: bf16[128,128], index: 11, kind: input, shape index: {}]
  %s12 = inlined_call_operand.hbm [shape: bf16[128,128], index: 12, kind: input, shape index: {}]
  %s13 = inlined_call_operand.vmem [shape: f32[16,384], index: 13, kind: input, shape index: {}]
  %s14 = inlined_call_operand.hbm [shape: f32[16,128], index: 14, kind: output, shape index: {}]
  %s15 = sld [smem:[#allocation0]]
  $region118: #{tpu_custom_call.1} parent=0
    _
  %s17 = ssub.s32 1, %s15
  %s18 = scalar_select 0, %s17, %s15
  $region1: #{tpu_custom_call.1} parent=0
    #allocation2 [shape = 'u8[28672]{0}', space=vmem, size = 0x7000, scoped, tag = 'input window, operand 0, single buffered']
    #allocation3 [shape = 's32[1]{0}', space=sflag, size = 0x4, scoped, tag = 'scoped memory for tpu_custom_call.1']
    #allocation4 [shape = 's32[1]{0}', space=sflag, size = 0x4, scoped, tag = 'scoped memory for tpu_custom_call.1']
    #allocation5 [shape = 'u8[8192]{0}', space=vmem, size = 0x2000, scoped, tag = 'input window, operand 1, single buffered']
    #allocation6 [shape = 's32[1]{0}', space=sflag, size = 0x4, scoped, tag = 'scoped memory for tpu_custom_call.1']
    #allocation7 [shape = 'u8[32768]{0}', space=vmem, size = 0x8000, scoped, tag = 'input window, operand 2, single buffered']
    #allocation8 [shape = 'u8[16384]{0}', space=vmem, size = 0x4000, scoped, tag = 'input window, operand 3, single buffered']
    #allocation9 [shape = 's32[1]{0}', space=sflag, size = 0x4, scoped, tag = 'scoped memory for tpu_custom_call.1']
    #allocation10 [shape = 'u8[16384]{0}', space=vmem, size = 0x4000, scoped, tag = 'input window, operand 4, single buffered']
    #allocation11 [shape = 'u8[344064]{0}', space=vmem, size = 0x54000, scoped, tag = 'input window, operand 5, single buffered']
    #allocation12 [shape = 's32[1]{0}', space=sflag, size = 0x4, scoped, tag = 'scoped memory for tpu_custom_call.1']
    #allocation13 [shape = 'u8[98304]{0}', space=vmem, size = 0x18000, scoped, tag = 'input window, operand 6, single buffered']
    #allocation14 [shape = 'u8[294912]{0}', space=vmem, size = 0x48000, scoped, tag = 'input window, operand 7, single buffered']
    #allocation15 [shape = 's32[1]{0}', space=sflag, size = 0x4, scoped, tag = 'scoped memory for tpu_custom_call.1']
    #allocation16 [shape = 'u8[196608]{0}', space=vmem, size = 0x30000, scoped, tag = 'input window, operand 8, single buffered']
    #allocation17 [shape = 'u8[65536]{0}', space=vmem, size = 0x10000, scoped, tag = 'input window, operand 9, single buffered']
    #allocation18 [shape = 's32[1]{0}', space=sflag, size = 0x4, scoped, tag = 'scoped memory for tpu_custom_call.1']
    #allocation19 [shape = 'u8[32768]{0}', space=vmem, size = 0x8000, scoped, tag = 'input window, operand 10, single buffered']
    #allocation20 [shape = 'u8[32768]{0}', space=vmem, size = 0x8000, scoped, tag = 'input window, operand 11, single buffered']
    #allocation21 [shape = 's32[1]{0}', space=sflag, size = 0x4, scoped, tag = 'scoped memory for tpu_custom_call.1']
    #allocation22 [shape = 'u8[32768]{0}', space=vmem, size = 0x8000, scoped, tag = 'input window, operand 12, single buffered']
    #allocation23 [shape = 'u8[8192]{0}', space=vmem, size = 0x2000, scoped, tag = 'output window, operand 0, single buffered']
    %19 = vsyncpa [#allocation3], 0
    %20 = vsyncpa [#allocation6], 0
    %21 = vsyncpa [#allocation9], 0
    %22 = vsyncpa [#allocation12], 0
    %23 = vsyncpa [#allocation15], 0
    %24 = vsyncpa [#allocation18], 0
    %25 = vsyncpa [#allocation21], 0
    %26 = vsyncpa [#allocation4], 0
    // Predicated region
    $region2: #{tpu_custom_call.1} parent=1 // pred_check
      _
    $region3: #{tpu_custom_call.1} parent=1 // pred_check_branch
      %28 = sbr.rel (0) target = $region5
    $region4: #{tpu_custom_call.1} parent=1 // pred_region
      %s30 = ssub.s32 896, 896
      %31 = vsyncadd [#allocation3], %s30
      %s32 = sshll.u32 [#allocation2], 4
      %s33 = int_to_ptr.vmem [resolvable:$true] %s32
      %38 = dma.hbm_to_vmem [thread:$0]  %s0, 896, %s33, [#allocation3], 64, 64, 4
    $region5: #{tpu_custom_call.1} parent=1 // pred_fallthru
      _
    // Predicated region
    $region6: #{tpu_custom_call.1} parent=1 // pred_check
      _
    $region7: #{tpu_custom_call.1} parent=1 // pred_check_branch
      %40 = sbr.rel (0) target = $region9
    $region8: #{tpu_custom_call.1} parent=1 // pred_region
      %s42 = ssub.s32 256, 256
      %43 = vsyncadd [#allocation6], %s42
      %s44 = sshll.u32 [#allocation5], 4
      %s45 = int_to_ptr.vmem [resolvable:$true] %s44
      %50 = dma.hbm_to_vmem [thread:$0]  %s1, 256, %s45, [#allocation6], 128, 128, 8
    $region9: #{tpu_custom_call.1} parent=1 // pred_fallthru
      _
    // Predicated region
    $region10: #{tpu_custom_call.1} parent=1 // pred_check
      _
    $region11: #{tpu_custom_call.1} parent=1 // pred_check_branch
      %52 = sbr.rel (0) target = $region13
    $region12: #{tpu_custom_call.1} parent=1 // pred_region
      %s54 = ssub.s32 1024, 1024
      %55 = vsyncadd [#allocation6], %s54
      %s56 = sshll.u32 [#allocation7], 4
      %s57 = int_to_ptr.vmem [resolvable:$true] %s56
      %62 = dma.hbm_to_vmem [thread:$0]  %s2, 1024, %s57, [#allocation6], 128, 128, 8
    $region13: #{tpu_custom_call.1} parent=1 // pred_fallthru
      _
    // Predicated region
    $region14: #{tpu_custom_call.1} parent=1 // pred_check
      _
    $region15: #{tpu_custom_call.1} parent=1 // pred_check_branch
      %64 = sbr.rel (0) target = $region17
    $region16: #{tpu_custom_call.1} parent=1 // pred_region
      %s66 = ssub.s32 512, 512
      %67 = vsyncadd [#allocation9], %s66
      %s68 = sshll.u32 [#allocation8], 4
      %s69 = int_to_ptr.vmem [resolvable:$true] %s68
      %74 = dma.hbm_to_vmem [thread:$0]  %s3, 512, %s69, [#allocation9], 64, 64, 4
    $region17: #{tpu_custom_call.1} parent=1 // pred_fallthru
      _
    // Predicated region
    $region18: #{tpu_custom_call.1} parent=1 // pred_check
      _
    $region19: #{tpu_custom_call.1} parent=1 // pred_check_branch
      %76 = sbr.rel (0) target = $region21
    $region20: #{tpu_custom_call.1} parent=1 // pred_region
      %s78 = ssub.s32 512, 512
      %79 = vsyncadd [#allocation9], %s78
      %s80 = sshll.u32 [#allocation10], 4
      %s81 = int_to_ptr.vmem [resolvable:$true] %s80
      %86 = dma.hbm_to_vmem [thread:$0]  %s4, 512, %s81, [#allocation9], 64, 64, 4
    $region21: #{tpu_custom_call.1} parent=1 // pred_fallthru
      _
    // Predicated region
    $region22: #{tpu_custom_call.1} parent=1 // pred_check
      _
    $region23: #{tpu_custom_call.1} parent=1 // pred_check_branch
      %88 = sbr.rel (0) target = $region25
    $region24: #{tpu_custom_call.1} parent=1 // pred_region
      %s90 = ssub.s32 10752, 10752
      %91 = vsyncadd [#allocation12], %s90
      %s92 = sshll.u32 [#allocation11], 4
      %s93 = int_to_ptr.vmem [resolvable:$true] %s92
      %98 = dma.hbm_to_vmem [thread:$0]  %s5, 10752, %s93, [#allocation12], 192, 192, 12
    $region25: #{tpu_custom_call.1} parent=1 // pred_fallthru
      _
    // Predicated region
    $region26: #{tpu_custom_call.1} parent=1 // pred_check
      _
    $region27: #{tpu_custom_call.1} parent=1 // pred_check_branch
      %100 = sbr.rel (0) target = $region29
    $region28: #{tpu_custom_call.1} parent=1 // pred_region
      %s102 = ssub.s32 3072, 3072
      %103 = vsyncadd [#allocation12], %s102
      %s104 = sshll.u32 [#allocation13], 4
      %s105 = int_to_ptr.vmem [resolvable:$true] %s104
      %110 = dma.hbm_to_vmem [thread:$0]  %s6, 3072, %s105, [#allocation12], 192, 192, 12
    $region29: #{tpu_custom_call.1} parent=1 // pred_fallthru
      _
    // Predicated region
    $region30: #{tpu_custom_call.1} parent=1 // pred_check
      _
    $region31: #{tpu_custom_call.1} parent=1 // pred_check_branch
      %112 = sbr.rel (0) target = $region33
    $region32: #{tpu_custom_call.1} parent=1 // pred_region
      %s114 = ssub.s32 9216, 9216
      %115 = vsyncadd [#allocation15], %s114
      %s116 = sshll.u32 [#allocation14], 4
      %s117 = int_to_ptr.vmem [resolvable:$true] %s116
      %122 = dma.hbm_to_vmem [thread:$0]  %s7, 9216, %s117, [#allocation15], 192, 192, 12
    $region33: #{tpu_custom_call.1} parent=1 // pred_fallthru
      _
    // Predicated region
    $region34: #{tpu_custom_call.1} parent=1 // pred_check
      _
    $region35: #{tpu_custom_call.1} parent=1 // pred_check_branch
      %124 = sbr.rel (0) target = $region37
    $region36: #{tpu_custom_call.1} parent=1 // pred_region
      %s126 = ssub.s32 6144, 6144
      %127 = vsyncadd [#allocation15], %s126
      %s128 = sshll.u32 [#allocation16], 4
      %s129 = int_to_ptr.vmem [resolvable:$true] %s128
      %134 = dma.hbm_to_vmem [thread:$0]  %s8, 6144, %s129, [#allocation15], 128, 128, 8
    $region37: #{tpu_custom_call.1} parent=1 // pred_fallthru
      _
    // Predicated region
    $region38: #{tpu_custom_call.1} parent=1 // pred_check
      _
    $region39: #{tpu_custom_call.1} parent=1 // pred_check_branch
      %136 = sbr.rel (0) target = $region41
    $region40: #{tpu_custom_call.1} parent=1 // pred_region
      %s138 = ssub.s32 2048, 2048
      %139 = vsyncadd [#allocation18], %s138
      %s140 = sshll.u32 [#allocation17], 4
      %s141 = int_to_ptr.vmem [resolvable:$true] %s140
      %146 = dma.hbm_to_vmem [thread:$0]  %s9, 2048, %s141, [#allocation18], 64, 64, 4
    $region41: #{tpu_custom_call.1} parent=1 // pred_fallthru
      _
    // Predicated region
    $region42: #{tpu_custom_call.1} parent=1 // pred_check
      _
    $region43: #{tpu_custom_call.1} parent=1 // pred_check_branch
      %148 = sbr.rel (0) target = $region45
    $region44: #{tpu_custom_call.1} parent=1 // pred_region
      %s150 = ssub.s32 1024, 1024
      %151 = vsyncadd [#allocation18], %s150
      %s152 = sshll.u32 [#allocation19], 4
      %s153 = int_to_ptr.vmem [resolvable:$true] %s152
      %158 = dma.hbm_to_vmem [thread:$0]  %s10, 1024, %s153, [#allocation18], 64, 64, 4
    $region45: #{tpu_custom_call.1} parent=1 // pred_fallthru
      _
    // Predicated region
    $region46: #{tpu_custom_call.1} parent=1 // pred_check
      _
    $region47: #{tpu_custom_call.1} parent=1 // pred_check_branch
      %160 = sbr.rel (0) target = $region49
    $region48: #{tpu_custom_call.1} parent=1 // pred_region
      %s162 = ssub.s32 1024, 1024
      %163 = vsyncadd [#allocation21], %s162
      %s164 = sshll.u32 [#allocation20], 4
      %s165 = int_to_ptr.vmem [resolvable:$true] %s164
      %170 = dma.hbm_to_vmem [thread:$0]  %s11, 1024, %s165, [#allocation21], 64, 64, 4
    $region49: #{tpu_custom_call.1} parent=1 // pred_fallthru
      _
    // Predicated region
    $region50: #{tpu_custom_call.1} parent=1 // pred_check
      _
    $region51: #{tpu_custom_call.1} parent=1 // pred_check_branch
      %172 = sbr.rel (0) target = $region53
    $region52: #{tpu_custom_call.1} parent=1 // pred_region
      %s174 = ssub.s32 1024, 1024
      %175 = vsyncadd [#allocation21], %s174
      %s176 = sshll.u32 [#allocation22], 4
      %s177 = int_to_ptr.vmem [resolvable:$true] %s176
      %182 = dma.hbm_to_vmem [thread:$0]  %s12, 1024, %s177, [#allocation21], 64, 64, 4
    $region53: #{tpu_custom_call.1} parent=1 // pred_fallthru
      _
    // Predicated region
    $region54: #{tpu_custom_call.1} parent=1 // pred_check
      _
    $region55: #{tpu_custom_call.1} parent=1 // pred_check_branch
      %184 = sbr.rel (0) target = $region57
    $region56: #{tpu_custom_call.1} parent=1 // pred_region
      _
    $region57: #{tpu_custom_call.1} parent=1 // pred_fallthru
      _
    // Predicated region
    $region58: #{tpu_custom_call.1} parent=1 // pred_check
      _
    $region59: #{tpu_custom_call.1} parent=1 // pred_check_branch
      %186 = sbr.rel (0) target = $region61
    $region60: #{tpu_custom_call.1} parent=1 // pred_region
      %187 = dma.done [#allocation3], 896
    $region61: #{tpu_custom_call.1} parent=1 // pred_fallthru
      _
    // Predicated region
    $region62: #{tpu_custom_call.1} parent=1 // pred_check
      _
    $region63: #{tpu_custom_call.1} parent=1 // pred_check_branch
      %189 = sbr.rel (0) target = $region65
    $region64: #{tpu_custom_call.1} parent=1 // pred_region
      %190 = dma.done [#allocation6], 256
    $region65: #{tpu_custom_call.1} parent=1 // pred_fallthru
      _
    // Predicated region
    $region66: #{tpu_custom_call.1} parent=1 // pred_check
      _
    $region67: #{tpu_custom_call.1} parent=1 // pred_check_branch
      %192 = sbr.rel (0) target = $region69
    $region68: #{tpu_custom_call.1} parent=1 // pred_region
      %193 = dma.done [#allocation6], 1024
    $region69: #{tpu_custom_call.1} parent=1 // pred_fallthru
      _
    // Predicated region
    $region70: #{tpu_custom_call.1} parent=1 // pred_check
      _
    $region71: #{tpu_custom_call.1} parent=1 // pred_check_branch
      %195 = sbr.rel (0) target = $region73
    $region72: #{tpu_custom_call.1} parent=1 // pred_region
      %196 = dma.done [#allocation9], 512
    $region73: #{tpu_custom_call.1} parent=1 // pred_fallthru
      _
    // Predicated region
    $region74: #{tpu_custom_call.1} parent=1 // pred_check
      _
    $region75: #{tpu_custom_call.1} parent=1 // pred_check_branch
      %198 = sbr.rel (0) target = $region77
    $region76: #{tpu_custom_call.1} parent=1 // pred_region
      %199 = dma.done [#allocation9], 512
    $region77: #{tpu_custom_call.1} parent=1 // pred_fallthru
      _
    // Predicated region
    $region78: #{tpu_custom_call.1} parent=1 // pred_check
      _
    $region79: #{tpu_custom_call.1} parent=1 // pred_check_branch
      %201 = sbr.rel (0) target = $region81
    $region80: #{tpu_custom_call.1} parent=1 // pred_region
      %202 = dma.done [#allocation12], 10752
    $region81: #{tpu_custom_call.1} parent=1 // pred_fallthru
      _
    // Predicated region
    $region82: #{tpu_custom_call.1} parent=1 // pred_check
      _
    $region83: #{tpu_custom_call.1} parent=1 // pred_check_branch
      %204 = sbr.rel (0) target = $region85
    $region84: #{tpu_custom_call.1} parent=1 // pred_region
      %205 = dma.done [#allocation12], 3072
    $region85: #{tpu_custom_call.1} parent=1 // pred_fallthru
      _
    // Predicated region
    $region86: #{tpu_custom_call.1} parent=1 // pred_check
      _
    $region87: #{tpu_custom_call.1} parent=1 // pred_check_branch
      %207 = sbr.rel (0) target = $region89
    $region88: #{tpu_custom_call.1} parent=1 // pred_region
      %208 = dma.done [#allocation15], 9216
    $region89: #{tpu_custom_call.1} parent=1 // pred_fallthru
      _
    // Predicated region
    $region90: #{tpu_custom_call.1} parent=1 // pred_check
      _
    $region91: #{tpu_custom_call.1} parent=1 // pred_check_branch
      %210 = sbr.rel (0) target = $region93
    $region92: #{tpu_custom_call.1} parent=1 // pred_region
      %211 = dma.done [#allocation15], 6144
    $region93: #{tpu_custom_call.1} parent=1 // pred_fallthru
      _
    // Predicated region
    $region94: #{tpu_custom_call.1} parent=1 // pred_check
      _
    $region95: #{tpu_custom_call.1} parent=1 // pred_check_branch
      %213 = sbr.rel (0) target = $region97
    $region96: #{tpu_custom_call.1} parent=1 // pred_region
      %214 = dma.done [#allocation18], 2048
    $region97: #{tpu_custom_call.1} parent=1 // pred_fallthru
      _
    // Predicated region
    $region98: #{tpu_custom_call.1} parent=1 // pred_check
      _
    $region99: #{tpu_custom_call.1} parent=1 // pred_check_branch
      %216 = sbr.rel (0) target = $region101
    $region100: #{tpu_custom_call.1} parent=1 // pred_region
      %217 = dma.done [#allocation18], 1024
    $region101: #{tpu_custom_call.1} parent=1 // pred_fallthru
      _
    // Predicated region
    $region102: #{tpu_custom_call.1} parent=1 // pred_check
      _
    $region103: #{tpu_custom_call.1} parent=1 // pred_check_branch
      %219 = sbr.rel (0) target = $region105
    $region104: #{tpu_custom_call.1} parent=1 // pred_region
      %220 = dma.done [#allocation21], 1024
    $region105: #{tpu_custom_call.1} parent=1 // pred_fallthru
      _
    // Predicated region
    $region106: #{tpu_custom_call.1} parent=1 // pred_check
      _
    $region107: #{tpu_custom_call.1} parent=1 // pred_check_branch
      %222 = sbr.rel (0) target = $region109
    $region108: #{tpu_custom_call.1} parent=1 // pred_region
      %223 = dma.done [#allocation21], 1024
    $region109: #{tpu_custom_call.1} parent=1 // pred_fallthru
      _
    %v225 = vld [vmem:[%s13] sm:$0xff]
    %v226 = vld [vmem:[%s13 + $0x8] sm:$0xff]
    %v227 = vld [vmem:[%s13 + $0x10] sm:$0xff]
    %v228 = vld [vmem:[%s13 + $0x18] sm:$0xff]
    %v229 = vld [vmem:[#allocation2] sm:$0xf]
    %v230 = vld [vmem:[#allocation2 + $0x4] sm:$0xf]
    %v231 = vld [vmem:[#allocation2 + $0x8] sm:$0xf]
    %v232 = vld [vmem:[#allocation2 + $0xc] sm:$0xf]
    %v233 = vld [vmem:[#allocation2 + $0x10] sm:$0xf]
    %v234 = vld [vmem:[#allocation2 + $0x14] sm:$0xf]
    %v235 = vld [vmem:[#allocation2 + $0x18] sm:$0xf]
    %v236 = vld [vmem:[#allocation2 + $0x1c] sm:$0xf]
    %v237 = vld [vmem:[#allocation2 + $0x20] sm:$0xf]
    %v238 = vld [vmem:[#allocation2 + $0x24] sm:$0xf]
    %v239 = vld [vmem:[#allocation2 + $0x28] sm:$0xf]
    %v240 = vld [vmem:[#allocation2 + $0x2c] sm:$0xf]
    %v241 = vld [vmem:[#allocation2 + $0x30] sm:$0xf]
    %v242 = vld [vmem:[#allocation2 + $0x34] sm:$0xf]
    %v243 = vld [vmem:[#allocation7] sm:$0xff]
    %v244 = vld [vmem:[#allocation7 + $0x8] sm:$0xff]
    %v245 = vld [vmem:[#allocation7 + $0x10] sm:$0xff]
    %v246 = vld [vmem:[#allocation7 + $0x18] sm:$0xff]
    %v247 = vld [vmem:[#allocation7 + $0x20] sm:$0xff]
    %v248 = vld [vmem:[#allocation7 + $0x28] sm:$0xff]
    %v249 = vld [vmem:[#allocation7 + $0x30] sm:$0xff]
    %v250 = vld [vmem:[#allocation7 + $0x38] sm:$0xff]
    %v251 = vlaneseq
    %v252 = vshrl.u32 %v251, 7
    %v253 = vsub.s32 0, %v252
    %v254 = vrot.slane %v225, %v253
    %v255 = vlaneseq
    %v256 = vshrl.u32 %v255, 7
    %v257 = vsub.s32 0, %v256
    %v258 = vrot.slane %v226, %v257
    %v273 = vunpack.c.l.b16 %v229
    %v274 = vunpack.c.l.b16 %v230
    %v275 = vunpack.c.l.b16 %v231
    %v276 = vunpack.c.l.b16 %v232
    %v277 = vunpack.c.l.b16 %v233
    %v278 = vunpack.c.l.b16 %v234
    %v279 = vunpack.c.l.b16 %v235
    %v280 = vunpack.c.l.b16 %v236
    %v281 = vunpack.c.l.b16 %v237
    %v282 = vunpack.c.l.b16 %v238
    %v283 = vunpack.c.l.b16 %v239
    %v284 = vunpack.c.l.b16 %v240
    %v285 = vunpack.c.l.b16 %v241
    %v286 = vunpack.c.l.b16 %v242
    %v287 = vpack.c.b16 %v274, %v273
    %v288 = vpack.c.b16 %v276, %v275
    %v289 = vpack.c.b16 %v278, %v277
    %v290 = vpack.c.b16 %v280, %v279
    %v291 = vpack.c.b16 %v282, %v281
    %v292 = vpack.c.b16 %v284, %v283
    %v293 = vpack.c.b16 %v286, %v285
    %v302 = vunpack.c.l.b16 %v243
    %v303 = vunpack.c.h.b16 %v243
    %v304 = vunpack.c.l.b16 %v244
    %v305 = vunpack.c.h.b16 %v244
    %v306 = vunpack.c.l.b16 %v245
    %v307 = vunpack.c.h.b16 %v245
    %v308 = vunpack.c.l.b16 %v246
    %v309 = vunpack.c.h.b16 %v246
    %v310 = vunpack.c.l.b16 %v247
    %v311 = vunpack.c.h.b16 %v247
    %v312 = vunpack.c.l.b16 %v248
    %v313 = vunpack.c.h.b16 %v248
    %v314 = vunpack.c.l.b16 %v249
    %v315 = vunpack.c.h.b16 %v249
    %v316 = vunpack.c.l.b16 %v250
    %v317 = vunpack.c.h.b16 %v250
    %v318 = vpack.c.b16 %v304, %v302
    %v319 = vpack.c.b16 %v305, %v303
    %v320 = vpack.c.b16 %v308, %v306
    %v321 = vpack.c.b16 %v309, %v307
    %v322 = vpack.c.b16 %v312, %v310
    %v323 = vpack.c.b16 %v313, %v311
    %v324 = vpack.c.b16 %v316, %v314
    %v325 = vpack.c.b16 %v317, %v315
    %vm334 = vcmask 523264
    %v336 = vsel %vm334, %v287, 0
    %v339 = vsel %vm334, %v288, 0
    %v342 = vsel %vm334, %v289, 0
    %v345 = vsel %vm334, %v290, 0
    %v348 = vsel %vm334, %v291, 0
    %v351 = vsel %vm334, %v292, 0
    %v354 = vsel %vm334, %v293, 0
    %356 = vmatprep.subr.bf16.mxu0 %v319
    %357 = vmatpush1.bf16.msra.mxu0 %v318
    %358 = vmatprep.subr.bf16.mxu0 %v321
    %359 = vmatpush1.bf16.msra.mxu0 %v320
    %360 = vmatprep.subr.bf16.mxu0 %v323
    %361 = vmatpush1.bf16.msra.mxu0 %v322
    %362 = vmatprep.subr.bf16.mxu0 %v325
    %363 = vmatpush1.bf16.msra.mxu0 %v324
    %364 = vmatprep.subr.bf16.mxu0 0
    %365 = vmatpush1.bf16.msra.mxu0 0
    %366 = vmatprep.subr.bf16.mxu0 0
    %367 = vmatpush1.bf16.msra.mxu0 0
    %368 = vmatprep.subr.bf16.mxu0 0
    %369 = vmatpush1.bf16.msra.mxu0 0
    %370 = vmatprep.subr.bf16.mxu0 0
    %371 = vmatpush1.bf16.msra.mxu0 0
    %372 = vmatprep.subr.bf16.mxu0 0
    %373 = vmatpush1.bf16.msra.mxu0 0
    %374 = vmatprep.subr.bf16.mxu0 0
    %375 = vmatpush1.bf16.msra.mxu0 0
    %376 = vmatprep.subr.bf16.mxu0 0
    %377 = vmatpush1.bf16.msra.mxu0 0
    %378 = vmatprep.subr.bf16.mxu0 0
    %379 = vmatpush1.bf16.msra.mxu0 0
    %380 = vmatprep.subr.bf16.mxu0 0
    %381 = vmatpush1.bf16.msra.mxu0 0
    %382 = vmatprep.subr.bf16.mxu0 0
    %383 = vmatpush1.bf16.msra.mxu0 0
    %384 = vmatprep.subr.bf16.mxu0 0
    %385 = vmatpush1.bf16.msra.mxu0 0
    %386 = vmatprep.subr.bf16.mxu0 0
    %387 = vmatpush1.bf16.msra.mxu0 0
    %388 = vmatprep.mubr.bf16.mxu0 0
    %389 = vmatmul.mubr.bf16.gmra.mrb[0].mxu0 %v336
    %v390 = vpop.f32.mrb[0].mxu0
    %v391 = vadd.f32 %v254, %v390
    %v392 = vpop.f32.mrb[0].mxu0
    %v393 = vadd.f32 %v258, %v392
    %v394 = vpop.f32.mrb[0].mxu0
    %v395 = vadd.f32 %v254, %v394
    %v396 = vpop.f32.mrb[0].mxu0
    %v397 = vadd.f32 %v258, %v396
    %398 = vmatprep.mubr.bf16.mxu0 0
    %399 = vmatmul.mubr.bf16.gmra.mrb[0].mxu0 %v339
    %v400 = vpop.f32.mrb[0].mxu0
    %v401 = vadd.f32 %v254, %v400
    %v402 = vpop.f32.mrb[0].mxu0
    %v403 = vadd.f32 %v258, %v402
    %v404 = vpop.f32.mrb[0].mxu0
    %v405 = vadd.f32 %v254, %v404
    %v406 = vpop.f32.mrb[0].mxu0
    %v407 = vadd.f32 %v258, %v406
    %408 = vmatprep.mubr.bf16.mxu0 0
    %409 = vmatmul.mubr.bf16.gmra.mrb[0].mxu0 %v342
    %v410 = vpop.f32.mrb[0].mxu0
    %v411 = vadd.f32 %v254, %v410
    %v412 = vpop.f32.mrb[0].mxu0
    %v413 = vadd.f32 %v258, %v412
    %v414 = vpop.f32.mrb[0].mxu0
    %v415 = vadd.f32 %v254, %v414
    %v416 = vpop.f32.mrb[0].mxu0
    %v417 = vadd.f32 %v258, %v416
    %418 = vmatprep.mubr.bf16.mxu0 0
    %419 = vmatmul.mubr.bf16.gmra.mrb[0].mxu0 %v345
    %v420 = vpop.f32.mrb[0].mxu0
    %v421 = vadd.f32 %v254, %v420
    %v422 = vpop.f32.mrb[0].mxu0
    %v423 = vadd.f32 %v258, %v422
    %v424 = vpop.f32.mrb[0].mxu0
    %v425 = vadd.f32 %v254, %v424
    %v426 = vpop.f32.mrb[0].mxu0
    %v427 = vadd.f32 %v258, %v426
    %428 = vmatprep.mubr.bf16.mxu0 0
    %429 = vmatmul.mubr.bf16.gmra.mrb[0].mxu0 %v348
    %v430 = vpop.f32.mrb[0].mxu0
    %v431 = vadd.f32 %v254, %v430
    %v432 = vpop.f32.mrb[0].mxu0
    %v433 = vadd.f32 %v258, %v432
    %v434 = vpop.f32.mrb[0].mxu0
    %v435 = vadd.f32 %v254, %v434
    %v436 = vpop.f32.mrb[0].mxu0
    %v437 = vadd.f32 %v258, %v436
    %438 = vmatprep.mubr.bf16.mxu0 0
    %439 = vmatmul.mubr.bf16.gmra.mrb[0].mxu0 %v351
    %v440 = vpop.f32.mrb[0].mxu0
    %v441 = vadd.f32 %v254, %v440
    %v442 = vpop.f32.mrb[0].mxu0
    %v443 = vadd.f32 %v258, %v442
    %v444 = vpop.f32.mrb[0].mxu0
    %v445 = vadd.f32 %v254, %v444
    %v446 = vpop.f32.mrb[0].mxu0
    %v447 = vadd.f32 %v258, %v446
    %448 = vmatprep.mubr.bf16.mxu0 0
    %449 = vmatmul.mubr.bf16.gmra.mrb[0].mxu0 %v354
    %v450 = vpop.f32.mrb[0].mxu0
    %v451 = vadd.f32 %v254, %v450
    %v452 = vpop.f32.mrb[0].mxu0
    %v453 = vadd.f32 %v258, %v452
    %v454 = vpop.f32.mrb[0].mxu0
    %v455 = vadd.f32 %v254, %v454
    %v456 = vpop.f32.mrb[0].mxu0
    %v457 = vadd.f32 %v258, %v456
    %458 = vdwg.mxu0
    %v459 = vld [vmem:[#allocation8] sm:$0xf]
    %v460 = vld [vmem:[#allocation8 + $0x4] sm:$0xf]
    %v461 = vld [vmem:[#allocation8 + $0x8] sm:$0xf]
    %v462 = vld [vmem:[#allocation8 + $0xc] sm:$0xf]
    %v463 = vld [vmem:[#allocation8 + $0x10] sm:$0xf]
    %v464 = vld [vmem:[#allocation8 + $0x14] sm:$0xf]
    %v465 = vld [vmem:[#allocation8 + $0x18] sm:$0xf]
    %v466 = vld [vmem:[#allocation8 + $0x1c] sm:$0xf]
    %v467 = vld [vmem:[#allocation10] sm:$0xf]
    %v468 = vld [vmem:[#allocation10 + $0x4] sm:$0xf]
    %v469 = vld [vmem:[#allocation10 + $0x8] sm:$0xf]
    %v470 = vld [vmem:[#allocation10 + $0xc] sm:$0xf]
    %v471 = vld [vmem:[#allocation10 + $0x10] sm:$0xf]
    %v472 = vld [vmem:[#allocation10 + $0x14] sm:$0xf]
    %v473 = vld [vmem:[#allocation10 + $0x18] sm:$0xf]
    %v474 = vld [vmem:[#allocation10 + $0x1c] sm:$0xf]
    %477 = vrot.lane.b32.xlu0 %v391, 64
    %v478 = vpop.permute.xlu0 %477
    %479 = vrot.lane.b32.xlu0 %v395, 64
    %v480 = vpop.permute.xlu0 %479
    %v483 = vmul.f32 %v391, %v478
    %v484 = vmul.f32 %v395, %v480
    %487 = vrot.lane.b32.xlu0 %v401, 64
    %v488 = vpop.permute.xlu0 %487
    %489 = vrot.lane.b32.xlu0 %v405, 64
    %v490 = vpop.permute.xlu0 %489
    %v493 = vmul.f32 %v391, %v488
    %v494 = vmul.f32 %v395, %v490
    %497 = vrot.lane.b32.xlu0 %v411, 64
    %v498 = vpop.permute.xlu0 %497
    %499 = vrot.lane.b32.xlu0 %v415, 64
    %v500 = vpop.permute.xlu0 %499
    %v503 = vmul.f32 %v391, %v498
    %v504 = vmul.f32 %v395, %v500
    %507 = vrot.lane.b32.xlu0 %v421, 64
    %v508 = vpop.permute.xlu0 %507
    %509 = vrot.lane.b32.xlu0 %v425, 64
    %v510 = vpop.permute.xlu0 %509
    %v513 = vmul.f32 %v391, %v508
    %v514 = vmul.f32 %v395, %v510
    %517 = vrot.lane.b32.xlu0 %v431, 64
    %v518 = vpop.permute.xlu0 %517
    %519 = vrot.lane.b32.xlu0 %v435, 64
    %v520 = vpop.permute.xlu0 %519
    %v523 = vmul.f32 %v391, %v518
    %v524 = vmul.f32 %v395, %v520
    %527 = vrot.lane.b32.xlu0 %v441, 64
    %v528 = vpop.permute.xlu0 %527
    %529 = vrot.lane.b32.xlu0 %v445, 64
    %v530 = vpop.permute.xlu0 %529
    %v533 = vmul.f32 %v391, %v528
    %v534 = vmul.f32 %v395, %v530
    %537 = vrot.lane.b32.xlu0 %v451, 64
    %v538 = vpop.permute.xlu0 %537
    %539 = vrot.lane.b32.xlu0 %v455, 64
    %v540 = vpop.permute.xlu0 %539
    %v543 = vmul.f32 %v391, %v538
    %v544 = vmul.f32 %v395, %v540
    %v545 = vpack.c.bf16 %v484, %v483
    %v546 = vpack.c.bf16 %v494, %v493
    %v547 = vpack.c.bf16 %v504, %v503
    %v548 = vpack.c.bf16 %v514, %v513
    %v549 = vpack.c.bf16 %v524, %v523
    %v550 = vpack.c.bf16 %v534, %v533
    %v551 = vpack.c.bf16 %v544, %v543
    %v560 = vunpack.c.l.b16 %v459
    %v561 = vunpack.c.l.b16 %v460
    %v562 = vunpack.c.l.b16 %v461
    %v563 = vunpack.c.l.b16 %v462
    %v564 = vunpack.c.l.b16 %v463
    %v565 = vunpack.c.l.b16 %v464
    %v566 = vunpack.c.l.b16 %v465
    %v567 = vunpack.c.l.b16 %v466
    %v568 = vpack.c.b16 %v561, %v560
    %v569 = vpack.c.b16 %v563, %v562
    %v570 = vpack.c.b16 %v565, %v564
    %v571 = vpack.c.b16 %v567, %v566
    %v577 = vsel %vm334, %v545, 0
    %v580 = vsel %vm334, %v546, 0
    %v583 = vsel %vm334, %v547, 0
    %v586 = vsel %vm334, %v548, 0
    %v589 = vsel %vm334, %v549, 0
    %v592 = vsel %vm334, %v550, 0
    %v595 = vsel %vm334, %v551, 0
    %597 = vmatprep.subr.bf16.mxu0 0
    %598 = vmatpush1.bf16.msra.mxu0 %v568
    %599 = vmatprep.subr.bf16.mxu0 0
    %600 = vmatpush1.bf16.msra.mxu0 %v569
    %601 = vmatprep.subr.bf16.mxu0 0
    %602 = vmatpush1.bf16.msra.mxu0 %v570
    %603 = vmatprep.subr.bf16.mxu0 0
    %604 = vmatpush1.bf16.msra.mxu0 %v571
    %605 = vmatprep.subr.bf16.mxu0 0
    %606 = vmatpush1.bf16.msra.mxu0 0
    %607 = vmatprep.subr.bf16.mxu0 0
    %608 = vmatpush1.bf16.msra.mxu0 0
    %609 = vmatprep.subr.bf16.mxu0 0
    %610 = vmatpush1.bf16.msra.mxu0 0
    %611 = vmatprep.subr.bf16.mxu0 0
    %612 = vmatpush1.bf16.msra.mxu0 0
    %613 = vmatprep.subr.bf16.mxu0 0
    %614 = vmatpush1.bf16.msra.mxu0 0
    %615 = vmatprep.subr.bf16.mxu0 0
    %616 = vmatpush1.bf16.msra.mxu0 0
    %617 = vmatprep.subr.bf16.mxu0 0
    %618 = vmatpush1.bf16.msra.mxu0 0
    %619 = vmatprep.subr.bf16.mxu0 0
    %620 = vmatpush1.bf16.msra.mxu0 0
    %621 = vmatprep.subr.bf16.mxu0 0
    %622 = vmatpush1.bf16.msra.mxu0 0
    %623 = vmatprep.subr.bf16.mxu0 0
    %624 = vmatpush1.bf16.msra.mxu0 0
    %625 = vmatprep.subr.bf16.mxu0 0
    %626 = vmatpush1.bf16.msra.mxu0 0
    %627 = vmatprep.subr.bf16.mxu0 0
    %628 = vmatpush1.bf16.msra.mxu0 0
    %629 = vmatprep.mubr.bf16.mxu0 0
    %630 = vmatmul.mubr.bf16.gmra.mrb[0].mxu0 %v577
    %v631 = vpop.f32.mrb[0].mxu0
    %v632 = vadd.f32 0.0, %v631
    %v633 = vpop.f32.mrb[0].mxu0
    %v634 = vpop.f32.mrb[0].mxu0
    %v635 = vadd.f32 0.0, %v634
    %v636 = vpop.f32.mrb[0].mxu0
    %637 = vmatprep.mubr.bf16.mxu0 0
    %638 = vmatmul.mubr.bf16.gmra.mrb[0].mxu0 %v580
    %v639 = vpop.f32.mrb[0].mxu0
    %v640 = vadd.f32 0.0, %v639
    %v641 = vpop.f32.mrb[0].mxu0
    %v642 = vpop.f32.mrb[0].mxu0
    %v643 = vadd.f32 0.0, %v642
    %v644 = vpop.f32.mrb[0].mxu0
    %645 = vmatprep.mubr.bf16.mxu0 0
    %646 = vmatmul.mubr.bf16.gmra.mrb[0].mxu0 %v583
    %v647 = vpop.f32.mrb[0].mxu0
    %v648 = vadd.f32 0.0, %v647
    %v649 = vpop.f32.mrb[0].mxu0
    %v650 = vpop.f32.mrb[0].mxu0
    %v651 = vadd.f32 0.0, %v650
    %v652 = vpop.f32.mrb[0].mxu0
    %653 = vmatprep.mubr.bf16.mxu0 0
    %654 = vmatmul.mubr.bf16.gmra.mrb[0].mxu0 %v586
    %v655 = vpop.f32.mrb[0].mxu0
    %v656 = vadd.f32 0.0, %v655
    %v657 = vpop.f32.mrb[0].mxu0
    %v658 = vpop.f32.mrb[0].mxu0
    %v659 = vadd.f32 0.0, %v658
    %v660 = vpop.f32.mrb[0].mxu0
    %661 = vmatprep.mubr.bf16.mxu0 0
    %662 = vmatmul.mubr.bf16.gmra.mrb[0].mxu0 %v589
    %v663 = vpop.f32.mrb[0].mxu0
    %v664 = vadd.f32 0.0, %v663
    %v665 = vpop.f32.mrb[0].mxu0
    %v666 = vpop.f32.mrb[0].mxu0
    %v667 = vadd.f32 0.0, %v666
    %v668 = vpop.f32.mrb[0].mxu0
    %669 = vmatprep.mubr.bf16.mxu0 0
    %670 = vmatmul.mubr.bf16.gmra.mrb[0].mxu0 %v592
    %v671 = vpop.f32.mrb[0].mxu0
    %v672 = vadd.f32 0.0, %v671
    %v673 = vpop.f32.mrb[0].mxu0
    %v674 = vpop.f32.mrb[0].mxu0
    %v675 = vadd.f32 0.0, %v674
    %v676 = vpop.f32.mrb[0].mxu0
    %677 = vmatprep.mubr.bf16.mxu0 0
    %678 = vmatmul.mubr.bf16.gmra.mrb[0].mxu0 %v595
    %v679 = vpop.f32.mrb[0].mxu0
    %v680 = vadd.f32 0.0, %v679
    %v681 = vpop.f32.mrb[0].mxu0
    %v682 = vpop.f32.mrb[0].mxu0
    %v683 = vadd.f32 0.0, %v682
    %v684 = vpop.f32.mrb[0].mxu0
    %685 = vdwg.mxu0
    %v686 = vmax.f32 %v632, %v640
    %v687 = vmax.f32 %v635, %v643
    %v688 = vmax.f32 %v686, %v648
    %v689 = vmax.f32 %v687, %v651
    %v690 = vmax.f32 %v688, %v656
    %v691 = vmax.f32 %v689, %v659
    %v692 = vmax.f32 %v690, %v664
    %v693 = vmax.f32 %v691, %v667
    %v694 = vmax.f32 %v692, %v672
    %v695 = vmax.f32 %v693, %v675
    %v696 = vmax.f32 %v694, %v680
    %v697 = vmax.f32 %v695, %v683
    %v698 = vsub.f32 %v632, %v696
    %v699 = vsub.f32 %v635, %v697
    %v700 = vmul.f32 %v698, 1.442695
    %v701 = vpow.pop %v700
    %v702 = vmul.f32 %v699, 1.442695
    %v703 = vpow.pop %v702
    %v704 = vadd.f32 %v701, 0.0
    %v705 = vadd.f32 %v703, 0.0
    %v706 = vmul.f32 %v701, %v393
    %v707 = vmul.f32 %v703, %v397
    %v708 = vadd.f32 %v706, 0.0
    %v709 = vadd.f32 %v707, 0.0
    %v710 = vsub.f32 %v640, %v696
    %v711 = vsub.f32 %v643, %v697
    %v712 = vmul.f32 %v710, 1.442695
    %v713 = vpow.pop %v712
    %v714 = vmul.f32 %v711, 1.442695
    %v715 = vpow.pop %v714
    %v716 = vadd.f32 %v704, %v713
    %v717 = vadd.f32 %v705, %v715
    %v718 = vmul.f32 %v713, %v403
    %v719 = vmul.f32 %v715, %v407
    %v720 = vadd.f32 %v708, %v718
    %v721 = vadd.f32 %v709, %v719
    %v722 = vsub.f32 %v648, %v696
    %v723 = vsub.f32 %v651, %v697
    %v724 = vmul.f32 %v722, 1.442695
    %v725 = vpow.pop %v724
    %v726 = vmul.f32 %v723, 1.442695
    %v727 = vpow.pop %v726
    %v728 = vadd.f32 %v716, %v725
    %v729 = vadd.f32 %v717, %v727
    %v730 = vmul.f32 %v725, %v413
    %v731 = vmul.f32 %v727, %v417
    %v732 = vadd.f32 %v720, %v730
    %v733 = vadd.f32 %v721, %v731
    %v734 = vsub.f32 %v656, %v696
    %v735 = vsub.f32 %v659, %v697
    %v736 = vmul.f32 %v734, 1.442695
    %v737 = vpow.pop %v736
    %v738 = vmul.f32 %v735, 1.442695
    %v739 = vpow.pop %v738
    %v740 = vadd.f32 %v728, %v737
    %v741 = vadd.f32 %v729, %v739
    %v742 = vmul.f32 %v737, %v423
    %v743 = vmul.f32 %v739, %v427
    %v744 = vadd.f32 %v732, %v742
    %v745 = vadd.f32 %v733, %v743
    %v746 = vsub.f32 %v664, %v696
    %v747 = vsub.f32 %v667, %v697
    %v748 = vmul.f32 %v746, 1.442695
    %v749 = vpow.pop %v748
    %v750 = vmul.f32 %v747, 1.442695
    %v751 = vpow.pop %v750
    %v752 = vadd.f32 %v740, %v749
    %v753 = vadd.f32 %v741, %v751
    %v754 = vmul.f32 %v749, %v433
    %v755 = vmul.f32 %v751, %v437
    %v756 = vadd.f32 %v744, %v754
    %v757 = vadd.f32 %v745, %v755
    %v758 = vsub.f32 %v672, %v696
    %v759 = vsub.f32 %v675, %v697
    %v760 = vmul.f32 %v758, 1.442695
    %v761 = vpow.pop %v760
    %v762 = vmul.f32 %v759, 1.442695
    %v763 = vpow.pop %v762
    %v764 = vadd.f32 %v752, %v761
    %v765 = vadd.f32 %v753, %v763
    %v766 = vmul.f32 %v761, %v443
    %v767 = vmul.f32 %v763, %v447
    %v768 = vadd.f32 %v756, %v766
    %v769 = vadd.f32 %v757, %v767
    %v770 = vsub.f32 %v680, %v696
    %v771 = vsub.f32 %v683, %v697
    %v772 = vmul.f32 %v770, 1.442695
    %v773 = vpow.pop %v772
    %v774 = vmul.f32 %v771, 1.442695
    %v775 = vpow.pop %v774
    %v776 = vadd.f32 %v764, %v773
    %v777 = vadd.f32 %v765, %v775
    %v778 = vmul.f32 %v773, %v453
    %v779 = vmul.f32 %v775, %v457
    %v780 = vadd.f32 %v768, %v778
    %v781 = vadd.f32 %v769, %v779
    %v782 = vrcp.pop %v776
    %v783 = vrcp.pop %v777
    %v784 = vmul.f32 %v780, %v782
    %v785 = vmul.f32 %v781, %v783
    %v786 = vmul.f32 %v401, %v478
    %v787 = vmul.f32 %v405, %v480
    %v788 = vmul.f32 %v401, %v488
    %v789 = vmul.f32 %v405, %v490
    %v790 = vmul.f32 %v401, %v498
    %v791 = vmul.f32 %v405, %v500
    %v792 = vmul.f32 %v401, %v508
    %v793 = vmul.f32 %v405, %v510
    %v794 = vmul.f32 %v401, %v518
    %v795 = vmul.f32 %v405, %v520
    %v796 = vmul.f32 %v401, %v528
    %v797 = vmul.f32 %v405, %v530
    %v798 = vmul.f32 %v401, %v538
    %v799 = vmul.f32 %v405, %v540
    %v800 = vpack.c.bf16 %v787, %v786
    %v801 = vpack.c.bf16 %v789, %v788
    %v802 = vpack.c.bf16 %v791, %v790
    %v803 = vpack.c.bf16 %v793, %v792
    %v804 = vpack.c.bf16 %v795, %v794
    %v805 = vpack.c.bf16 %v797, %v796
    %v806 = vpack.c.bf16 %v799, %v798
    %v808 = vsel %vm334, %v800, 0
    %v811 = vsel %vm334, %v801, 0
    %v814 = vsel %vm334, %v802, 0
    %v817 = vsel %vm334, %v803, 0
    %v820 = vsel %vm334, %v804, 0
    %v823 = vsel %vm334, %v805, 0
    %v826 = vsel %vm334, %v806, 0
    %828 = vmatprep.subr.bf16.mxu0 0
    %829 = vmatpush1.bf16.msra.mxu0 %v568
    %830 = vmatprep.subr.bf16.mxu0 0
    %831 = vmatpush1.bf16.msra.mxu0 %v569
    %832 = vmatprep.subr.bf16.mxu0 0
    %833 = vmatpush1.bf16.msra.mxu0 %v570
    %834 = vmatprep.subr.bf16.mxu0 0
    %835 = vmatpush1.bf16.msra.mxu0 %v571
    %836 = vmatprep.subr.bf16.mxu0 0
    %837 = vmatpush1.bf16.msra.mxu0 0
    %838 = vmatprep.subr.bf16.mxu0 0
    %839 = vmatpush1.bf16.msra.mxu0 0
    %840 = vmatprep.subr.bf16.mxu0 0
    %841 = vmatpush1.bf16.msra.mxu0 0
    %842 = vmatprep.subr.bf16.mxu0 0
    %843 = vmatpush1.bf16.msra.mxu0 0
    %844 = vmatprep.subr.bf16.mxu0 0
    %845 = vmatpush1.bf16.msra.mxu0 0
    %846 = vmatprep.subr.bf16.mxu0 0
    %847 = vmatpush1.bf16.msra.mxu0 0
    %848 = vmatprep.subr.bf16.mxu0 0
    %849 = vmatpush1.bf16.msra.mxu0 0
    %850 = vmatprep.subr.bf16.mxu0 0
    %851 = vmatpush1.bf16.msra.mxu0 0
    %852 = vmatprep.subr.bf16.mxu0 0
    %853 = vmatpush1.bf16.msra.mxu0 0
    %854 = vmatprep.subr.bf16.mxu0 0
    %855 = vmatpush1.bf16.msra.mxu0 0
    %856 = vmatprep.subr.bf16.mxu0 0
    %857 = vmatpush1.bf16.msra.mxu0 0
    %858 = vmatprep.subr.bf16.mxu0 0
    %859 = vmatpush1.bf16.msra.mxu0 0
    %860 = vmatprep.mubr.bf16.mxu0 0
    %861 = vmatmul.mubr.bf16.gmra.mrb[0].mxu0 %v808
    %v862 = vpop.f32.mrb[0].mxu0
    %v863 = vadd.f32 0.0, %v862
    %v864 = vpop.f32.mrb[0].mxu0
    %v865 = vpop.f32.mrb[0].mxu0
    %v866 = vadd.f32 0.0, %v865
    %v867 = vpop.f32.mrb[0].mxu0
    %868 = vmatprep.mubr.bf16.mxu0 0
    %869 = vmatmul.mubr.bf16.gmra.mrb[0].mxu0 %v811
    %v870 = vpop.f32.mrb[0].mxu0
    %v871 = vadd.f32 0.0, %v870
    %v872 = vpop.f32.mrb[0].mxu0
    %v873 = vpop.f32.mrb[0].mxu0
    %v874 = vadd.f32 0.0, %v873
    %v875 = vpop.f32.mrb[0].mxu0
    %876 = vmatprep.mubr.bf16.mxu0 0
    %877 = vmatmul.mubr.bf16.gmra.mrb[0].mxu0 %v814
    %v878 = vpop.f32.mrb[0].mxu0
    %v879 = vadd.f32 0.0, %v878
    %v880 = vpop.f32.mrb[0].mxu0
    %v881 = vpop.f32.mrb[0].mxu0
    %v882 = vadd.f32 0.0, %v881
    %v883 = vpop.f32.mrb[0].mxu0
    %884 = vmatprep.mubr.bf16.mxu0 0
    %885 = vmatmul.mubr.bf16.gmra.mrb[0].mxu0 %v817
    %v886 = vpop.f32.mrb[0].mxu0
    %v887 = vadd.f32 0.0, %v886
    %v888 = vpop.f32.mrb[0].mxu0
    %v889 = vpop.f32.mrb[0].mxu0
    %v890 = vadd.f32 0.0, %v889
    %v891 = vpop.f32.mrb[0].mxu0
    %892 = vmatprep.mubr.bf16.mxu0 0
    %893 = vmatmul.mubr.bf16.gmra.mrb[0].mxu0 %v820
    %v894 = vpop.f32.mrb[0].mxu0
    %v895 = vadd.f32 0.0, %v894
    %v896 = vpop.f32.mrb[0].mxu0
    %v897 = vpop.f32.mrb[0].mxu0
    %v898 = vadd.f32 0.0, %v897
    %v899 = vpop.f32.mrb[0].mxu0
    %900 = vmatprep.mubr.bf16.mxu0 0
    %901 = vmatmul.mubr.bf16.gmra.mrb[0].mxu0 %v823
    %v902 = vpop.f32.mrb[0].mxu0
    %v903 = vadd.f32 0.0, %v902
    %v904 = vpop.f32.mrb[0].mxu0
    %v905 = vpop.f32.mrb[0].mxu0
    %v906 = vadd.f32 0.0, %v905
    %v907 = vpop.f32.mrb[0].mxu0
    %908 = vmatprep.mubr.bf16.mxu0 0
    %909 = vmatmul.mubr.bf16.gmra.mrb[0].mxu0 %v826
    %v910 = vpop.f32.mrb[0].mxu0
    %v911 = vadd.f32 0.0, %v910
    %v912 = vpop.f32.mrb[0].mxu0
    %v913 = vpop.f32.mrb[0].mxu0
    %v914 = vadd.f32 0.0, %v913
    %v915 = vpop.f32.mrb[0].mxu0
    %916 = vdwg.mxu0
    %v917 = vmax.f32 %v863, %v871
    %v918 = vmax.f32 %v866, %v874
    %v919 = vmax.f32 %v917, %v879
    %v920 = vmax.f32 %v918, %v882
    %v921 = vmax.f32 %v919, %v887
    %v922 = vmax.f32 %v920, %v890
    %v923 = vmax.f32 %v921, %v895
    %v924 = vmax.f32 %v922, %v898
    %v925 = vmax.f32 %v923, %v903
    %v926 = vmax.f32 %v924, %v906
    %v927 = vmax.f32 %v925, %v911
    %v928 = vmax.f32 %v926, %v914
    %v929 = vsub.f32 %v863, %v927
    %v930 = vsub.f32 %v866, %v928
    %v931 = vmul.f32 %v929, 1.442695
    %v932 = vpow.pop %v931
    %v933 = vmul.f32 %v930, 1.442695
    %v934 = vpow.pop %v933
    %v935 = vadd.f32 %v932, 0.0
    %v936 = vadd.f32 %v934, 0.0
    %v937 = vmul.f32 %v932, %v393
    %v938 = vmul.f32 %v934, %v397
    %v939 = vadd.f32 %v937, 0.0
    %v940 = vadd.f32 %v938, 0.0
    %v941 = vsub.f32 %v871, %v927
    %v942 = vsub.f32 %v874, %v928
    %v943 = vmul.f32 %v941, 1.442695
    %v944 = vpow.pop %v943
    %v945 = vmul.f32 %v942, 1.442695
    %v946 = vpow.pop %v945
    %v947 = vadd.f32 %v935, %v944
    %v948 = vadd.f32 %v936, %v946
    %v949 = vmul.f32 %v944, %v403
    %v950 = vmul.f32 %v946, %v407
    %v951 = vadd.f32 %v939, %v949
    %v952 = vadd.f32 %v940, %v950
    %v953 = vsub.f32 %v879, %v927
    %v954 = vsub.f32 %v882, %v928
    %v955 = vmul.f32 %v953, 1.442695
    %v956 = vpow.pop %v955
    %v957 = vmul.f32 %v954, 1.442695
    %v958 = vpow.pop %v957
    %v959 = vadd.f32 %v947, %v956
    %v960 = vadd.f32 %v948, %v958
    %v961 = vmul.f32 %v956, %v413
    %v962 = vmul.f32 %v958, %v417
    %v963 = vadd.f32 %v951, %v961
    %v964 = vadd.f32 %v952, %v962
    %v965 = vsub.f32 %v887, %v927
    %v966 = vsub.f32 %v890, %v928
    %v967 = vmul.f32 %v965, 1.442695
    %v968 = vpow.pop %v967
    %v969 = vmul.f32 %v966, 1.442695
    %v970 = vpow.pop %v969
    %v971 = vadd.f32 %v959, %v968
    %v972 = vadd.f32 %v960, %v970
    %v973 = vmul.f32 %v968, %v423
    %v974 = vmul.f32 %v970, %v427
    %v975 = vadd.f32 %v963, %v973
    %v976 = vadd.f32 %v964, %v974
    %v977 = vsub.f32 %v895, %v927
    %v978 = vsub.f32 %v898, %v928
    %v979 = vmul.f32 %v977, 1.442695
    %v980 = vpow.pop %v979
    %v981 = vmul.f32 %v978, 1.442695
    %v982 = vpow.pop %v981
    %v983 = vadd.f32 %v971, %v980
    %v984 = vadd.f32 %v972, %v982
    %v985 = vmul.f32 %v980, %v433
    %v986 = vmul.f32 %v982, %v437
    %v987 = vadd.f32 %v975, %v985
    %v988 = vadd.f32 %v976, %v986
    %v989 = vsub.f32 %v903, %v927
    %v990 = vsub.f32 %v906, %v928
    %v991 = vmul.f32 %v989, 1.442695
    %v992 = vpow.pop %v991
    %v993 = vmul.f32 %v990, 1.442695
    %v994 = vpow.pop %v993
    %v995 = vadd.f32 %v983, %v992
    %v996 = vadd.f32 %v984, %v994
    %v997 = vmul.f32 %v992, %v443
    %v998 = vmul.f32 %v994, %v447
    %v999 = vadd.f32 %v987, %v997
    %v1000 = vadd.f32 %v988, %v998
    %v1001 = vsub.f32 %v911, %v927
    %v1002 = vsub.f32 %v914, %v928
    %v1003 = vmul.f32 %v1001, 1.442695
    %v1004 = vpow.pop %v1003
    %v1005 = vmul.f32 %v1002, 1.442695
    %v1006 = vpow.pop %v1005
    %v1007 = vadd.f32 %v995, %v1004
    %v1008 = vadd.f32 %v996, %v1006
    %v1009 = vmul.f32 %v1004, %v453
    %v1010 = vmul.f32 %v1006, %v457
    %v1011 = vadd.f32 %v999, %v1009
    %v1012 = vadd.f32 %v1000, %v1010
    %v1013 = vrcp.pop %v1007
    %v1014 = vrcp.pop %v1008
    %v1015 = vmul.f32 %v1011, %v1013
    %v1016 = vmul.f32 %v1012, %v1014
    %v1017 = vmul.f32 %v411, %v478
    %v1018 = vmul.f32 %v415, %v480
    %v1019 = vmul.f32 %v411, %v488
    %v1020 = vmul.f32 %v415, %v490
    %v1021 = vmul.f32 %v411, %v498
    %v1022 = vmul.f32 %v415, %v500
    %v1023 = vmul.f32 %v411, %v508
    %v1024 = vmul.f32 %v415, %v510
    %v1025 = vmul.f32 %v411, %v518
    %v1026 = vmul.f32 %v415, %v520
    %v1027 = vmul.f32 %v411, %v528
    %v1028 = vmul.f32 %v415, %v530
    %v1029 = vmul.f32 %v411, %v538
    %v1030 = vmul.f32 %v415, %v540
    %v1031 = vpack.c.bf16 %v1018, %v1017
    %v1032 = vpack.c.bf16 %v1020, %v1019
    %v1033 = vpack.c.bf16 %v1022, %v1021
    %v1034 = vpack.c.bf16 %v1024, %v1023
    %v1035 = vpack.c.bf16 %v1026, %v1025
    %v1036 = vpack.c.bf16 %v1028, %v1027
    %v1037 = vpack.c.bf16 %v1030, %v1029
    %v1039 = vsel %vm334, %v1031, 0
    %v1042 = vsel %vm334, %v1032, 0
    %v1045 = vsel %vm334, %v1033, 0
    %v1048 = vsel %vm334, %v1034, 0
    %v1051 = vsel %vm334, %v1035, 0
    %v1054 = vsel %vm334, %v1036, 0
    %v1057 = vsel %vm334, %v1037, 0
    %1059 = vmatprep.subr.bf16.mxu0 0
    %1060 = vmatpush1.bf16.msra.mxu0 %v568
    %1061 = vmatprep.subr.bf16.mxu0 0
    %1062 = vmatpush1.bf16.msra.mxu0 %v569
    %1063 = vmatprep.subr.bf16.mxu0 0
    %1064 = vmatpush1.bf16.msra.mxu0 %v570
    %1065 = vmatprep.subr.bf16.mxu0 0
    %1066 = vmatpush1.bf16.msra.mxu0 %v571
    %1067 = vmatprep.subr.bf16.mxu0 0
    %1068 = vmatpush1.bf16.msra.mxu0 0
    %1069 = vmatprep.subr.bf16.mxu0 0
    %1070 = vmatpush1.bf16.msra.mxu0 0
    %1071 = vmatprep.subr.bf16.mxu0 0
    %1072 = vmatpush1.bf16.msra.mxu0 0
    %1073 = vmatprep.subr.bf16.mxu0 0
    %1074 = vmatpush1.bf16.msra.mxu0 0
    %1075 = vmatprep.subr.bf16.mxu0 0
    %1076 = vmatpush1.bf16.msra.mxu0 0
    %1077 = vmatprep.subr.bf16.mxu0 0
    %1078 = vmatpush1.bf16.msra.mxu0 0
    %1079 = vmatprep.subr.bf16.mxu0 0
    %1080 = vmatpush1.bf16.msra.mxu0 0
    %1081 = vmatprep.subr.bf16.mxu0 0
    %1082 = vmatpush1.bf16.msra.mxu0 0
    %1083 = vmatprep.subr.bf16.mxu0 0
    %1084 = vmatpush1.bf16.msra.mxu0 0
    %1085 = vmatprep.subr.bf16.mxu0 0
    %1086 = vmatpush1.bf16.msra.mxu0 0
    %1087 = vmatprep.subr.bf16.mxu0 0
    %1088 = vmatpush1.bf16.msra.mxu0 0
    %1089 = vmatprep.subr.bf16.mxu0 0
    %1090 = vmatpush1.bf16.msra.mxu0 0
    %1091 = vmatprep.mubr.bf16.mxu0 0
    %1092 = vmatmul.mubr.bf16.gmra.mrb[0].mxu0 %v1039
    %v1093 = vpop.f32.mrb[0].mxu0
    %v1094 = vadd.f32 0.0, %v1093
    %v1095 = vpop.f32.mrb[0].mxu0
    %v1096 = vpop.f32.mrb[0].mxu0
    %v1097 = vadd.f32 0.0, %v1096
    %v1098 = vpop.f32.mrb[0].mxu0
    %1099 = vmatprep.mubr.bf16.mxu0 0
    %1100 = vmatmul.mubr.bf16.gmra.mrb[0].mxu0 %v1042
    %v1101 = vpop.f32.mrb[0].mxu0
    %v1102 = vadd.f32 0.0, %v1101
    %v1103 = vpop.f32.mrb[0].mxu0
    %v1104 = vpop.f32.mrb[0].mxu0
    %v1105 = vadd.f32 0.0, %v1104
    %v1106 = vpop.f32.mrb[0].mxu0
    %1107 = vmatprep.mubr.bf16.mxu0 0
    %1108 = vmatmul.mubr.bf16.gmra.mrb[0].mxu0 %v1045
    %v1109 = vpop.f32.mrb[0].mxu0
    %v1110 = vadd.f32 0.0, %v1109
    %v1111 = vpop.f32.mrb[0].mxu0
    %v1112 = vpop.f32.mrb[0].mxu0
    %v1113 = vadd.f32 0.0, %v1112
    %v1114 = vpop.f32.mrb[0].mxu0
    %1115 = vmatprep.mubr.bf16.mxu0 0
    %1116 = vmatmul.mubr.bf16.gmra.mrb[0].mxu0 %v1048
    %v1117 = vpop.f32.mrb[0].mxu0
    %v1118 = vadd.f32 0.0, %v1117
    %v1119 = vpop.f32.mrb[0].mxu0
    %v1120 = vpop.f32.mrb[0].mxu0
    %v1121 = vadd.f32 0.0, %v1120
    %v1122 = vpop.f32.mrb[0].mxu0
    %1123 = vmatprep.mubr.bf16.mxu0 0
    %1124 = vmatmul.mubr.bf16.gmra.mrb[0].mxu0 %v1051
    %v1125 = vpop.f32.mrb[0].mxu0
    %v1126 = vadd.f32 0.0, %v1125
    %v1127 = vpop.f32.mrb[0].mxu0
    %v1128 = vpop.f32.mrb[0].mxu0
    %v1129 = vadd.f32 0.0, %v1128
    %v1130 = vpop.f32.mrb[0].mxu0
    %1131 = vmatprep.mubr.bf16.mxu0 0
    %1132 = vmatmul.mubr.bf16.gmra.mrb[0].mxu0 %v1054
    %v1133 = vpop.f32.mrb[0].mxu0
    %v1134 = vadd.f32 0.0, %v1133
    %v1135 = vpop.f32.mrb[0].mxu0
    %v1136 = vpop.f32.mrb[0].mxu0
    %v1137 = vadd.f32 0.0, %v1136
    %v1138 = vpop.f32.mrb[0].mxu0
    %1139 = vmatprep.mubr.bf16.mxu0 0
    %1140 = vmatmul.mubr.bf16.gmra.mrb[0].mxu0 %v1057
    %v1141 = vpop.f32.mrb[0].mxu0
    %v1142 = vadd.f32 0.0, %v1141
    %v1143 = vpop.f32.mrb[0].mxu0
    %v1144 = vpop.f32.mrb[0].mxu0
    %v1145 = vadd.f32 0.0, %v1144
    %v1146 = vpop.f32.mrb[0].mxu0
    %1147 = vdwg.mxu0
    %v1148 = vmax.f32 %v1094, %v1102
    %v1149 = vmax.f32 %v1097, %v1105
    %v1150 = vmax.f32 %v1148, %v1110
    %v1151 = vmax.f32 %v1149, %v1113
    %v1152 = vmax.f32 %v1150, %v1118
    %v1153 = vmax.f32 %v1151, %v1121
    %v1154 = vmax.f32 %v1152, %v1126
    %v1155 = vmax.f32 %v1153, %v1129
    %v1156 = vmax.f32 %v1154, %v1134
    %v1157 = vmax.f32 %v1155, %v1137
    %v1158 = vmax.f32 %v1156, %v1142
    %v1159 = vmax.f32 %v1157, %v1145
    %v1160 = vsub.f32 %v1094, %v1158
    %v1161 = vsub.f32 %v1097, %v1159
    %v1162 = vmul.f32 %v1160, 1.442695
    %v1163 = vpow.pop %v1162
    %v1164 = vmul.f32 %v1161, 1.442695
    %v1165 = vpow.pop %v1164
    %v1166 = vadd.f32 %v1163, 0.0
    %v1167 = vadd.f32 %v1165, 0.0
    %v1168 = vmul.f32 %v1163, %v393
    %v1169 = vmul.f32 %v1165, %v397
    %v1170 = vadd.f32 %v1168, 0.0
    %v1171 = vadd.f32 %v1169, 0.0
    %v1172 = vsub.f32 %v1102, %v1158
    %v1173 = vsub.f32 %v1105, %v1159
    %v1174 = vmul.f32 %v1172, 1.442695
    %v1175 = vpow.pop %v1174
    %v1176 = vmul.f32 %v1173, 1.442695
    %v1177 = vpow.pop %v1176
    %v1178 = vadd.f32 %v1166, %v1175
    %v1179 = vadd.f32 %v1167, %v1177
    %v1180 = vmul.f32 %v1175, %v403
    %v1181 = vmul.f32 %v1177, %v407
    %v1182 = vadd.f32 %v1170, %v1180
    %v1183 = vadd.f32 %v1171, %v1181
    %v1184 = vsub.f32 %v1110, %v1158
    %v1185 = vsub.f32 %v1113, %v1159
    %v1186 = vmul.f32 %v1184, 1.442695
    %v1187 = vpow.pop %v1186
    %v1188 = vmul.f32 %v1185, 1.442695
    %v1189 = vpow.pop %v1188
    %v1190 = vadd.f32 %v1178, %v1187
    %v1191 = vadd.f32 %v1179, %v1189
    %v1192 = vmul.f32 %v1187, %v413
    %v1193 = vmul.f32 %v1189, %v417
    %v1194 = vadd.f32 %v1182, %v1192
    %v1195 = vadd.f32 %v1183, %v1193
    %v1196 = vsub.f32 %v1118, %v1158
    %v1197 = vsub.f32 %v1121, %v1159
    %v1198 = vmul.f32 %v1196, 1.442695
    %v1199 = vpow.pop %v1198
    %v1200 = vmul.f32 %v1197, 1.442695
    %v1201 = vpow.pop %v1200
    %v1202 = vadd.f32 %v1190, %v1199
    %v1203 = vadd.f32 %v1191, %v1201
    %v1204 = vmul.f32 %v1199, %v423
    %v1205 = vmul.f32 %v1201, %v427
    %v1206 = vadd.f32 %v1194, %v1204
    %v1207 = vadd.f32 %v1195, %v1205
    %v1208 = vsub.f32 %v1126, %v1158
    %v1209 = vsub.f32 %v1129, %v1159
    %v1210 = vmul.f32 %v1208, 1.442695
    %v1211 = vpow.pop %v1210
    %v1212 = vmul.f32 %v1209, 1.442695
    %v1213 = vpow.pop %v1212
    %v1214 = vadd.f32 %v1202, %v1211
    %v1215 = vadd.f32 %v1203, %v1213
    %v1216 = vmul.f32 %v1211, %v433
    %v1217 = vmul.f32 %v1213, %v437
    %v1218 = vadd.f32 %v1206, %v1216
    %v1219 = vadd.f32 %v1207, %v1217
    %v1220 = vsub.f32 %v1134, %v1158
    %v1221 = vsub.f32 %v1137, %v1159
    %v1222 = vmul.f32 %v1220, 1.442695
    %v1223 = vpow.pop %v1222
    %v1224 = vmul.f32 %v1221, 1.442695
    %v1225 = vpow.pop %v1224
    %v1226 = vadd.f32 %v1214, %v1223
    %v1227 = vadd.f32 %v1215, %v1225
    %v1228 = vmul.f32 %v1223, %v443
    %v1229 = vmul.f32 %v1225, %v447
    %v1230 = vadd.f32 %v1218, %v1228
    %v1231 = vadd.f32 %v1219, %v1229
    %v1232 = vsub.f32 %v1142, %v1158
    %v1233 = vsub.f32 %v1145, %v1159
    %v1234 = vmul.f32 %v1232, 1.442695
    %v1235 = vpow.pop %v1234
    %v1236 = vmul.f32 %v1233, 1.442695
    %v1237 = vpow.pop %v1236
    %v1238 = vadd.f32 %v1226, %v1235
    %v1239 = vadd.f32 %v1227, %v1237
    %v1240 = vmul.f32 %v1235, %v453
    %v1241 = vmul.f32 %v1237, %v457
    %v1242 = vadd.f32 %v1230, %v1240
    %v1243 = vadd.f32 %v1231, %v1241
    %v1244 = vrcp.pop %v1238
    %v1245 = vrcp.pop %v1239
    %v1246 = vmul.f32 %v1242, %v1244
    %v1247 = vmul.f32 %v1243, %v1245
    %v1248 = vmul.f32 %v421, %v478
    %v1249 = vmul.f32 %v425, %v480
    %v1250 = vmul.f32 %v421, %v488
    %v1251 = vmul.f32 %v425, %v490
    %v1252 = vmul.f32 %v421, %v498
    %v1253 = vmul.f32 %v425, %v500
    %v1254 = vmul.f32 %v421, %v508
    %v1255 = vmul.f32 %v425, %v510
    %v1256 = vmul.f32 %v421, %v518
    %v1257 = vmul.f32 %v425, %v520
    %v1258 = vmul.f32 %v421, %v528
    %v1259 = vmul.f32 %v425, %v530
    %v1260 = vmul.f32 %v421, %v538
    %v1261 = vmul.f32 %v425, %v540
    %v1262 = vpack.c.bf16 %v1249, %v1248
    %v1263 = vpack.c.bf16 %v1251, %v1250
    %v1264 = vpack.c.bf16 %v1253, %v1252
    %v1265 = vpack.c.bf16 %v1255, %v1254
    %v1266 = vpack.c.bf16 %v1257, %v1256
    %v1267 = vpack.c.bf16 %v1259, %v1258
    %v1268 = vpack.c.bf16 %v1261, %v1260
    %v1270 = vsel %vm334, %v1262, 0
    %v1273 = vsel %vm334, %v1263, 0
    %v1276 = vsel %vm334, %v1264, 0
    %v1279 = vsel %vm334, %v1265, 0
    %v1282 = vsel %vm334, %v1266, 0
    %v1285 = vsel %vm334, %v1267, 0
    %v1288 = vsel %vm334, %v1268, 0
    %1290 = vmatprep.subr.bf16.mxu0 0
    %1291 = vmatpush1.bf16.msra.mxu0 %v568
    %1292 = vmatprep.subr.bf16.mxu0 0
    %1293 = vmatpush1.bf16.msra.mxu0 %v569
    %1294 = vmatprep.subr.bf16.mxu0 0
    %1295 = vmatpush1.bf16.msra.mxu0 %v570
    %1296 = vmatprep.subr.bf16.mxu0 0
    %1297 = vmatpush1.bf16.msra.mxu0 %v571
    %1298 = vmatprep.subr.bf16.mxu0 0
    %1299 = vmatpush1.bf16.msra.mxu0 0
    %1300 = vmatprep.subr.bf16.mxu0 0
    %1301 = vmatpush1.bf16.msra.mxu0 0
    %1302 = vmatprep.subr.bf16.mxu0 0
    %1303 = vmatpush1.bf16.msra.mxu0 0
    %1304 = vmatprep.subr.bf16.mxu0 0
    %1305 = vmatpush1.bf16.msra.mxu0 0
    %1306 = vmatprep.subr.bf16.mxu0 0
    %1307 = vmatpush1.bf16.msra.mxu0 0
    %1308 = vmatprep.subr.bf16.mxu0 0
    %1309 = vmatpush1.bf16.msra.mxu0 0
    %1310 = vmatprep.subr.bf16.mxu0 0
    %1311 = vmatpush1.bf16.msra.mxu0 0
    %1312 = vmatprep.subr.bf16.mxu0 0
    %1313 = vmatpush1.bf16.msra.mxu0 0
    %1314 = vmatprep.subr.bf16.mxu0 0
    %1315 = vmatpush1.bf16.msra.mxu0 0
    %1316 = vmatprep.subr.bf16.mxu0 0
    %1317 = vmatpush1.bf16.msra.mxu0 0
    %1318 = vmatprep.subr.bf16.mxu0 0
    %1319 = vmatpush1.bf16.msra.mxu0 0
    %1320 = vmatprep.subr.bf16.mxu0 0
    %1321 = vmatpush1.bf16.msra.mxu0 0
    %1322 = vmatprep.mubr.bf16.mxu0 0
    %1323 = vmatmul.mubr.bf16.gmra.mrb[0].mxu0 %v1270
    %v1324 = vpop.f32.mrb[0].mxu0
    %v1325 = vadd.f32 0.0, %v1324
    %v1326 = vpop.f32.mrb[0].mxu0
    %v1327 = vpop.f32.mrb[0].mxu0
    %v1328 = vadd.f32 0.0, %v1327
    %v1329 = vpop.f32.mrb[0].mxu0
    %1330 = vmatprep.mubr.bf16.mxu0 0
    %1331 = vmatmul.mubr.bf16.gmra.mrb[0].mxu0 %v1273
    %v1332 = vpop.f32.mrb[0].mxu0
    %v1333 = vadd.f32 0.0, %v1332
    %v1334 = vpop.f32.mrb[0].mxu0
    %v1335 = vpop.f32.mrb[0].mxu0
    %v1336 = vadd.f32 0.0, %v1335
    %v1337 = vpop.f32.mrb[0].mxu0
    %1338 = vmatprep.mubr.bf16.mxu0 0
    %1339 = vmatmul.mubr.bf16.gmra.mrb[0].mxu0 %v1276
    %v1340 = vpop.f32.mrb[0].mxu0
    %v1341 = vadd.f32 0.0, %v1340
    %v1342 = vpop.f32.mrb[0].mxu0
    %v1343 = vpop.f32.mrb[0].mxu0
    %v1344 = vadd.f32 0.0, %v1343
    %v1345 = vpop.f32.mrb[0].mxu0
    %1346 = vmatprep.mubr.bf16.mxu0 0
    %1347 = vmatmul.mubr.bf16.gmra.mrb[0].mxu0 %v1279
    %v1348 = vpop.f32.mrb[0].mxu0
    %v1349 = vadd.f32 0.0, %v1348
    %v1350 = vpop.f32.mrb[0].mxu0
    %v1351 = vpop.f32.mrb[0].mxu0
    %v1352 = vadd.f32 0.0, %v1351
    %v1353 = vpop.f32.mrb[0].mxu0
    %1354 = vmatprep.mubr.bf16.mxu0 0
    %1355 = vmatmul.mubr.bf16.gmra.mrb[0].mxu0 %v1282
    %v1356 = vpop.f32.mrb[0].mxu0
    %v1357 = vadd.f32 0.0, %v1356
    %v1358 = vpop.f32.mrb[0].mxu0
    %v1359 = vpop.f32.mrb[0].mxu0
    %v1360 = vadd.f32 0.0, %v1359
    %v1361 = vpop.f32.mrb[0].mxu0
    %1362 = vmatprep.mubr.bf16.mxu0 0
    %1363 = vmatmul.mubr.bf16.gmra.mrb[0].mxu0 %v1285
    %v1364 = vpop.f32.mrb[0].mxu0
    %v1365 = vadd.f32 0.0, %v1364
    %v1366 = vpop.f32.mrb[0].mxu0
    %v1367 = vpop.f32.mrb[0].mxu0
    %v1368 = vadd.f32 0.0, %v1367
    %v1369 = vpop.f32.mrb[0].mxu0
    %1370 = vmatprep.mubr.bf16.mxu0 0
    %1371 = vmatmul.mubr.bf16.gmra.mrb[0].mxu0 %v1288
    %v1372 = vpop.f32.mrb[0].mxu0
    %v1373 = vadd.f32 0.0, %v1372
    %v1374 = vpop.f32.mrb[0].mxu0
    %v1375 = vpop.f32.mrb[0].mxu0
    %v1376 = vadd.f32 0.0, %v1375
    %v1377 = vpop.f32.mrb[0].mxu0
    %1378 = vdwg.mxu0
    %v1379 = vmax.f32 %v1325, %v1333
    %v1380 = vmax.f32 %v1328, %v1336
    %v1381 = vmax.f32 %v1379, %v1341
    %v1382 = vmax.f32 %v1380, %v1344
    %v1383 = vmax.f32 %v1381, %v1349
    %v1384 = vmax.f32 %v1382, %v1352
    %v1385 = vmax.f32 %v1383, %v1357
    %v1386 = vmax.f32 %v1384, %v1360
    %v1387 = vmax.f32 %v1385, %v1365
    %v1388 = vmax.f32 %v1386, %v1368
    %v1389 = vmax.f32 %v1387, %v1373
    %v1390 = vmax.f32 %v1388, %v1376
    %v1391 = vsub.f32 %v1325, %v1389
    %v1392 = vsub.f32 %v1328, %v1390
    %v1393 = vmul.f32 %v1391, 1.442695
    %v1394 = vpow.pop %v1393
    %v1395 = vmul.f32 %v1392, 1.442695
    %v1396 = vpow.pop %v1395
    %v1397 = vadd.f32 %v1394, 0.0
    %v1398 = vadd.f32 %v1396, 0.0
    %v1399 = vmul.f32 %v1394, %v393
    %v1400 = vmul.f32 %v1396, %v397
    %v1401 = vadd.f32 %v1399, 0.0
    %v1402 = vadd.f32 %v1400, 0.0
    %v1403 = vsub.f32 %v1333, %v1389
    %v1404 = vsub.f32 %v1336, %v1390
    %v1405 = vmul.f32 %v1403, 1.442695
    %v1406 = vpow.pop %v1405
    %v1407 = vmul.f32 %v1404, 1.442695
    %v1408 = vpow.pop %v1407
    %v1409 = vadd.f32 %v1397, %v1406
    %v1410 = vadd.f32 %v1398, %v1408
    %v1411 = vmul.f32 %v1406, %v403
    %v1412 = vmul.f32 %v1408, %v407
    %v1413 = vadd.f32 %v1401, %v1411
    %v1414 = vadd.f32 %v1402, %v1412
    %v1415 = vsub.f32 %v1341, %v1389
    %v1416 = vsub.f32 %v1344, %v1390
    %v1417 = vmul.f32 %v1415, 1.442695
    %v1418 = vpow.pop %v1417
    %v1419 = vmul.f32 %v1416, 1.442695
    %v1420 = vpow.pop %v1419
    %v1421 = vadd.f32 %v1409, %v1418
    %v1422 = vadd.f32 %v1410, %v1420
    %v1423 = vmul.f32 %v1418, %v413
    %v1424 = vmul.f32 %v1420, %v417
    %v1425 = vadd.f32 %v1413, %v1423
    %v1426 = vadd.f32 %v1414, %v1424
    %v1427 = vsub.f32 %v1349, %v1389
    %v1428 = vsub.f32 %v1352, %v1390
    %v1429 = vmul.f32 %v1427, 1.442695
    %v1430 = vpow.pop %v1429
    %v1431 = vmul.f32 %v1428, 1.442695
    %v1432 = vpow.pop %v1431
    %v1433 = vadd.f32 %v1421, %v1430
    %v1434 = vadd.f32 %v1422, %v1432
    %v1435 = vmul.f32 %v1430, %v423
    %v1436 = vmul.f32 %v1432, %v427
    %v1437 = vadd.f32 %v1425, %v1435
    %v1438 = vadd.f32 %v1426, %v1436
    %v1439 = vsub.f32 %v1357, %v1389
    %v1440 = vsub.f32 %v1360, %v1390
    %v1441 = vmul.f32 %v1439, 1.442695
    %v1442 = vpow.pop %v1441
    %v1443 = vmul.f32 %v1440, 1.442695
    %v1444 = vpow.pop %v1443
    %v1445 = vadd.f32 %v1433, %v1442
    %v1446 = vadd.f32 %v1434, %v1444
    %v1447 = vmul.f32 %v1442, %v433
    %v1448 = vmul.f32 %v1444, %v437
    %v1449 = vadd.f32 %v1437, %v1447
    %v1450 = vadd.f32 %v1438, %v1448
    %v1451 = vsub.f32 %v1365, %v1389
    %v1452 = vsub.f32 %v1368, %v1390
    %v1453 = vmul.f32 %v1451, 1.442695
    %v1454 = vpow.pop %v1453
    %v1455 = vmul.f32 %v1452, 1.442695
    %v1456 = vpow.pop %v1455
    %v1457 = vadd.f32 %v1445, %v1454
    %v1458 = vadd.f32 %v1446, %v1456
    %v1459 = vmul.f32 %v1454, %v443
    %v1460 = vmul.f32 %v1456, %v447
    %v1461 = vadd.f32 %v1449, %v1459
    %v1462 = vadd.f32 %v1450, %v1460
    %v1463 = vsub.f32 %v1373, %v1389
    %v1464 = vsub.f32 %v1376, %v1390
    %v1465 = vmul.f32 %v1463, 1.442695
    %v1466 = vpow.pop %v1465
    %v1467 = vmul.f32 %v1464, 1.442695
    %v1468 = vpow.pop %v1467
    %v1469 = vadd.f32 %v1457, %v1466
    %v1470 = vadd.f32 %v1458, %v1468
    %v1471 = vmul.f32 %v1466, %v453
    %v1472 = vmul.f32 %v1468, %v457
    %v1473 = vadd.f32 %v1461, %v1471
    %v1474 = vadd.f32 %v1462, %v1472
    %v1475 = vrcp.pop %v1469
    %v1476 = vrcp.pop %v1470
    %v1477 = vmul.f32 %v1473, %v1475
    %v1478 = vmul.f32 %v1474, %v1476
    %v1479 = vmul.f32 %v431, %v478
    %v1480 = vmul.f32 %v435, %v480
    %v1481 = vmul.f32 %v431, %v488
    %v1482 = vmul.f32 %v435, %v490
    %v1483 = vmul.f32 %v431, %v498
    %v1484 = vmul.f32 %v435, %v500
    %v1485 = vmul.f32 %v431, %v508
    %v1486 = vmul.f32 %v435, %v510
    %v1487 = vmul.f32 %v431, %v518
    %v1488 = vmul.f32 %v435, %v520
    %v1489 = vmul.f32 %v431, %v528
    %v1490 = vmul.f32 %v435, %v530
    %v1491 = vmul.f32 %v431, %v538
    %v1492 = vmul.f32 %v435, %v540
    %v1493 = vpack.c.bf16 %v1480, %v1479
    %v1494 = vpack.c.bf16 %v1482, %v1481
    %v1495 = vpack.c.bf16 %v1484, %v1483
    %v1496 = vpack.c.bf16 %v1486, %v1485
    %v1497 = vpack.c.bf16 %v1488, %v1487
    %v1498 = vpack.c.bf16 %v1490, %v1489
    %v1499 = vpack.c.bf16 %v1492, %v1491
    %v1501 = vsel %vm334, %v1493, 0
    %v1504 = vsel %vm334, %v1494, 0
    %v1507 = vsel %vm334, %v1495, 0
    %v1510 = vsel %vm334, %v1496, 0
    %v1513 = vsel %vm334, %v1497, 0
    %v1516 = vsel %vm334, %v1498, 0
    %v1519 = vsel %vm334, %v1499, 0
    %1521 = vmatprep.subr.bf16.mxu0 0
    %1522 = vmatpush1.bf16.msra.mxu0 %v568
    %1523 = vmatprep.subr.bf16.mxu0 0
    %1524 = vmatpush1.bf16.msra.mxu0 %v569
    %1525 = vmatprep.subr.bf16.mxu0 0
    %1526 = vmatpush1.bf16.msra.mxu0 %v570
    %1527 = vmatprep.subr.bf16.mxu0 0
    %1528 = vmatpush1.bf16.msra.mxu0 %v571
    %1529 = vmatprep.subr.bf16.mxu0 0
    %1530 = vmatpush1.bf16.msra.mxu0 0
    %1531 = vmatprep.subr.bf16.mxu0 0
    %1532 = vmatpush1.bf16.msra.mxu0 0
    %1533 = vmatprep.subr.bf16.mxu0 0
    %1534 = vmatpush1.bf16.msra.mxu0 0
    %1535 = vmatprep.subr.bf16.mxu0 0
    %1536 = vmatpush1.bf16.msra.mxu0 0
    %1537 = vmatprep.subr.bf16.mxu0 0
    %1538 = vmatpush1.bf16.msra.mxu0 0
    %1539 = vmatprep.subr.bf16.mxu0 0
    %1540 = vmatpush1.bf16.msra.mxu0 0
    %1541 = vmatprep.subr.bf16.mxu0 0
    %1542 = vmatpush1.bf16.msra.mxu0 0
    %1543 = vmatprep.subr.bf16.mxu0 0
    %1544 = vmatpush1.bf16.msra.mxu0 0
    %1545 = vmatprep.subr.bf16.mxu0 0
    %1546 = vmatpush1.bf16.msra.mxu0 0
    %1547 = vmatprep.subr.bf16.mxu0 0
    %1548 = vmatpush1.bf16.msra.mxu0 0
    %1549 = vmatprep.subr.bf16.mxu0 0
    %1550 = vmatpush1.bf16.msra.mxu0 0
    %1551 = vmatprep.subr.bf16.mxu0 0
    %1552 = vmatpush1.bf16.msra.mxu0 0
    %1553 = vmatprep.mubr.bf16.mxu0 0
    %1554 = vmatmul.mubr.bf16.gmra.mrb[0].mxu0 %v1501
    %v1555 = vpop.f32.mrb[0].mxu0
    %v1556 = vadd.f32 0.0, %v1555
    %v1557 = vpop.f32.mrb[0].mxu0
    %v1558 = vpop.f32.mrb[0].mxu0
    %v1559 = vadd.f32 0.0, %v1558
    %v1560 = vpop.f32.mrb[0].mxu0
    %1561 = vmatprep.mubr.bf16.mxu0 0
    %1562 = vmatmul.mubr.bf16.gmra.mrb[0].mxu0 %v1504
    %v1563 = vpop.f32.mrb[0].mxu0
    %v1564 = vadd.f32 0.0, %v1563
    %v1565 = vpop.f32.mrb[0].mxu0
    %v1566 = vpop.f32.mrb[0].mxu0
    %v1567 = vadd.f32 0.0, %v1566
    %v1568 = vpop.f32.mrb[0].mxu0
    %1569 = vmatprep.mubr.bf16.mxu0 0
    %1570 = vmatmul.mubr.bf16.gmra.mrb[0].mxu0 %v1507
    %v1571 = vpop.f32.mrb[0].mxu0
    %v1572 = vadd.f32 0.0, %v1571
    %v1573 = vpop.f32.mrb[0].mxu0
    %v1574 = vpop.f32.mrb[0].mxu0
    %v1575 = vadd.f32 0.0, %v1574
    %v1576 = vpop.f32.mrb[0].mxu0
    %1577 = vmatprep.mubr.bf16.mxu0 0
    %1578 = vmatmul.mubr.bf16.gmra.mrb[0].mxu0 %v1510
    %v1579 = vpop.f32.mrb[0].mxu0
    %v1580 = vadd.f32 0.0, %v1579
    %v1581 = vpop.f32.mrb[0].mxu0
    %v1582 = vpop.f32.mrb[0].mxu0
    %v1583 = vadd.f32 0.0, %v1582
    %v1584 = vpop.f32.mrb[0].mxu0
    %1585 = vmatprep.mubr.bf16.mxu0 0
    %1586 = vmatmul.mubr.bf16.gmra.mrb[0].mxu0 %v1513
    %v1587 = vpop.f32.mrb[0].mxu0
    %v1588 = vadd.f32 0.0, %v1587
    %v1589 = vpop.f32.mrb[0].mxu0
    %v1590 = vpop.f32.mrb[0].mxu0
    %v1591 = vadd.f32 0.0, %v1590
    %v1592 = vpop.f32.mrb[0].mxu0
    %1593 = vmatprep.mubr.bf16.mxu0 0
    %1594 = vmatmul.mubr.bf16.gmra.mrb[0].mxu0 %v1516
    %v1595 = vpop.f32.mrb[0].mxu0
    %v1596 = vadd.f32 0.0, %v1595
    %v1597 = vpop.f32.mrb[0].mxu0
    %v1598 = vpop.f32.mrb[0].mxu0
    %v1599 = vadd.f32 0.0, %v1598
    %v1600 = vpop.f32.mrb[0].mxu0
    %1601 = vmatprep.mubr.bf16.mxu0 0
    %1602 = vmatmul.mubr.bf16.gmra.mrb[0].mxu0 %v1519
    %v1603 = vpop.f32.mrb[0].mxu0
    %v1604 = vadd.f32 0.0, %v1603
    %v1605 = vpop.f32.mrb[0].mxu0
    %v1606 = vpop.f32.mrb[0].mxu0
    %v1607 = vadd.f32 0.0, %v1606
    %v1608 = vpop.f32.mrb[0].mxu0
    %1609 = vdwg.mxu0
    %v1610 = vmax.f32 %v1556, %v1564
    %v1611 = vmax.f32 %v1559, %v1567
    %v1612 = vmax.f32 %v1610, %v1572
    %v1613 = vmax.f32 %v1611, %v1575
    %v1614 = vmax.f32 %v1612, %v1580
    %v1615 = vmax.f32 %v1613, %v1583
    %v1616 = vmax.f32 %v1614, %v1588
    %v1617 = vmax.f32 %v1615, %v1591
    %v1618 = vmax.f32 %v1616, %v1596
    %v1619 = vmax.f32 %v1617, %v1599
    %v1620 = vmax.f32 %v1618, %v1604
    %v1621 = vmax.f32 %v1619, %v1607
    %v1622 = vsub.f32 %v1556, %v1620
    %v1623 = vsub.f32 %v1559, %v1621
    %v1624 = vmul.f32 %v1622, 1.442695
    %v1625 = vpow.pop %v1624
    %v1626 = vmul.f32 %v1623, 1.442695
    %v1627 = vpow.pop %v1626
    %v1628 = vadd.f32 %v1625, 0.0
    %v1629 = vadd.f32 %v1627, 0.0
    %v1630 = vmul.f32 %v1625, %v393
    %v1631 = vmul.f32 %v1627, %v397
    %v1632 = vadd.f32 %v1630, 0.0
    %v1633 = vadd.f32 %v1631, 0.0
    %v1634 = vsub.f32 %v1564, %v1620
    %v1635 = vsub.f32 %v1567, %v1621
    %v1636 = vmul.f32 %v1634, 1.442695
    %v1637 = vpow.pop %v1636
    %v1638 = vmul.f32 %v1635, 1.442695
    %v1639 = vpow.pop %v1638
    %v1640 = vadd.f32 %v1628, %v1637
    %v1641 = vadd.f32 %v1629, %v1639
    %v1642 = vmul.f32 %v1637, %v403
    %v1643 = vmul.f32 %v1639, %v407
    %v1644 = vadd.f32 %v1632, %v1642
    %v1645 = vadd.f32 %v1633, %v1643
    %v1646 = vsub.f32 %v1572, %v1620
    %v1647 = vsub.f32 %v1575, %v1621
    %v1648 = vmul.f32 %v1646, 1.442695
    %v1649 = vpow.pop %v1648
    %v1650 = vmul.f32 %v1647, 1.442695
    %v1651 = vpow.pop %v1650
    %v1652 = vadd.f32 %v1640, %v1649
    %v1653 = vadd.f32 %v1641, %v1651
    %v1654 = vmul.f32 %v1649, %v413
    %v1655 = vmul.f32 %v1651, %v417
    %v1656 = vadd.f32 %v1644, %v1654
    %v1657 = vadd.f32 %v1645, %v1655
    %v1658 = vsub.f32 %v1580, %v1620
    %v1659 = vsub.f32 %v1583, %v1621
    %v1660 = vmul.f32 %v1658, 1.442695
    %v1661 = vpow.pop %v1660
    %v1662 = vmul.f32 %v1659, 1.442695
    %v1663 = vpow.pop %v1662
    %v1664 = vadd.f32 %v1652, %v1661
    %v1665 = vadd.f32 %v1653, %v1663
    %v1666 = vmul.f32 %v1661, %v423
    %v1667 = vmul.f32 %v1663, %v427
    %v1668 = vadd.f32 %v1656, %v1666
    %v1669 = vadd.f32 %v1657, %v1667
    %v1670 = vsub.f32 %v1588, %v1620
    %v1671 = vsub.f32 %v1591, %v1621
    %v1672 = vmul.f32 %v1670, 1.442695
    %v1673 = vpow.pop %v1672
    %v1674 = vmul.f32 %v1671, 1.442695
    %v1675 = vpow.pop %v1674
    %v1676 = vadd.f32 %v1664, %v1673
    %v1677 = vadd.f32 %v1665, %v1675
    %v1678 = vmul.f32 %v1673, %v433
    %v1679 = vmul.f32 %v1675, %v437
    %v1680 = vadd.f32 %v1668, %v1678
    %v1681 = vadd.f32 %v1669, %v1679
    %v1682 = vsub.f32 %v1596, %v1620
    %v1683 = vsub.f32 %v1599, %v1621
    %v1684 = vmul.f32 %v1682, 1.442695
    %v1685 = vpow.pop %v1684
    %v1686 = vmul.f32 %v1683, 1.442695
    %v1687 = vpow.pop %v1686
    %v1688 = vadd.f32 %v1676, %v1685
    %v1689 = vadd.f32 %v1677, %v1687
    %v1690 = vmul.f32 %v1685, %v443
    %v1691 = vmul.f32 %v1687, %v447
    %v1692 = vadd.f32 %v1680, %v1690
    %v1693 = vadd.f32 %v1681, %v1691
    %v1694 = vsub.f32 %v1604, %v1620
    %v1695 = vsub.f32 %v1607, %v1621
    %v1696 = vmul.f32 %v1694, 1.442695
    %v1697 = vpow.pop %v1696
    %v1698 = vmul.f32 %v1695, 1.442695
    %v1699 = vpow.pop %v1698
    %v1700 = vadd.f32 %v1688, %v1697
    %v1701 = vadd.f32 %v1689, %v1699
    %v1702 = vmul.f32 %v1697, %v453
    %v1703 = vmul.f32 %v1699, %v457
    %v1704 = vadd.f32 %v1692, %v1702
    %v1705 = vadd.f32 %v1693, %v1703
    %v1706 = vrcp.pop %v1700
    %v1707 = vrcp.pop %v1701
    %v1708 = vmul.f32 %v1704, %v1706
    %v1709 = vmul.f32 %v1705, %v1707
    %v1710 = vmul.f32 %v441, %v478
    %v1711 = vmul.f32 %v445, %v480
    %v1712 = vmul.f32 %v441, %v488
    %v1713 = vmul.f32 %v445, %v490
    %v1714 = vmul.f32 %v441, %v498
    %v1715 = vmul.f32 %v445, %v500
    %v1716 = vmul.f32 %v441, %v508
    %v1717 = vmul.f32 %v445, %v510
    %v1718 = vmul.f32 %v441, %v518
    %v1719 = vmul.f32 %v445, %v520
    %v1720 = vmul.f32 %v441, %v528
    %v1721 = vmul.f32 %v445, %v530
    %v1722 = vmul.f32 %v441, %v538
    %v1723 = vmul.f32 %v445, %v540
    %v1724 = vpack.c.bf16 %v1711, %v1710
    %v1725 = vpack.c.bf16 %v1713, %v1712
    %v1726 = vpack.c.bf16 %v1715, %v1714
    %v1727 = vpack.c.bf16 %v1717, %v1716
    %v1728 = vpack.c.bf16 %v1719, %v1718
    %v1729 = vpack.c.bf16 %v1721, %v1720
    %v1730 = vpack.c.bf16 %v1723, %v1722
    %v1732 = vsel %vm334, %v1724, 0
    %v1735 = vsel %vm334, %v1725, 0
    %v1738 = vsel %vm334, %v1726, 0
    %v1741 = vsel %vm334, %v1727, 0
    %v1744 = vsel %vm334, %v1728, 0
    %v1747 = vsel %vm334, %v1729, 0
    %v1750 = vsel %vm334, %v1730, 0
    %1752 = vmatprep.subr.bf16.mxu0 0
    %1753 = vmatpush1.bf16.msra.mxu0 %v568
    %1754 = vmatprep.subr.bf16.mxu0 0
    %1755 = vmatpush1.bf16.msra.mxu0 %v569
    %1756 = vmatprep.subr.bf16.mxu0 0
    %1757 = vmatpush1.bf16.msra.mxu0 %v570
    %1758 = vmatprep.subr.bf16.mxu0 0
    %1759 = vmatpush1.bf16.msra.mxu0 %v571
    %1760 = vmatprep.subr.bf16.mxu0 0
    %1761 = vmatpush1.bf16.msra.mxu0 0
    %1762 = vmatprep.subr.bf16.mxu0 0
    %1763 = vmatpush1.bf16.msra.mxu0 0
    %1764 = vmatprep.subr.bf16.mxu0 0
    %1765 = vmatpush1.bf16.msra.mxu0 0
    %1766 = vmatprep.subr.bf16.mxu0 0
    %1767 = vmatpush1.bf16.msra.mxu0 0
    %1768 = vmatprep.subr.bf16.mxu0 0
    %1769 = vmatpush1.bf16.msra.mxu0 0
    %1770 = vmatprep.subr.bf16.mxu0 0
    %1771 = vmatpush1.bf16.msra.mxu0 0
    %1772 = vmatprep.subr.bf16.mxu0 0
    %1773 = vmatpush1.bf16.msra.mxu0 0
    %1774 = vmatprep.subr.bf16.mxu0 0
    %1775 = vmatpush1.bf16.msra.mxu0 0
    %1776 = vmatprep.subr.bf16.mxu0 0
    %1777 = vmatpush1.bf16.msra.mxu0 0
    %1778 = vmatprep.subr.bf16.mxu0 0
    %1779 = vmatpush1.bf16.msra.mxu0 0
    %1780 = vmatprep.subr.bf16.mxu0 0
    %1781 = vmatpush1.bf16.msra.mxu0 0
    %1782 = vmatprep.subr.bf16.mxu0 0
    %1783 = vmatpush1.bf16.msra.mxu0 0
    %1784 = vmatprep.mubr.bf16.mxu0 0
    %1785 = vmatmul.mubr.bf16.gmra.mrb[0].mxu0 %v1732
    %v1786 = vpop.f32.mrb[0].mxu0
    %v1787 = vadd.f32 0.0, %v1786
    %v1788 = vpop.f32.mrb[0].mxu0
    %v1789 = vpop.f32.mrb[0].mxu0
    %v1790 = vadd.f32 0.0, %v1789
    %v1791 = vpop.f32.mrb[0].mxu0
    %1792 = vmatprep.mubr.bf16.mxu0 0
    %1793 = vmatmul.mubr.bf16.gmra.mrb[0].mxu0 %v1735
    %v1794 = vpop.f32.mrb[0].mxu0
    %v1795 = vadd.f32 0.0, %v1794
    %v1796 = vpop.f32.mrb[0].mxu0
    %v1797 = vpop.f32.mrb[0].mxu0
    %v1798 = vadd.f32 0.0, %v1797
    %v1799 = vpop.f32.mrb[0].mxu0
    %1800 = vmatprep.mubr.bf16.mxu0 0
    %1801 = vmatmul.mubr.bf16.gmra.mrb[0].mxu0 %v1738
    %v1802 = vpop.f32.mrb[0].mxu0
    %v1803 = vadd.f32 0.0, %v1802
    %v1804 = vpop.f32.mrb[0].mxu0
    %v1805 = vpop.f32.mrb[0].mxu0
    %v1806 = vadd.f32 0.0, %v1805
    %v1807 = vpop.f32.mrb[0].mxu0
    %1808 = vmatprep.mubr.bf16.mxu0 0
    %1809 = vmatmul.mubr.bf16.gmra.mrb[0].mxu0 %v1741
    %v1810 = vpop.f32.mrb[0].mxu0
    %v1811 = vadd.f32 0.0, %v1810
    %v1812 = vpop.f32.mrb[0].mxu0
    %v1813 = vpop.f32.mrb[0].mxu0
    %v1814 = vadd.f32 0.0, %v1813
    %v1815 = vpop.f32.mrb[0].mxu0
    %1816 = vmatprep.mubr.bf16.mxu0 0
    %1817 = vmatmul.mubr.bf16.gmra.mrb[0].mxu0 %v1744
    %v1818 = vpop.f32.mrb[0].mxu0
    %v1819 = vadd.f32 0.0, %v1818
    %v1820 = vpop.f32.mrb[0].mxu0
    %v1821 = vpop.f32.mrb[0].mxu0
    %v1822 = vadd.f32 0.0, %v1821
    %v1823 = vpop.f32.mrb[0].mxu0
    %1824 = vmatprep.mubr.bf16.mxu0 0
    %1825 = vmatmul.mubr.bf16.gmra.mrb[0].mxu0 %v1747
    %v1826 = vpop.f32.mrb[0].mxu0
    %v1827 = vadd.f32 0.0, %v1826
    %v1828 = vpop.f32.mrb[0].mxu0
    %v1829 = vpop.f32.mrb[0].mxu0
    %v1830 = vadd.f32 0.0, %v1829
    %v1831 = vpop.f32.mrb[0].mxu0
    %1832 = vmatprep.mubr.bf16.mxu0 0
    %1833 = vmatmul.mubr.bf16.gmra.mrb[0].mxu0 %v1750
    %v1834 = vpop.f32.mrb[0].mxu0
    %v1835 = vadd.f32 0.0, %v1834
    %v1836 = vpop.f32.mrb[0].mxu0
    %v1837 = vpop.f32.mrb[0].mxu0
    %v1838 = vadd.f32 0.0, %v1837
    %v1839 = vpop.f32.mrb[0].mxu0
    %1840 = vdwg.mxu0
    %v1841 = vmax.f32 %v1787, %v1795
    %v1842 = vmax.f32 %v1790, %v1798
    %v1843 = vmax.f32 %v1841, %v1803
    %v1844 = vmax.f32 %v1842, %v1806
    %v1845 = vmax.f32 %v1843, %v1811
    %v1846 = vmax.f32 %v1844, %v1814
    %v1847 = vmax.f32 %v1845, %v1819
    %v1848 = vmax.f32 %v1846, %v1822
    %v1849 = vmax.f32 %v1847, %v1827
    %v1850 = vmax.f32 %v1848, %v1830
    %v1851 = vmax.f32 %v1849, %v1835
    %v1852 = vmax.f32 %v1850, %v1838
    %v1853 = vsub.f32 %v1787, %v1851
    %v1854 = vsub.f32 %v1790, %v1852
    %v1855 = vmul.f32 %v1853, 1.442695
    %v1856 = vpow.pop %v1855
    %v1857 = vmul.f32 %v1854, 1.442695
    %v1858 = vpow.pop %v1857
    %v1859 = vadd.f32 %v1856, 0.0
    %v1860 = vadd.f32 %v1858, 0.0
    %v1861 = vmul.f32 %v1856, %v393
    %v1862 = vmul.f32 %v1858, %v397
    %v1863 = vadd.f32 %v1861, 0.0
    %v1864 = vadd.f32 %v1862, 0.0
    %v1865 = vsub.f32 %v1795, %v1851
    %v1866 = vsub.f32 %v1798, %v1852
    %v1867 = vmul.f32 %v1865, 1.442695
    %v1868 = vpow.pop %v1867
    %v1869 = vmul.f32 %v1866, 1.442695
    %v1870 = vpow.pop %v1869
    %v1871 = vadd.f32 %v1859, %v1868
    %v1872 = vadd.f32 %v1860, %v1870
    %v1873 = vmul.f32 %v1868, %v403
    %v1874 = vmul.f32 %v1870, %v407
    %v1875 = vadd.f32 %v1863, %v1873
    %v1876 = vadd.f32 %v1864, %v1874
    %v1877 = vsub.f32 %v1803, %v1851
    %v1878 = vsub.f32 %v1806, %v1852
    %v1879 = vmul.f32 %v1877, 1.442695
    %v1880 = vpow.pop %v1879
    %v1881 = vmul.f32 %v1878, 1.442695
    %v1882 = vpow.pop %v1881
    %v1883 = vadd.f32 %v1871, %v1880
    %v1884 = vadd.f32 %v1872, %v1882
    %v1885 = vmul.f32 %v1880, %v413
    %v1886 = vmul.f32 %v1882, %v417
    %v1887 = vadd.f32 %v1875, %v1885
    %v1888 = vadd.f32 %v1876, %v1886
    %v1889 = vsub.f32 %v1811, %v1851
    %v1890 = vsub.f32 %v1814, %v1852
    %v1891 = vmul.f32 %v1889, 1.442695
    %v1892 = vpow.pop %v1891
    %v1893 = vmul.f32 %v1890, 1.442695
    %v1894 = vpow.pop %v1893
    %v1895 = vadd.f32 %v1883, %v1892
    %v1896 = vadd.f32 %v1884, %v1894
    %v1897 = vmul.f32 %v1892, %v423
    %v1898 = vmul.f32 %v1894, %v427
    %v1899 = vadd.f32 %v1887, %v1897
    %v1900 = vadd.f32 %v1888, %v1898
    %v1901 = vsub.f32 %v1819, %v1851
    %v1902 = vsub.f32 %v1822, %v1852
    %v1903 = vmul.f32 %v1901, 1.442695
    %v1904 = vpow.pop %v1903
    %v1905 = vmul.f32 %v1902, 1.442695
    %v1906 = vpow.pop %v1905
    %v1907 = vadd.f32 %v1895, %v1904
    %v1908 = vadd.f32 %v1896, %v1906
    %v1909 = vmul.f32 %v1904, %v433
    %v1910 = vmul.f32 %v1906, %v437
    %v1911 = vadd.f32 %v1899, %v1909
    %v1912 = vadd.f32 %v1900, %v1910
    %v1913 = vsub.f32 %v1827, %v1851
    %v1914 = vsub.f32 %v1830, %v1852
    %v1915 = vmul.f32 %v1913, 1.442695
    %v1916 = vpow.pop %v1915
    %v1917 = vmul.f32 %v1914, 1.442695
    %v1918 = vpow.pop %v1917
    %v1919 = vadd.f32 %v1907, %v1916
    %v1920 = vadd.f32 %v1908, %v1918
    %v1921 = vmul.f32 %v1916, %v443
    %v1922 = vmul.f32 %v1918, %v447
    %v1923 = vadd.f32 %v1911, %v1921
    %v1924 = vadd.f32 %v1912, %v1922
    %v1925 = vsub.f32 %v1835, %v1851
    %v1926 = vsub.f32 %v1838, %v1852
    %v1927 = vmul.f32 %v1925, 1.442695
    %v1928 = vpow.pop %v1927
    %v1929 = vmul.f32 %v1926, 1.442695
    %v1930 = vpow.pop %v1929
    %v1931 = vadd.f32 %v1919, %v1928
    %v1932 = vadd.f32 %v1920, %v1930
    %v1933 = vmul.f32 %v1928, %v453
    %v1934 = vmul.f32 %v1930, %v457
    %v1935 = vadd.f32 %v1923, %v1933
    %v1936 = vadd.f32 %v1924, %v1934
    %v1937 = vrcp.pop %v1931
    %v1938 = vrcp.pop %v1932
    %v1939 = vmul.f32 %v1935, %v1937
    %v1940 = vmul.f32 %v1936, %v1938
    %v1941 = vmul.f32 %v451, %v478
    %v1942 = vmul.f32 %v455, %v480
    %v1943 = vmul.f32 %v451, %v488
    %v1944 = vmul.f32 %v455, %v490
    %v1945 = vmul.f32 %v451, %v498
    %v1946 = vmul.f32 %v455, %v500
    %v1947 = vmul.f32 %v451, %v508
    %v1948 = vmul.f32 %v455, %v510
    %v1949 = vmul.f32 %v451, %v518
    %v1950 = vmul.f32 %v455, %v520
    %v1951 = vmul.f32 %v451, %v528
    %v1952 = vmul.f32 %v455, %v530
    %v1953 = vmul.f32 %v451, %v538
    %v1954 = vmul.f32 %v455, %v540
    %v1955 = vpack.c.bf16 %v1942, %v1941
    %v1956 = vpack.c.bf16 %v1944, %v1943
    %v1957 = vpack.c.bf16 %v1946, %v1945
    %v1958 = vpack.c.bf16 %v1948, %v1947
    %v1959 = vpack.c.bf16 %v1950, %v1949
    %v1960 = vpack.c.bf16 %v1952, %v1951
    %v1961 = vpack.c.bf16 %v1954, %v1953
    %v1963 = vsel %vm334, %v1955, 0
    %v1966 = vsel %vm334, %v1956, 0
    %v1969 = vsel %vm334, %v1957, 0
    %v1972 = vsel %vm334, %v1958, 0
    %v1975 = vsel %vm334, %v1959, 0
    %v1978 = vsel %vm334, %v1960, 0
    %v1981 = vsel %vm334, %v1961, 0
    %1983 = vmatprep.subr.bf16.mxu0 0
    %1984 = vmatpush1.bf16.msra.mxu0 %v568
    %1985 = vmatprep.subr.bf16.mxu0 0
    %1986 = vmatpush1.bf16.msra.mxu0 %v569
    %1987 = vmatprep.subr.bf16.mxu0 0
    %1988 = vmatpush1.bf16.msra.mxu0 %v570
    %1989 = vmatprep.subr.bf16.mxu0 0
    %1990 = vmatpush1.bf16.msra.mxu0 %v571
    %1991 = vmatprep.subr.bf16.mxu0 0
    %1992 = vmatpush1.bf16.msra.mxu0 0
    %1993 = vmatprep.subr.bf16.mxu0 0
    %1994 = vmatpush1.bf16.msra.mxu0 0
    %1995 = vmatprep.subr.bf16.mxu0 0
    %1996 = vmatpush1.bf16.msra.mxu0 0
    %1997 = vmatprep.subr.bf16.mxu0 0
    %1998 = vmatpush1.bf16.msra.mxu0 0
    %1999 = vmatprep.subr.bf16.mxu0 0
    %2000 = vmatpush1.bf16.msra.mxu0 0
    %2001 = vmatprep.subr.bf16.mxu0 0
    %2002 = vmatpush1.bf16.msra.mxu0 0
    %2003 = vmatprep.subr.bf16.mxu0 0
    %2004 = vmatpush1.bf16.msra.mxu0 0
    %2005 = vmatprep.subr.bf16.mxu0 0
    %2006 = vmatpush1.bf16.msra.mxu0 0
    %2007 = vmatprep.subr.bf16.mxu0 0
    %2008 = vmatpush1.bf16.msra.mxu0 0
    %2009 = vmatprep.subr.bf16.mxu0 0
    %2010 = vmatpush1.bf16.msra.mxu0 0
    %2011 = vmatprep.subr.bf16.mxu0 0
    %2012 = vmatpush1.bf16.msra.mxu0 0
    %2013 = vmatprep.subr.bf16.mxu0 0
    %2014 = vmatpush1.bf16.msra.mxu0 0
    %2015 = vmatprep.mubr.bf16.mxu0 0
    %2016 = vmatmul.mubr.bf16.gmra.mrb[0].mxu0 %v1963
    %v2017 = vpop.f32.mrb[0].mxu0
    %v2018 = vadd.f32 0.0, %v2017
    %v2019 = vpop.f32.mrb[0].mxu0
    %v2020 = vpop.f32.mrb[0].mxu0
    %v2021 = vadd.f32 0.0, %v2020
    %v2022 = vpop.f32.mrb[0].mxu0
    %2023 = vmatprep.mubr.bf16.mxu0 0
    %2024 = vmatmul.mubr.bf16.gmra.mrb[0].mxu0 %v1966
    %v2025 = vpop.f32.mrb[0].mxu0
    %v2026 = vadd.f32 0.0, %v2025
    %v2027 = vpop.f32.mrb[0].mxu0
    %v2028 = vpop.f32.mrb[0].mxu0
    %v2029 = vadd.f32 0.0, %v2028
    %v2030 = vpop.f32.mrb[0].mxu0
    %2031 = vmatprep.mubr.bf16.mxu0 0
    %2032 = vmatmul.mubr.bf16.gmra.mrb[0].mxu0 %v1969
    %v2033 = vpop.f32.mrb[0].mxu0
    %v2034 = vadd.f32 0.0, %v2033
    %v2035 = vpop.f32.mrb[0].mxu0
    %v2036 = vpop.f32.mrb[0].mxu0
    %v2037 = vadd.f32 0.0, %v2036
    %v2038 = vpop.f32.mrb[0].mxu0
    %2039 = vmatprep.mubr.bf16.mxu0 0
    %2040 = vmatmul.mubr.bf16.gmra.mrb[0].mxu0 %v1972
    %v2041 = vpop.f32.mrb[0].mxu0
    %v2042 = vadd.f32 0.0, %v2041
    %v2043 = vpop.f32.mrb[0].mxu0
    %v2044 = vpop.f32.mrb[0].mxu0
    %v2045 = vadd.f32 0.0, %v2044
    %v2046 = vpop.f32.mrb[0].mxu0
    %2047 = vmatprep.mubr.bf16.mxu0 0
    %2048 = vmatmul.mubr.bf16.gmra.mrb[0].mxu0 %v1975
    %v2049 = vpop.f32.mrb[0].mxu0
    %v2050 = vadd.f32 0.0, %v2049
    %v2051 = vpop.f32.mrb[0].mxu0
    %v2052 = vpop.f32.mrb[0].mxu0
    %v2053 = vadd.f32 0.0, %v2052
    %v2054 = vpop.f32.mrb[0].mxu0
    %2055 = vmatprep.mubr.bf16.mxu0 0
    %2056 = vmatmul.mubr.bf16.gmra.mrb[0].mxu0 %v1978
    %v2057 = vpop.f32.mrb[0].mxu0
    %v2058 = vadd.f32 0.0, %v2057
    %v2059 = vpop.f32.mrb[0].mxu0
    %v2060 = vpop.f32.mrb[0].mxu0
    %v2061 = vadd.f32 0.0, %v2060
    %v2062 = vpop.f32.mrb[0].mxu0
    %2063 = vmatprep.mubr.bf16.mxu0 0
    %2064 = vmatmul.mubr.bf16.gmra.mrb[0].mxu0 %v1981
    %v2065 = vpop.f32.mrb[0].mxu0
    %v2066 = vadd.f32 0.0, %v2065
    %v2067 = vpop.f32.mrb[0].mxu0
    %v2068 = vpop.f32.mrb[0].mxu0
    %v2069 = vadd.f32 0.0, %v2068
    %v2070 = vpop.f32.mrb[0].mxu0
    %2071 = vdwg.mxu0
    %v2072 = vmax.f32 %v2018, %v2026
    %v2073 = vmax.f32 %v2021, %v2029
    %v2074 = vmax.f32 %v2072, %v2034
    %v2075 = vmax.f32 %v2073, %v2037
    %v2076 = vmax.f32 %v2074, %v2042
    %v2077 = vmax.f32 %v2075, %v2045
    %v2078 = vmax.f32 %v2076, %v2050
    %v2079 = vmax.f32 %v2077, %v2053
    %v2080 = vmax.f32 %v2078, %v2058
    %v2081 = vmax.f32 %v2079, %v2061
    %v2082 = vmax.f32 %v2080, %v2066
    %v2083 = vmax.f32 %v2081, %v2069
    %v2084 = vsub.f32 %v2018, %v2082
    %v2085 = vsub.f32 %v2021, %v2083
    %v2086 = vmul.f32 %v2084, 1.442695
    %v2087 = vpow.pop %v2086
    %v2088 = vmul.f32 %v2085, 1.442695
    %v2089 = vpow.pop %v2088
    %v2090 = vadd.f32 %v2087, 0.0
    %v2091 = vadd.f32 %v2089, 0.0
    %v2092 = vmul.f32 %v2087, %v393
    %v2093 = vmul.f32 %v2089, %v397
    %v2094 = vadd.f32 %v2092, 0.0
    %v2095 = vadd.f32 %v2093, 0.0
    %v2096 = vsub.f32 %v2026, %v2082
    %v2097 = vsub.f32 %v2029, %v2083
    %v2098 = vmul.f32 %v2096, 1.442695
    %v2099 = vpow.pop %v2098
    %v2100 = vmul.f32 %v2097, 1.442695
    %v2101 = vpow.pop %v2100
    %v2102 = vadd.f32 %v2090, %v2099
    %v2103 = vadd.f32 %v2091, %v2101
    %v2104 = vmul.f32 %v2099, %v403
    %v2105 = vmul.f32 %v2101, %v407
    %v2106 = vadd.f32 %v2094, %v2104
    %v2107 = vadd.f32 %v2095, %v2105
    %v2108 = vsub.f32 %v2034, %v2082
    %v2109 = vsub.f32 %v2037, %v2083
    %v2110 = vmul.f32 %v2108, 1.442695
    %v2111 = vpow.pop %v2110
    %v2112 = vmul.f32 %v2109, 1.442695
    %v2113 = vpow.pop %v2112
    %v2114 = vadd.f32 %v2102, %v2111
    %v2115 = vadd.f32 %v2103, %v2113
    %v2116 = vmul.f32 %v2111, %v413
    %v2117 = vmul.f32 %v2113, %v417
    %v2118 = vadd.f32 %v2106, %v2116
    %v2119 = vadd.f32 %v2107, %v2117
    %v2120 = vsub.f32 %v2042, %v2082
    %v2121 = vsub.f32 %v2045, %v2083
    %v2122 = vmul.f32 %v2120, 1.442695
    %v2123 = vpow.pop %v2122
    %v2124 = vmul.f32 %v2121, 1.442695
    %v2125 = vpow.pop %v2124
    %v2126 = vadd.f32 %v2114, %v2123
    %v2127 = vadd.f32 %v2115, %v2125
    %v2128 = vmul.f32 %v2123, %v423
    %v2129 = vmul.f32 %v2125, %v427
    %v2130 = vadd.f32 %v2118, %v2128
    %v2131 = vadd.f32 %v2119, %v2129
    %v2132 = vsub.f32 %v2050, %v2082
    %v2133 = vsub.f32 %v2053, %v2083
    %v2134 = vmul.f32 %v2132, 1.442695
    %v2135 = vpow.pop %v2134
    %v2136 = vmul.f32 %v2133, 1.442695
    %v2137 = vpow.pop %v2136
    %v2138 = vadd.f32 %v2126, %v2135
    %v2139 = vadd.f32 %v2127, %v2137
    %v2140 = vmul.f32 %v2135, %v433
    %v2141 = vmul.f32 %v2137, %v437
    %v2142 = vadd.f32 %v2130, %v2140
    %v2143 = vadd.f32 %v2131, %v2141
    %v2144 = vsub.f32 %v2058, %v2082
    %v2145 = vsub.f32 %v2061, %v2083
    %v2146 = vmul.f32 %v2144, 1.442695
    %v2147 = vpow.pop %v2146
    %v2148 = vmul.f32 %v2145, 1.442695
    %v2149 = vpow.pop %v2148
    %v2150 = vadd.f32 %v2138, %v2147
    %v2151 = vadd.f32 %v2139, %v2149
    %v2152 = vmul.f32 %v2147, %v443
    %v2153 = vmul.f32 %v2149, %v447
    %v2154 = vadd.f32 %v2142, %v2152
    %v2155 = vadd.f32 %v2143, %v2153
    %v2156 = vsub.f32 %v2066, %v2082
    %v2157 = vsub.f32 %v2069, %v2083
    %v2158 = vmul.f32 %v2156, 1.442695
    %v2159 = vpow.pop %v2158
    %v2160 = vmul.f32 %v2157, 1.442695
    %v2161 = vpow.pop %v2160
    %v2162 = vadd.f32 %v2150, %v2159
    %v2163 = vadd.f32 %v2151, %v2161
    %v2164 = vmul.f32 %v2159, %v453
    %v2165 = vmul.f32 %v2161, %v457
    %v2166 = vadd.f32 %v2154, %v2164
    %v2167 = vadd.f32 %v2155, %v2165
    %v2168 = vrcp.pop %v2162
    %v2169 = vrcp.pop %v2163
    %v2170 = vmul.f32 %v2166, %v2168
    %v2171 = vmul.f32 %v2167, %v2169
    %v2172 = vpack.c.bf16 %v785, %v784
    %v2173 = vpack.c.bf16 %v1016, %v1015
    %v2174 = vpack.c.bf16 %v1247, %v1246
    %v2175 = vpack.c.bf16 %v1478, %v1477
    %v2176 = vpack.c.bf16 %v1709, %v1708
    %v2177 = vpack.c.bf16 %v1940, %v1939
    %v2178 = vpack.c.bf16 %v2171, %v2170
    %v2179 = vlaneseq
    %v2180 = vshrl.u32 %v2179, 7
    %v2181 = vsub.s32 1, %v2180
    %v2182 = vrot.slane %v225, %v2181
    %v2191 = vunpack.c.l.b16 %v467
    %v2192 = vunpack.c.l.b16 %v468
    %v2193 = vunpack.c.l.b16 %v469
    %v2194 = vunpack.c.l.b16 %v470
    %v2195 = vunpack.c.l.b16 %v471
    %v2196 = vunpack.c.l.b16 %v472
    %v2197 = vunpack.c.l.b16 %v473
    %v2198 = vunpack.c.l.b16 %v474
    %v2199 = vpack.c.b16 %v2192, %v2191
    %v2200 = vpack.c.b16 %v2194, %v2193
    %v2201 = vpack.c.b16 %v2196, %v2195
    %v2202 = vpack.c.b16 %v2198, %v2197
    %v2208 = vsel %vm334, %v2172, 0
    %v2211 = vsel %vm334, %v2173, 0
    %v2214 = vsel %vm334, %v2174, 0
    %v2217 = vsel %vm334, %v2175, 0
    %v2220 = vsel %vm334, %v2176, 0
    %v2223 = vsel %vm334, %v2177, 0
    %v2226 = vsel %vm334, %v2178, 0
    %2228 = vmatprep.subr.bf16.mxu0 0
    %2229 = vmatpush1.bf16.msra.mxu0 %v2199
    %2230 = vmatprep.subr.bf16.mxu0 0
    %2231 = vmatpush1.bf16.msra.mxu0 %v2200
    %2232 = vmatprep.subr.bf16.mxu0 0
    %2233 = vmatpush1.bf16.msra.mxu0 %v2201
    %2234 = vmatprep.subr.bf16.mxu0 0
    %2235 = vmatpush1.bf16.msra.mxu0 %v2202
    %2236 = vmatprep.subr.bf16.mxu0 0
    %2237 = vmatpush1.bf16.msra.mxu0 0
    %2238 = vmatprep.subr.bf16.mxu0 0
    %2239 = vmatpush1.bf16.msra.mxu0 0
    %2240 = vmatprep.subr.bf16.mxu0 0
    %2241 = vmatpush1.bf16.msra.mxu0 0
    %2242 = vmatprep.subr.bf16.mxu0 0
    %2243 = vmatpush1.bf16.msra.mxu0 0
    %2244 = vmatprep.subr.bf16.mxu0 0
    %2245 = vmatpush1.bf16.msra.mxu0 0
    %2246 = vmatprep.subr.bf16.mxu0 0
    %2247 = vmatpush1.bf16.msra.mxu0 0
    %2248 = vmatprep.subr.bf16.mxu0 0
    %2249 = vmatpush1.bf16.msra.mxu0 0
    %2250 = vmatprep.subr.bf16.mxu0 0
    %2251 = vmatpush1.bf16.msra.mxu0 0
    %2252 = vmatprep.subr.bf16.mxu0 0
    %2253 = vmatpush1.bf16.msra.mxu0 0
    %2254 = vmatprep.subr.bf16.mxu0 0
    %2255 = vmatpush1.bf16.msra.mxu0 0
    %2256 = vmatprep.subr.bf16.mxu0 0
    %2257 = vmatpush1.bf16.msra.mxu0 0
    %2258 = vmatprep.subr.bf16.mxu0 0
    %2259 = vmatpush1.bf16.msra.mxu0 0
    %2260 = vmatprep.mubr.bf16.mxu0 0
    %2261 = vmatmul.mubr.bf16.gmra.mrb[0].mxu0 %v2208
    %v2262 = vpop.f32.mrb[0].mxu0
    %v2263 = vadd.f32 %v2182, %v2262
    %v2264 = vpop.f32.mrb[0].mxu0
    %v2265 = vpop.f32.mrb[0].mxu0
    %v2266 = vadd.f32 %v2182, %v2265
    %v2267 = vpop.f32.mrb[0].mxu0
    %2268 = vmatprep.mubr.bf16.mxu0 0
    %2269 = vmatmul.mubr.bf16.gmra.mrb[0].mxu0 %v2211
    %v2270 = vpop.f32.mrb[0].mxu0
    %v2271 = vadd.f32 %v2182, %v2270
    %v2272 = vpop.f32.mrb[0].mxu0
    %v2273 = vpop.f32.mrb[0].mxu0
    %v2274 = vadd.f32 %v2182, %v2273
    %v2275 = vpop.f32.mrb[0].mxu0
    %2276 = vmatprep.mubr.bf16.mxu0 0
    %2277 = vmatmul.mubr.bf16.gmra.mrb[0].mxu0 %v2214
    %v2278 = vpop.f32.mrb[0].mxu0
    %v2279 = vadd.f32 %v2182, %v2278
    %v2280 = vpop.f32.mrb[0].mxu0
    %v2281 = vpop.f32.mrb[0].mxu0
    %v2282 = vadd.f32 %v2182, %v2281
    %v2283 = vpop.f32.mrb[0].mxu0
    %2284 = vmatprep.mubr.bf16.mxu0 0
    %2285 = vmatmul.mubr.bf16.gmra.mrb[0].mxu0 %v2217
    %v2286 = vpop.f32.mrb[0].mxu0
    %v2287 = vadd.f32 %v2182, %v2286
    %v2288 = vpop.f32.mrb[0].mxu0
    %v2289 = vpop.f32.mrb[0].mxu0
    %v2290 = vadd.f32 %v2182, %v2289
    %v2291 = vpop.f32.mrb[0].mxu0
    %2292 = vmatprep.mubr.bf16.mxu0 0
    %2293 = vmatmul.mubr.bf16.gmra.mrb[0].mxu0 %v2220
    %v2294 = vpop.f32.mrb[0].mxu0
    %v2295 = vadd.f32 %v2182, %v2294
    %v2296 = vpop.f32.mrb[0].mxu0
    %v2297 = vpop.f32.mrb[0].mxu0
    %v2298 = vadd.f32 %v2182, %v2297
    %v2299 = vpop.f32.mrb[0].mxu0
    %2300 = vmatprep.mubr.bf16.mxu0 0
    %2301 = vmatmul.mubr.bf16.gmra.mrb[0].mxu0 %v2223
    %v2302 = vpop.f32.mrb[0].mxu0
    %v2303 = vadd.f32 %v2182, %v2302
    %v2304 = vpop.f32.mrb[0].mxu0
    %v2305 = vpop.f32.mrb[0].mxu0
    %v2306 = vadd.f32 %v2182, %v2305
    %v2307 = vpop.f32.mrb[0].mxu0
    %2308 = vmatprep.mubr.bf16.mxu0 0
    %2309 = vmatmul.mubr.bf16.gmra.mrb[0].mxu0 %v2226
    %v2310 = vpop.f32.mrb[0].mxu0
    %v2311 = vadd.f32 %v2182, %v2310
    %v2312 = vpop.f32.mrb[0].mxu0
    %v2313 = vpop.f32.mrb[0].mxu0
    %v2314 = vadd.f32 %v2182, %v2313
    %v2315 = vpop.f32.mrb[0].mxu0
    %2316 = vdwg.mxu0
    %v2317 = vunpack.c.l.bf16 %v229
    %v2318 = vunpack.c.l.bf16 %v230
    %v2319 = vunpack.c.l.bf16 %v231
    %v2320 = vunpack.c.l.bf16 %v232
    %v2321 = vunpack.c.l.bf16 %v233
    %v2322 = vunpack.c.l.bf16 %v234
    %v2323 = vunpack.c.l.bf16 %v235
    %v2324 = vunpack.c.l.bf16 %v236
    %v2325 = vunpack.c.l.bf16 %v237
    %v2326 = vunpack.c.l.bf16 %v238
    %v2327 = vunpack.c.l.bf16 %v239
    %v2328 = vunpack.c.l.bf16 %v240
    %v2329 = vunpack.c.l.bf16 %v241
    %v2330 = vunpack.c.l.bf16 %v242
    %v2331 = vadd.f32 %v2317, %v2263
    %v2332 = vadd.f32 %v2318, %v2266
    %v2333 = vadd.f32 %v2319, %v2271
    %v2334 = vadd.f32 %v2320, %v2274
    %v2335 = vadd.f32 %v2321, %v2279
    %v2336 = vadd.f32 %v2322, %v2282
    %v2337 = vadd.f32 %v2323, %v2287
    %v2338 = vadd.f32 %v2324, %v2290
    %v2339 = vadd.f32 %v2325, %v2295
    %v2340 = vadd.f32 %v2326, %v2298
    %v2341 = vadd.f32 %v2327, %v2303
    %v2342 = vadd.f32 %v2328, %v2306
    %v2343 = vadd.f32 %v2329, %v2311
    %v2344 = vadd.f32 %v2330, %v2314
    %v2345 = vsel %vm334, %v2331, 0.0
    %2346 = vadd.xlane.f32.xlu0 %v2345
    %v2347 = vpop.xlane.xlu0 %2346
    %v2348 = vsel %vm334, %v2332, 0.0
    %2349 = vadd.xlane.f32.xlu0 %v2348
    %v2350 = vpop.xlane.xlu0 %2349
    %v2351 = vsel %vm334, %v2333, 0.0
    %2352 = vadd.xlane.f32.xlu0 %v2351
    %v2353 = vpop.xlane.xlu0 %2352
    %v2354 = vsel %vm334, %v2334, 0.0
    %2355 = vadd.xlane.f32.xlu0 %v2354
    %v2356 = vpop.xlane.xlu0 %2355
    %v2357 = vsel %vm334, %v2335, 0.0
    %2358 = vadd.xlane.f32.xlu0 %v2357
    %v2359 = vpop.xlane.xlu0 %2358
    %v2360 = vsel %vm334, %v2336, 0.0
    %2361 = vadd.xlane.f32.xlu0 %v2360
    %v2362 = vpop.xlane.xlu0 %2361
    %v2363 = vsel %vm334, %v2337, 0.0
    %2364 = vadd.xlane.f32.xlu0 %v2363
    %v2365 = vpop.xlane.xlu0 %2364
    %v2366 = vsel %vm334, %v2338, 0.0
    %2367 = vadd.xlane.f32.xlu0 %v2366
    %v2368 = vpop.xlane.xlu0 %2367
    %v2369 = vsel %vm334, %v2339, 0.0
    %2370 = vadd.xlane.f32.xlu0 %v2369
    %v2371 = vpop.xlane.xlu0 %2370
    %v2372 = vsel %vm334, %v2340, 0.0
    %2373 = vadd.xlane.f32.xlu0 %v2372
    %v2374 = vpop.xlane.xlu0 %2373
    %v2375 = vsel %vm334, %v2341, 0.0
    %2376 = vadd.xlane.f32.xlu0 %v2375
    %v2377 = vpop.xlane.xlu0 %2376
    %v2378 = vsel %vm334, %v2342, 0.0
    %2379 = vadd.xlane.f32.xlu0 %v2378
    %v2380 = vpop.xlane.xlu0 %2379
    %v2381 = vsel %vm334, %v2343, 0.0
    %2382 = vadd.xlane.f32.xlu0 %v2381
    %v2383 = vpop.xlane.xlu0 %2382
    %v2384 = vsel %vm334, %v2344, 0.0
    %2385 = vadd.xlane.f32.xlu0 %v2384
    %v2386 = vpop.xlane.xlu0 %2385
    %v2387 = vrcp.pop 64.0
    %v2388 = vmul.f32 %v2347, %v2387
    %v2389 = vmul.f32 %v2350, %v2387
    %v2390 = vmul.f32 %v2353, %v2387
    %v2391 = vmul.f32 %v2356, %v2387
    %v2392 = vmul.f32 %v2359, %v2387
    %v2393 = vmul.f32 %v2362, %v2387
    %v2394 = vmul.f32 %v2365, %v2387
    %v2395 = vmul.f32 %v2368, %v2387
    %v2396 = vmul.f32 %v2371, %v2387
    %v2397 = vmul.f32 %v2374, %v2387
    %v2398 = vmul.f32 %v2377, %v2387
    %v2399 = vmul.f32 %v2380, %v2387
    %v2400 = vmul.f32 %v2383, %v2387
    %v2401 = vmul.f32 %v2386, %v2387
    %v2402 = vsub.f32 %v2331, %v2388
    %v2403 = vsub.f32 %v2332, %v2389
    %v2404 = vsub.f32 %v2333, %v2390
    %v2405 = vsub.f32 %v2334, %v2391
    %v2406 = vsub.f32 %v2335, %v2392
    %v2407 = vsub.f32 %v2336, %v2393
    %v2408 = vsub.f32 %v2337, %v2394
    %v2409 = vsub.f32 %v2338, %v2395
    %v2410 = vsub.f32 %v2339, %v2396
    %v2411 = vsub.f32 %v2340, %v2397
    %v2412 = vsub.f32 %v2341, %v2398
    %v2413 = vsub.f32 %v2342, %v2399
    %v2414 = vsub.f32 %v2343, %v2400
    %v2415 = vsub.f32 %v2344, %v2401
    %v2416 = vmul.f32 %v2402, %v2402
    %v2417 = vmul.f32 %v2403, %v2403
    %v2418 = vmul.f32 %v2404, %v2404
    %v2419 = vmul.f32 %v2405, %v2405
    %v2420 = vmul.f32 %v2406, %v2406
    %v2421 = vmul.f32 %v2407, %v2407
    %v2422 = vmul.f32 %v2408, %v2408
    %v2423 = vmul.f32 %v2409, %v2409
    %v2424 = vmul.f32 %v2410, %v2410
    %v2425 = vmul.f32 %v2411, %v2411
    %v2426 = vmul.f32 %v2412, %v2412
    %v2427 = vmul.f32 %v2413, %v2413
    %v2428 = vmul.f32 %v2414, %v2414
    %v2429 = vmul.f32 %v2415, %v2415
    %v2430 = vsel %vm334, %v2416, 0.0
    %2431 = vadd.xlane.f32.xlu0 %v2430
    %v2432 = vpop.xlane.xlu0 %2431
    %v2433 = vsel %vm334, %v2417, 0.0
    %2434 = vadd.xlane.f32.xlu0 %v2433
    %v2435 = vpop.xlane.xlu0 %2434
    %v2436 = vsel %vm334, %v2418, 0.0
    %2437 = vadd.xlane.f32.xlu0 %v2436
    %v2438 = vpop.xlane.xlu0 %2437
    %v2439 = vsel %vm334, %v2419, 0.0
    %2440 = vadd.xlane.f32.xlu0 %v2439
    %v2441 = vpop.xlane.xlu0 %2440
    %v2442 = vsel %vm334, %v2420, 0.0
    %2443 = vadd.xlane.f32.xlu0 %v2442
    %v2444 = vpop.xlane.xlu0 %2443
    %v2445 = vsel %vm334, %v2421, 0.0
    %2446 = vadd.xlane.f32.xlu0 %v2445
    %v2447 = vpop.xlane.xlu0 %2446
    %v2448 = vsel %vm334, %v2422, 0.0
    %2449 = vadd.xlane.f32.xlu0 %v2448
    %v2450 = vpop.xlane.xlu0 %2449
    %v2451 = vsel %vm334, %v2423, 0.0
    %2452 = vadd.xlane.f32.xlu0 %v2451
    %v2453 = vpop.xlane.xlu0 %2452
    %v2454 = vsel %vm334, %v2424, 0.0
    %2455 = vadd.xlane.f32.xlu0 %v2454
    %v2456 = vpop.xlane.xlu0 %2455
    %v2457 = vsel %vm334, %v2425, 0.0
    %2458 = vadd.xlane.f32.xlu0 %v2457
    %v2459 = vpop.xlane.xlu0 %2458
    %v2460 = vsel %vm334, %v2426, 0.0
    %2461 = vadd.xlane.f32.xlu0 %v2460
    %v2462 = vpop.xlane.xlu0 %2461
    %v2463 = vsel %vm334, %v2427, 0.0
    %2464 = vadd.xlane.f32.xlu0 %v2463
    %v2465 = vpop.xlane.xlu0 %2464
    %v2466 = vsel %vm334, %v2428, 0.0
    %2467 = vadd.xlane.f32.xlu0 %v2466
    %v2468 = vpop.xlane.xlu0 %2467
    %v2469 = vsel %vm334, %v2429, 0.0
    %2470 = vadd.xlane.f32.xlu0 %v2469
    %v2471 = vpop.xlane.xlu0 %2470
    %v2472 = vmul.f32 %v2432, %v2387
    %v2473 = vmul.f32 %v2435, %v2387
    %v2474 = vmul.f32 %v2438, %v2387
    %v2475 = vmul.f32 %v2441, %v2387
    %v2476 = vmul.f32 %v2444, %v2387
    %v2477 = vmul.f32 %v2447, %v2387
    %v2478 = vmul.f32 %v2450, %v2387
    %v2479 = vmul.f32 %v2453, %v2387
    %v2480 = vmul.f32 %v2456, %v2387
    %v2481 = vmul.f32 %v2459, %v2387
    %v2482 = vmul.f32 %v2462, %v2387
    %v2483 = vmul.f32 %v2465, %v2387
    %v2484 = vmul.f32 %v2468, %v2387
    %v2485 = vmul.f32 %v2471, %v2387
    %v2486 = vadd.f32 %v2472, 1e-05
    %v2487 = vadd.f32 %v2473, 1e-05
    %v2488 = vadd.f32 %v2474, 1e-05
    %v2489 = vadd.f32 %v2475, 1e-05
    %v2490 = vadd.f32 %v2476, 1e-05
    %v2491 = vadd.f32 %v2477, 1e-05
    %v2492 = vadd.f32 %v2478, 1e-05
    %v2493 = vadd.f32 %v2479, 1e-05
    %v2494 = vadd.f32 %v2480, 1e-05
    %v2495 = vadd.f32 %v2481, 1e-05
    %v2496 = vadd.f32 %v2482, 1e-05
    %v2497 = vadd.f32 %v2483, 1e-05
    %v2498 = vadd.f32 %v2484, 1e-05
    %v2499 = vadd.f32 %v2485, 1e-05
    %v2500 = vrsqrt.pop %v2486
    %v2501 = vrsqrt.pop %v2487
    %v2502 = vrsqrt.pop %v2488
    %v2503 = vrsqrt.pop %v2489
    %v2504 = vrsqrt.pop %v2490
    %v2505 = vrsqrt.pop %v2491
    %v2506 = vrsqrt.pop %v2492
    %v2507 = vrsqrt.pop %v2493
    %v2508 = vrsqrt.pop %v2494
    %v2509 = vrsqrt.pop %v2495
    %v2510 = vrsqrt.pop %v2496
    %v2511 = vrsqrt.pop %v2497
    %v2512 = vrsqrt.pop %v2498
    %v2513 = vrsqrt.pop %v2499
    %v2514 = vmul.f32 %v2402, %v2500
    %v2515 = vmul.f32 %v2403, %v2501
    %v2516 = vmul.f32 %v2404, %v2502
    %v2517 = vmul.f32 %v2405, %v2503
    %v2518 = vmul.f32 %v2406, %v2504
    %v2519 = vmul.f32 %v2407, %v2505
    %v2520 = vmul.f32 %v2408, %v2506
    %v2521 = vmul.f32 %v2409, %v2507
    %v2522 = vmul.f32 %v2410, %v2508
    %v2523 = vmul.f32 %v2411, %v2509
    %v2524 = vmul.f32 %v2412, %v2510
    %v2525 = vmul.f32 %v2413, %v2511
    %v2526 = vmul.f32 %v2414, %v2512
    %v2527 = vmul.f32 %v2415, %v2513
    %v2528 = vlaneseq
    %v2529 = vshrl.u32 %v2528, 7
    %v2530 = vsub.s32 2, %v2529
    %v2531 = vrot.slane %v225, %v2530
    %v2532 = vmul.f32 %v2514, %v2531
    %v2533 = vmul.f32 %v2515, %v2531
    %v2534 = vmul.f32 %v2516, %v2531
    %v2535 = vmul.f32 %v2517, %v2531
    %v2536 = vmul.f32 %v2518, %v2531
    %v2537 = vmul.f32 %v2519, %v2531
    %v2538 = vmul.f32 %v2520, %v2531
    %v2539 = vmul.f32 %v2521, %v2531
    %v2540 = vmul.f32 %v2522, %v2531
    %v2541 = vmul.f32 %v2523, %v2531
    %v2542 = vmul.f32 %v2524, %v2531
    %v2543 = vmul.f32 %v2525, %v2531
    %v2544 = vmul.f32 %v2526, %v2531
    %v2545 = vmul.f32 %v2527, %v2531
    %v2546 = vlaneseq
    %v2547 = vshrl.u32 %v2546, 7
    %v2548 = vsub.s32 3, %v2547
    %v2549 = vrot.slane %v225, %v2548
    %v2550 = vadd.f32 %v2532, %v2549
    %v2551 = vadd.f32 %v2533, %v2549
    %v2552 = vadd.f32 %v2534, %v2549
    %v2553 = vadd.f32 %v2535, %v2549
    %v2554 = vadd.f32 %v2536, %v2549
    %v2555 = vadd.f32 %v2537, %v2549
    %v2556 = vadd.f32 %v2538, %v2549
    %v2557 = vadd.f32 %v2539, %v2549
    %v2558 = vadd.f32 %v2540, %v2549
    %v2559 = vadd.f32 %v2541, %v2549
    %v2560 = vadd.f32 %v2542, %v2549
    %v2561 = vadd.f32 %v2543, %v2549
    %v2562 = vadd.f32 %v2544, %v2549
    %v2563 = vadd.f32 %v2545, %v2549
    %v2564 = vld [vmem:[#allocation5] sm:$0xff]
    %v2565 = vld [vmem:[#allocation5 + $0x8] sm:$0xff]
    %v2566 = vld [vmem:[#allocation13] sm:$0xff]
    %v2567 = vld [vmem:[#allocation13 + $0x8] sm:$0xf]
    %v2568 = vld [vmem:[#allocation13 + $0xc] sm:$0xff]
    %v2569 = vld [vmem:[#allocation13 + $0x14] sm:$0xf]
    %v2570 = vld [vmem:[#allocation13 + $0x18] sm:$0xff]
    %v2571 = vld [vmem:[#allocation13 + $0x20] sm:$0xf]
    %v2572 = vld [vmem:[#allocation13 + $0x24] sm:$0xff]
    %v2573 = vld [vmem:[#allocation13 + $0x2c] sm:$0xf]
    %v2574 = vld [vmem:[#allocation13 + $0x30] sm:$0xff]
    %v2575 = vld [vmem:[#allocation13 + $0x38] sm:$0xf]
    %v2576 = vld [vmem:[#allocation13 + $0x3c] sm:$0xff]
    %v2577 = vld [vmem:[#allocation13 + $0x44] sm:$0xf]
    %v2578 = vld [vmem:[#allocation13 + $0x48] sm:$0xff]
    %v2579 = vld [vmem:[#allocation13 + $0x50] sm:$0xf]
    %v2580 = vld [vmem:[#allocation13 + $0x54] sm:$0xff]
    %v2581 = vld [vmem:[#allocation13 + $0x5c] sm:$0xf]
    %v2582 = vld [vmem:[#allocation13 + $0x60] sm:$0xff]
    %v2583 = vld [vmem:[#allocation13 + $0x68] sm:$0xf]
    %v2584 = vld [vmem:[#allocation13 + $0x6c] sm:$0xff]
    %v2585 = vld [vmem:[#allocation13 + $0x74] sm:$0xf]
    %v2586 = vld [vmem:[#allocation13 + $0x78] sm:$0xff]
    %v2587 = vld [vmem:[#allocation13 + $0x80] sm:$0xf]
    %v2588 = vld [vmem:[#allocation13 + $0x84] sm:$0xff]
    %v2589 = vld [vmem:[#allocation13 + $0x8c] sm:$0xf]
    %v2590 = vld [vmem:[#allocation13 + $0x90] sm:$0xff]
    %v2591 = vld [vmem:[#allocation13 + $0x98] sm:$0xf]
    %v2592 = vld [vmem:[#allocation13 + $0x9c] sm:$0xff]
    %v2593 = vld [vmem:[#allocation13 + $0xa4] sm:$0xf]
    %v2594 = vld [vmem:[#allocation13 + $0xa8] sm:$0xff]
    %v2595 = vld [vmem:[#allocation13 + $0xb0] sm:$0xf]
    %v2596 = vld [vmem:[#allocation13 + $0xb4] sm:$0xff]
    %v2597 = vld [vmem:[#allocation13 + $0xbc] sm:$0xf]
    %v2598 = vpack.c.bf16 %v2565, %v2564
    %v2599 = vlaneseq
    %v2600 = vshrl.u32 %v2599, 7
    %v2601 = vsub.s32 4, %v2600
    %v2602 = vrot.slane %v225, %v2601
    %v2603 = vlaneseq
    %v2604 = vshrl.u32 %v2603, 7
    %v2605 = vsub.s32 4, %v2604
    %v2606 = vrot.slane %v226, %v2605
    %v2607 = vlaneseq
    %v2608 = vshrl.u32 %v2607, 7
    %v2609 = vsub.s32 4, %v2608
    %v2610 = vrot.slane %v227, %v2609
    %v2643 = vunpack.c.l.b16 %v2566
    %v2644 = vunpack.c.h.b16 %v2566
    %v2645 = vunpack.c.l.b16 %v2567
    %v2646 = vunpack.c.l.b16 %v2568
    %v2647 = vunpack.c.h.b16 %v2568
    %v2648 = vunpack.c.l.b16 %v2569
    %v2649 = vunpack.c.l.b16 %v2570
    %v2650 = vunpack.c.h.b16 %v2570
    %v2651 = vunpack.c.l.b16 %v2571
    %v2652 = vunpack.c.l.b16 %v2572
    %v2653 = vunpack.c.h.b16 %v2572
    %v2654 = vunpack.c.l.b16 %v2573
    %v2655 = vunpack.c.l.b16 %v2574
    %v2656 = vunpack.c.h.b16 %v2574
    %v2657 = vunpack.c.l.b16 %v2575
    %v2658 = vunpack.c.l.b16 %v2576
    %v2659 = vunpack.c.h.b16 %v2576
    %v2660 = vunpack.c.l.b16 %v2577
    %v2661 = vunpack.c.l.b16 %v2578
    %v2662 = vunpack.c.h.b16 %v2578
    %v2663 = vunpack.c.l.b16 %v2579
    %v2664 = vunpack.c.l.b16 %v2580
    %v2665 = vunpack.c.h.b16 %v2580
    %v2666 = vunpack.c.l.b16 %v2581
    %v2667 = vunpack.c.l.b16 %v2582
    %v2668 = vunpack.c.h.b16 %v2582
    %v2669 = vunpack.c.l.b16 %v2583
    %v2670 = vunpack.c.l.b16 %v2584
    %v2671 = vunpack.c.h.b16 %v2584
    %v2672 = vunpack.c.l.b16 %v2585
    %v2673 = vunpack.c.l.b16 %v2586
    %v2674 = vunpack.c.h.b16 %v2586
    %v2675 = vunpack.c.l.b16 %v2587
    %v2676 = vunpack.c.l.b16 %v2588
    %v2677 = vunpack.c.h.b16 %v2588
    %v2678 = vunpack.c.l.b16 %v2589
    %v2679 = vunpack.c.l.b16 %v2590
    %v2680 = vunpack.c.h.b16 %v2590
    %v2681 = vunpack.c.l.b16 %v2591
    %v2682 = vunpack.c.l.b16 %v2592
    %v2683 = vunpack.c.h.b16 %v2592
    %v2684 = vunpack.c.l.b16 %v2593
    %v2685 = vunpack.c.l.b16 %v2594
    %v2686 = vunpack.c.h.b16 %v2594
    %v2687 = vunpack.c.l.b16 %v2595
    %v2688 = vunpack.c.l.b16 %v2596
    %v2689 = vunpack.c.h.b16 %v2596
    %v2690 = vunpack.c.l.b16 %v2597
    %v2691 = vpack.c.b16 %v2646, %v2643
    %v2692 = vpack.c.b16 %v2647, %v2644
    %v2693 = vpack.c.b16 %v2648, %v2645
    %v2694 = vpack.c.b16 %v2652, %v2649
    %v2695 = vpack.c.b16 %v2653, %v2650
    %v2696 = vpack.c.b16 %v2654, %v2651
    %v2697 = vpack.c.b16 %v2658, %v2655
    %v2698 = vpack.c.b16 %v2659, %v2656
    %v2699 = vpack.c.b16 %v2660, %v2657
    %v2700 = vpack.c.b16 %v2664, %v2661
    %v2701 = vpack.c.b16 %v2665, %v2662
    %v2702 = vpack.c.b16 %v2666, %v2663
    %v2703 = vpack.c.b16 %v2670, %v2667
    %v2704 = vpack.c.b16 %v2671, %v2668
    %v2705 = vpack.c.b16 %v2672, %v2669
    %v2706 = vpack.c.b16 %v2676, %v2673
    %v2707 = vpack.c.b16 %v2677, %v2674
    %v2708 = vpack.c.b16 %v2678, %v2675
    %v2709 = vpack.c.b16 %v2682, %v2679
    %v2710 = vpack.c.b16 %v2683, %v2680
    %v2711 = vpack.c.b16 %v2684, %v2681
    %v2712 = vpack.c.b16 %v2688, %v2685
    %v2713 = vpack.c.b16 %v2689, %v2686
    %v2714 = vpack.c.b16 %v2690, %v2687
    %2739 = vmatprep.subr.bf16.mxu0 %v2692
    %2740 = vmatpush1.bf16.msra.mxu0 %v2691
    %2741 = vmatprep.subr.bf16.mxu0 %v2695
    %2742 = vmatpush1.bf16.msra.mxu0 %v2694
    %2743 = vmatprep.subr.bf16.mxu0 %v2698
    %2744 = vmatpush1.bf16.msra.mxu0 %v2697
    %2745 = vmatprep.subr.bf16.mxu0 %v2701
    %2746 = vmatpush1.bf16.msra.mxu0 %v2700
    %2747 = vmatprep.subr.bf16.mxu0 %v2704
    %2748 = vmatpush1.bf16.msra.mxu0 %v2703
    %2749 = vmatprep.subr.bf16.mxu0 %v2707
    %2750 = vmatpush1.bf16.msra.mxu0 %v2706
    %2751 = vmatprep.subr.bf16.mxu0 %v2710
    %2752 = vmatpush1.bf16.msra.mxu0 %v2709
    %2753 = vmatprep.subr.bf16.mxu0 %v2713
    %2754 = vmatpush1.bf16.msra.mxu0 %v2712
    %2755 = vmatprep.subr.bf16.mxu0 0
    %2756 = vmatpush1.bf16.msra.mxu0 0
    %2757 = vmatprep.subr.bf16.mxu0 0
    %2758 = vmatpush1.bf16.msra.mxu0 0
    %2759 = vmatprep.subr.bf16.mxu0 0
    %2760 = vmatpush1.bf16.msra.mxu0 0
    %2761 = vmatprep.subr.bf16.mxu0 0
    %2762 = vmatpush1.bf16.msra.mxu0 0
    %2763 = vmatprep.subr.bf16.mxu0 0
    %2764 = vmatpush1.bf16.msra.mxu0 0
    %2765 = vmatprep.subr.bf16.mxu0 0
    %2766 = vmatpush1.bf16.msra.mxu0 0
    %2767 = vmatprep.subr.bf16.mxu0 0
    %2768 = vmatpush1.bf16.msra.mxu0 0
    %2769 = vmatprep.subr.bf16.mxu0 0
    %2770 = vmatpush1.bf16.msra.mxu0 0
    %2771 = vmatprep.mubr.bf16.mxu0 0
    %2772 = vmatmul.mubr.bf16.gmra.mrb[0].mxu0 %v2598
    %v2773 = vpop.f32.mrb[0].mxu0
    %v2774 = vadd.f32 %v2602, %v2773
    %v2775 = vpop.f32.mrb[0].mxu0
    %v2776 = vadd.f32 %v2606, %v2775
    %v2777 = vpop.f32.mrb[0].mxu0
    %v2778 = vadd.f32 %v2602, %v2777
    %v2779 = vpop.f32.mrb[0].mxu0
    %v2780 = vadd.f32 %v2606, %v2779
    %2781 = vdwg.mxu0
    %2782 = vmatprep.subr.bf16.mxu0 0
    %2783 = vmatpush1.bf16.msra.mxu0 %v2693
    %2784 = vmatprep.subr.bf16.mxu0 0
    %2785 = vmatpush1.bf16.msra.mxu0 %v2696
    %2786 = vmatprep.subr.bf16.mxu0 0
    %2787 = vmatpush1.bf16.msra.mxu0 %v2699
    %2788 = vmatprep.subr.bf16.mxu0 0
    %2789 = vmatpush1.bf16.msra.mxu0 %v2702
    %2790 = vmatprep.subr.bf16.mxu0 0
    %2791 = vmatpush1.bf16.msra.mxu0 %v2705
    %2792 = vmatprep.subr.bf16.mxu0 0
    %2793 = vmatpush1.bf16.msra.mxu0 %v2708
    %2794 = vmatprep.subr.bf16.mxu0 0
    %2795 = vmatpush1.bf16.msra.mxu0 %v2711
    %2796 = vmatprep.subr.bf16.mxu0 0
    %2797 = vmatpush1.bf16.msra.mxu0 %v2714
    %2798 = vmatprep.subr.bf16.mxu0 0
    %2799 = vmatpush1.bf16.msra.mxu0 0
    %2800 = vmatprep.subr.bf16.mxu0 0
    %2801 = vmatpush1.bf16.msra.mxu0 0
    %2802 = vmatprep.subr.bf16.mxu0 0
    %2803 = vmatpush1.bf16.msra.mxu0 0
    %2804 = vmatprep.subr.bf16.mxu0 0
    %2805 = vmatpush1.bf16.msra.mxu0 0
    %2806 = vmatprep.subr.bf16.mxu0 0
    %2807 = vmatpush1.bf16.msra.mxu0 0
    %2808 = vmatprep.subr.bf16.mxu0 0
    %2809 = vmatpush1.bf16.msra.mxu0 0
    %2810 = vmatprep.subr.bf16.mxu0 0
    %2811 = vmatpush1.bf16.msra.mxu0 0
    %2812 = vmatprep.subr.bf16.mxu0 0
    %2813 = vmatpush1.bf16.msra.mxu0 0
    %2814 = vmatprep.mubr.bf16.mxu0 0
    %2815 = vmatmul.mubr.bf16.gmra.mrb[0].mxu0 %v2598
    %v2816 = vpop.f32.mrb[0].mxu0
    %v2817 = vadd.f32 %v2610, %v2816
    %v2818 = vpop.f32.mrb[0].mxu0
    %v2819 = vpop.f32.mrb[0].mxu0
    %v2820 = vadd.f32 %v2610, %v2819
    %v2821 = vpop.f32.mrb[0].mxu0
    %2822 = vdwg.mxu0
    %v2823 = vld [vmem:[#allocation11] sm:$0xff]
    %v2824 = vld [vmem:[#allocation11 + $0x8] sm:$0xf]
    %v2825 = vld [vmem:[#allocation11 + $0xc] sm:$0xff]
    %v2826 = vld [vmem:[#allocation11 + $0x14] sm:$0xf]
    %v2827 = vld [vmem:[#allocation11 + $0x18] sm:$0xff]
    %v2828 = vld [vmem:[#allocation11 + $0x20] sm:$0xf]
    %v2829 = vld [vmem:[#allocation11 + $0x24] sm:$0xff]
    %v2830 = vld [vmem:[#allocation11 + $0x2c] sm:$0xf]
    %v2831 = vld [vmem:[#allocation11 + $0x30] sm:$0xff]
    %v2832 = vld [vmem:[#allocation11 + $0x38] sm:$0xf]
    %v2833 = vld [vmem:[#allocation11 + $0x3c] sm:$0xff]
    %v2834 = vld [vmem:[#allocation11 + $0x44] sm:$0xf]
    %v2835 = vld [vmem:[#allocation11 + $0x48] sm:$0xff]
    %v2836 = vld [vmem:[#allocation11 + $0x50] sm:$0xf]
    %v2837 = vld [vmem:[#allocation11 + $0x54] sm:$0xff]
    %v2838 = vld [vmem:[#allocation11 + $0x5c] sm:$0xf]
    %v2839 = vpack.c.bf16 %v2551, %v2550
    %v2856 = vunpack.c.l.b16 %v2823
    %v2857 = vunpack.c.h.b16 %v2823
    %v2858 = vunpack.c.l.b16 %v2824
    %v2859 = vunpack.c.l.b16 %v2825
    %v2860 = vunpack.c.h.b16 %v2825
    %v2861 = vunpack.c.l.b16 %v2826
    %v2862 = vunpack.c.l.b16 %v2827
    %v2863 = vunpack.c.h.b16 %v2827
    %v2864 = vunpack.c.l.b16 %v2828
    %v2865 = vunpack.c.l.b16 %v2829
    %v2866 = vunpack.c.h.b16 %v2829
    %v2867 = vunpack.c.l.b16 %v2830
    %v2868 = vunpack.c.l.b16 %v2831
    %v2869 = vunpack.c.h.b16 %v2831
    %v2870 = vunpack.c.l.b16 %v2832
    %v2871 = vunpack.c.l.b16 %v2833
    %v2872 = vunpack.c.h.b16 %v2833
    %v2873 = vunpack.c.l.b16 %v2834
    %v2874 = vunpack.c.l.b16 %v2835
    %v2875 = vunpack.c.h.b16 %v2835
    %v2876 = vunpack.c.l.b16 %v2836
    %v2877 = vunpack.c.l.b16 %v2837
    %v2878 = vunpack.c.h.b16 %v2837
    %v2879 = vunpack.c.l.b16 %v2838
    %v2880 = vpack.c.b16 %v2859, %v2856
    %v2881 = vpack.c.b16 %v2860, %v2857
    %v2882 = vpack.c.b16 %v2861, %v2858
    %v2883 = vpack.c.b16 %v2865, %v2862
    %v2884 = vpack.c.b16 %v2866, %v2863
    %v2885 = vpack.c.b16 %v2867, %v2864
    %v2886 = vpack.c.b16 %v2871, %v2868
    %v2887 = vpack.c.b16 %v2872, %v2869
    %v2888 = vpack.c.b16 %v2873, %v2870
    %v2889 = vpack.c.b16 %v2877, %v2874
    %v2890 = vpack.c.b16 %v2878, %v2875
    %v2891 = vpack.c.b16 %v2879, %v2876
    %v2905 = vsel %vm334, %v2839, 0
    %2907 = vmatprep.subr.bf16.mxu0 %v2881
    %2908 = vmatpush1.bf16.msra.mxu0 %v2880
    %2909 = vmatprep.subr.bf16.mxu0 %v2884
    %2910 = vmatpush1.bf16.msra.mxu0 %v2883
    %2911 = vmatprep.subr.bf16.mxu0 %v2887
    %2912 = vmatpush1.bf16.msra.mxu0 %v2886
    %2913 = vmatprep.subr.bf16.mxu0 %v2890
    %2914 = vmatpush1.bf16.msra.mxu0 %v2889
    %2915 = vmatprep.subr.bf16.mxu0 0
    %2916 = vmatpush1.bf16.msra.mxu0 0
    %2917 = vmatprep.subr.bf16.mxu0 0
    %2918 = vmatpush1.bf16.msra.mxu0 0
    %2919 = vmatprep.subr.bf16.mxu0 0
    %2920 = vmatpush1.bf16.msra.mxu0 0
    %2921 = vmatprep.subr.bf16.mxu0 0
    %2922 = vmatpush1.bf16.msra.mxu0 0
    %2923 = vmatprep.subr.bf16.mxu0 0
    %2924 = vmatpush1.bf16.msra.mxu0 0
    %2925 = vmatprep.subr.bf16.mxu0 0
    %2926 = vmatpush1.bf16.msra.mxu0 0
    %2927 = vmatprep.subr.bf16.mxu0 0
    %2928 = vmatpush1.bf16.msra.mxu0 0
    %2929 = vmatprep.subr.bf16.mxu0 0
    %2930 = vmatpush1.bf16.msra.mxu0 0
    %2931 = vmatprep.subr.bf16.mxu0 0
    %2932 = vmatpush1.bf16.msra.mxu0 0
    %2933 = vmatprep.subr.bf16.mxu0 0
    %2934 = vmatpush1.bf16.msra.mxu0 0
    %2935 = vmatprep.subr.bf16.mxu0 0
    %2936 = vmatpush1.bf16.msra.mxu0 0
    %2937 = vmatprep.subr.bf16.mxu0 0
    %2938 = vmatpush1.bf16.msra.mxu0 0
    %2939 = vmatprep.mubr.bf16.mxu0 0
    %2940 = vmatmul.mubr.bf16.gmra.mrb[0].mxu0 %v2905
    %v2941 = vpop.f32.mrb[0].mxu0
    %v2942 = vadd.f32 0.0, %v2941
    %v2943 = vpop.f32.mrb[0].mxu0
    %v2944 = vadd.f32 0.0, %v2943
    %v2945 = vpop.f32.mrb[0].mxu0
    %v2946 = vadd.f32 0.0, %v2945
    %v2947 = vpop.f32.mrb[0].mxu0
    %v2948 = vadd.f32 0.0, %v2947
    %2949 = vdwg.mxu0
    %2950 = vmatprep.subr.bf16.mxu0 0
    %2951 = vmatpush1.bf16.msra.mxu0 %v2882
    %2952 = vmatprep.subr.bf16.mxu0 0
    %2953 = vmatpush1.bf16.msra.mxu0 %v2885
    %2954 = vmatprep.subr.bf16.mxu0 0
    %2955 = vmatpush1.bf16.msra.mxu0 %v2888
    %2956 = vmatprep.subr.bf16.mxu0 0
    %2957 = vmatpush1.bf16.msra.mxu0 %v2891
    %2958 = vmatprep.subr.bf16.mxu0 0
    %2959 = vmatpush1.bf16.msra.mxu0 0
    %2960 = vmatprep.subr.bf16.mxu0 0
    %2961 = vmatpush1.bf16.msra.mxu0 0
    %2962 = vmatprep.subr.bf16.mxu0 0
    %2963 = vmatpush1.bf16.msra.mxu0 0
    %2964 = vmatprep.subr.bf16.mxu0 0
    %2965 = vmatpush1.bf16.msra.mxu0 0
    %2966 = vmatprep.subr.bf16.mxu0 0
    %2967 = vmatpush1.bf16.msra.mxu0 0
    %2968 = vmatprep.subr.bf16.mxu0 0
    %2969 = vmatpush1.bf16.msra.mxu0 0
    %2970 = vmatprep.subr.bf16.mxu0 0
    %2971 = vmatpush1.bf16.msra.mxu0 0
    %2972 = vmatprep.subr.bf16.mxu0 0
    %2973 = vmatpush1.bf16.msra.mxu0 0
    %2974 = vmatprep.subr.bf16.mxu0 0
    %2975 = vmatpush1.bf16.msra.mxu0 0
    %2976 = vmatprep.subr.bf16.mxu0 0
    %2977 = vmatpush1.bf16.msra.mxu0 0
    %2978 = vmatprep.subr.bf16.mxu0 0
    %2979 = vmatpush1.bf16.msra.mxu0 0
    %2980 = vmatprep.subr.bf16.mxu0 0
    %2981 = vmatpush1.bf16.msra.mxu0 0
    %2982 = vmatprep.mubr.bf16.mxu0 0
    %2983 = vmatmul.mubr.bf16.gmra.mrb[0].mxu0 %v2905
    %v2984 = vpop.f32.mrb[0].mxu0
    %v2985 = vadd.f32 0.0, %v2984
    %v2986 = vpop.f32.mrb[0].mxu0
    %v2987 = vpop.f32.mrb[0].mxu0
    %v2988 = vadd.f32 0.0, %v2987
    %v2989 = vpop.f32.mrb[0].mxu0
    %2990 = vdwg.mxu0
    %v2991 = vadd.f32 %v2774, %v2942
    %v2992 = vadd.f32 %v2776, %v2944
    %v2993 = vadd.f32 %v2817, %v2985
    %v2994 = vadd.f32 %v2778, %v2946
    %v2995 = vadd.f32 %v2780, %v2948
    %v2996 = vadd.f32 %v2820, %v2988
    %s2997 = scalar_lea.vmem [#allocation11], 96
    %v2998 = vld [vmem:[%s2997] sm:$0xff]
    %v2999 = vld [vmem:[%s2997 + $0x8] sm:$0xf]
    %v3000 = vld [vmem:[%s2997 + $0xc] sm:$0xff]
    %v3001 = vld [vmem:[%s2997 + $0x14] sm:$0xf]
    %v3002 = vld [vmem:[%s2997 + $0x18] sm:$0xff]
    %v3003 = vld [vmem:[%s2997 + $0x20] sm:$0xf]
    %v3004 = vld [vmem:[%s2997 + $0x24] sm:$0xff]
    %v3005 = vld [vmem:[%s2997 + $0x2c] sm:$0xf]
    %v3006 = vld [vmem:[%s2997 + $0x30] sm:$0xff]
    %v3007 = vld [vmem:[%s2997 + $0x38] sm:$0xf]
    %v3008 = vld [vmem:[%s2997 + $0x3c] sm:$0xff]
    %v3009 = vld [vmem:[%s2997 + $0x44] sm:$0xf]
    %v3010 = vld [vmem:[%s2997 + $0x48] sm:$0xff]
    %v3011 = vld [vmem:[%s2997 + $0x50] sm:$0xf]
    %v3012 = vld [vmem:[%s2997 + $0x54] sm:$0xff]
    %v3013 = vld [vmem:[%s2997 + $0x5c] sm:$0xf]
    %v3014 = vpack.c.bf16 %v2553, %v2552
    %v3031 = vunpack.c.l.b16 %v2998
    %v3032 = vunpack.c.h.b16 %v2998
    %v3033 = vunpack.c.l.b16 %v2999
    %v3034 = vunpack.c.l.b16 %v3000
    %v3035 = vunpack.c.h.b16 %v3000
    %v3036 = vunpack.c.l.b16 %v3001
    %v3037 = vunpack.c.l.b16 %v3002
    %v3038 = vunpack.c.h.b16 %v3002
    %v3039 = vunpack.c.l.b16 %v3003
    %v3040 = vunpack.c.l.b16 %v3004
    %v3041 = vunpack.c.h.b16 %v3004
    %v3042 = vunpack.c.l.b16 %v3005
    %v3043 = vunpack.c.l.b16 %v3006
    %v3044 = vunpack.c.h.b16 %v3006
    %v3045 = vunpack.c.l.b16 %v3007
    %v3046 = vunpack.c.l.b16 %v3008
    %v3047 = vunpack.c.h.b16 %v3008
    %v3048 = vunpack.c.l.b16 %v3009
    %v3049 = vunpack.c.l.b16 %v3010
    %v3050 = vunpack.c.h.b16 %v3010
    %v3051 = vunpack.c.l.b16 %v3011
    %v3052 = vunpack.c.l.b16 %v3012
    %v3053 = vunpack.c.h.b16 %v3012
    %v3054 = vunpack.c.l.b16 %v3013
    %v3055 = vpack.c.b16 %v3034, %v3031
    %v3056 = vpack.c.b16 %v3035, %v3032
    %v3057 = vpack.c.b16 %v3036, %v3033
    %v3058 = vpack.c.b16 %v3040, %v3037
    %v3059 = vpack.c.b16 %v3041, %v3038
    %v3060 = vpack.c.b16 %v3042, %v3039
    %v3061 = vpack.c.b16 %v3046, %v3043
    %v3062 = vpack.c.b16 %v3047, %v3044
    %v3063 = vpack.c.b16 %v3048, %v3045
    %v3064 = vpack.c.b16 %v3052, %v3049
    %v3065 = vpack.c.b16 %v3053, %v3050
    %v3066 = vpack.c.b16 %v3054, %v3051
    %v3080 = vsel %vm334, %v3014, 0
    %3082 = vmatprep.subr.bf16.mxu0 %v3056
    %3083 = vmatpush1.bf16.msra.mxu0 %v3055
    %3084 = vmatprep.subr.bf16.mxu0 %v3059
    %3085 = vmatpush1.bf16.msra.mxu0 %v3058
    %3086 = vmatprep.subr.bf16.mxu0 %v3062
    %3087 = vmatpush1.bf16.msra.mxu0 %v3061
    %3088 = vmatprep.subr.bf16.mxu0 %v3065
    %3089 = vmatpush1.bf16.msra.mxu0 %v3064
    %3090 = vmatprep.subr.bf16.mxu0 0
    %3091 = vmatpush1.bf16.msra.mxu0 0
    %3092 = vmatprep.subr.bf16.mxu0 0
    %3093 = vmatpush1.bf16.msra.mxu0 0
    %3094 = vmatprep.subr.bf16.mxu0 0
    %3095 = vmatpush1.bf16.msra.mxu0 0
    %3096 = vmatprep.subr.bf16.mxu0 0
    %3097 = vmatpush1.bf16.msra.mxu0 0
    %3098 = vmatprep.subr.bf16.mxu0 0
    %3099 = vmatpush1.bf16.msra.mxu0 0
    %3100 = vmatprep.subr.bf16.mxu0 0
    %3101 = vmatpush1.bf16.msra.mxu0 0
    %3102 = vmatprep.subr.bf16.mxu0 0
    %3103 = vmatpush1.bf16.msra.mxu0 0
    %3104 = vmatprep.subr.bf16.mxu0 0
    %3105 = vmatpush1.bf16.msra.mxu0 0
    %3106 = vmatprep.subr.bf16.mxu0 0
    %3107 = vmatpush1.bf16.msra.mxu0 0
    %3108 = vmatprep.subr.bf16.mxu0 0
    %3109 = vmatpush1.bf16.msra.mxu0 0
    %3110 = vmatprep.subr.bf16.mxu0 0
    %3111 = vmatpush1.bf16.msra.mxu0 0
    %3112 = vmatprep.subr.bf16.mxu0 0
    %3113 = vmatpush1.bf16.msra.mxu0 0
    %3114 = vmatprep.mubr.bf16.mxu0 0
    %3115 = vmatmul.mubr.bf16.gmra.mrb[0].mxu0 %v3080
    %v3116 = vpop.f32.mrb[0].mxu0
    %v3117 = vadd.f32 0.0, %v3116
    %v3118 = vpop.f32.mrb[0].mxu0
    %v3119 = vadd.f32 0.0, %v3118
    %v3120 = vpop.f32.mrb[0].mxu0
    %v3121 = vadd.f32 0.0, %v3120
    %v3122 = vpop.f32.mrb[0].mxu0
    %v3123 = vadd.f32 0.0, %v3122
    %3124 = vdwg.mxu0
    %3125 = vmatprep.subr.bf16.mxu0 0
    %3126 = vmatpush1.bf16.msra.mxu0 %v3057
    %3127 = vmatprep.subr.bf16.mxu0 0
    %3128 = vmatpush1.bf16.msra.mxu0 %v3060
    %3129 = vmatprep.subr.bf16.mxu0 0
    %3130 = vmatpush1.bf16.msra.mxu0 %v3063
    %3131 = vmatprep.subr.bf16.mxu0 0
    %3132 = vmatpush1.bf16.msra.mxu0 %v3066
    %3133 = vmatprep.subr.bf16.mxu0 0
    %3134 = vmatpush1.bf16.msra.mxu0 0
    %3135 = vmatprep.subr.bf16.mxu0 0
    %3136 = vmatpush1.bf16.msra.mxu0 0
    %3137 = vmatprep.subr.bf16.mxu0 0
    %3138 = vmatpush1.bf16.msra.mxu0 0
    %3139 = vmatprep.subr.bf16.mxu0 0
    %3140 = vmatpush1.bf16.msra.mxu0 0
    %3141 = vmatprep.subr.bf16.mxu0 0
    %3142 = vmatpush1.bf16.msra.mxu0 0
    %3143 = vmatprep.subr.bf16.mxu0 0
    %3144 = vmatpush1.bf16.msra.mxu0 0
    %3145 = vmatprep.subr.bf16.mxu0 0
    %3146 = vmatpush1.bf16.msra.mxu0 0
    %3147 = vmatprep.subr.bf16.mxu0 0
    %3148 = vmatpush1.bf16.msra.mxu0 0
    %3149 = vmatprep.subr.bf16.mxu0 0
    %3150 = vmatpush1.bf16.msra.mxu0 0
    %3151 = vmatprep.subr.bf16.mxu0 0
    %3152 = vmatpush1.bf16.msra.mxu0 0
    %3153 = vmatprep.subr.bf16.mxu0 0
    %3154 = vmatpush1.bf16.msra.mxu0 0
    %3155 = vmatprep.subr.bf16.mxu0 0
    %3156 = vmatpush1.bf16.msra.mxu0 0
    %3157 = vmatprep.mubr.bf16.mxu0 0
    %3158 = vmatmul.mubr.bf16.gmra.mrb[0].mxu0 %v3080
    %v3159 = vpop.f32.mrb[0].mxu0
    %v3160 = vadd.f32 0.0, %v3159
    %v3161 = vpop.f32.mrb[0].mxu0
    %v3162 = vpop.f32.mrb[0].mxu0
    %v3163 = vadd.f32 0.0, %v3162
    %v3164 = vpop.f32.mrb[0].mxu0
    %3165 = vdwg.mxu0
    %v3166 = vadd.f32 %v2991, %v3117
    %v3167 = vadd.f32 %v2992, %v3119
    %v3168 = vadd.f32 %v2993, %v3160
    %v3169 = vadd.f32 %v2994, %v3121
    %v3170 = vadd.f32 %v2995, %v3123
    %v3171 = vadd.f32 %v2996, %v3163
    %s3172 = scalar_lea.vmem [#allocation11], 192
    %v3173 = vld [vmem:[%s3172] sm:$0xff]
    %v3174 = vld [vmem:[%s3172 + $0x8] sm:$0xf]
    %v3175 = vld [vmem:[%s3172 + $0xc] sm:$0xff]
    %v3176 = vld [vmem:[%s3172 + $0x14] sm:$0xf]
    %v3177 = vld [vmem:[%s3172 + $0x18] sm:$0xff]
    %v3178 = vld [vmem:[%s3172 + $0x20] sm:$0xf]
    %v3179 = vld [vmem:[%s3172 + $0x24] sm:$0xff]
    %v3180 = vld [vmem:[%s3172 + $0x2c] sm:$0xf]
    %v3181 = vld [vmem:[%s3172 + $0x30] sm:$0xff]
    %v3182 = vld [vmem:[%s3172 + $0x38] sm:$0xf]
    %v3183 = vld [vmem:[%s3172 + $0x3c] sm:$0xff]
    %v3184 = vld [vmem:[%s3172 + $0x44] sm:$0xf]
    %v3185 = vld [vmem:[%s3172 + $0x48] sm:$0xff]
    %v3186 = vld [vmem:[%s3172 + $0x50] sm:$0xf]
    %v3187 = vld [vmem:[%s3172 + $0x54] sm:$0xff]
    %v3188 = vld [vmem:[%s3172 + $0x5c] sm:$0xf]
    %v3189 = vpack.c.bf16 %v2555, %v2554
    %v3206 = vunpack.c.l.b16 %v3173
    %v3207 = vunpack.c.h.b16 %v3173
    %v3208 = vunpack.c.l.b16 %v3174
    %v3209 = vunpack.c.l.b16 %v3175
    %v3210 = vunpack.c.h.b16 %v3175
    %v3211 = vunpack.c.l.b16 %v3176
    %v3212 = vunpack.c.l.b16 %v3177
    %v3213 = vunpack.c.h.b16 %v3177
    %v3214 = vunpack.c.l.b16 %v3178
    %v3215 = vunpack.c.l.b16 %v3179
    %v3216 = vunpack.c.h.b16 %v3179
    %v3217 = vunpack.c.l.b16 %v3180
    %v3218 = vunpack.c.l.b16 %v3181
    %v3219 = vunpack.c.h.b16 %v3181
    %v3220 = vunpack.c.l.b16 %v3182
    %v3221 = vunpack.c.l.b16 %v3183
    %v3222 = vunpack.c.h.b16 %v3183
    %v3223 = vunpack.c.l.b16 %v3184
    %v3224 = vunpack.c.l.b16 %v3185
    %v3225 = vunpack.c.h.b16 %v3185
    %v3226 = vunpack.c.l.b16 %v3186
    %v3227 = vunpack.c.l.b16 %v3187
    %v3228 = vunpack.c.h.b16 %v3187
    %v3229 = vunpack.c.l.b16 %v3188
    %v3230 = vpack.c.b16 %v3209, %v3206
    %v3231 = vpack.c.b16 %v3210, %v3207
    %v3232 = vpack.c.b16 %v3211, %v3208
    %v3233 = vpack.c.b16 %v3215, %v3212
    %v3234 = vpack.c.b16 %v3216, %v3213
    %v3235 = vpack.c.b16 %v3217, %v3214
    %v3236 = vpack.c.b16 %v3221, %v3218
    %v3237 = vpack.c.b16 %v3222, %v3219
    %v3238 = vpack.c.b16 %v3223, %v3220
    %v3239 = vpack.c.b16 %v3227, %v3224
    %v3240 = vpack.c.b16 %v3228, %v3225
    %v3241 = vpack.c.b16 %v3229, %v3226
    %v3255 = vsel %vm334, %v3189, 0
    %3257 = vmatprep.subr.bf16.mxu0 %v3231
    %3258 = vmatpush1.bf16.msra.mxu0 %v3230
    %3259 = vmatprep.subr.bf16.mxu0 %v3234
    %3260 = vmatpush1.bf16.msra.mxu0 %v3233
    %3261 = vmatprep.subr.bf16.mxu0 %v3237
    %3262 = vmatpush1.bf16.msra.mxu0 %v3236
    %3263 = vmatprep.subr.bf16.mxu0 %v3240
    %3264 = vmatpush1.bf16.msra.mxu0 %v3239
    %3265 = vmatprep.subr.bf16.mxu0 0
    %3266 = vmatpush1.bf16.msra.mxu0 0
    %3267 = vmatprep.subr.bf16.mxu0 0
    %3268 = vmatpush1.bf16.msra.mxu0 0
    %3269 = vmatprep.subr.bf16.mxu0 0
    %3270 = vmatpush1.bf16.msra.mxu0 0
    %3271 = vmatprep.subr.bf16.mxu0 0
    %3272 = vmatpush1.bf16.msra.mxu0 0
    %3273 = vmatprep.subr.bf16.mxu0 0
    %3274 = vmatpush1.bf16.msra.mxu0 0
    %3275 = vmatprep.subr.bf16.mxu0 0
    %3276 = vmatpush1.bf16.msra.mxu0 0
    %3277 = vmatprep.subr.bf16.mxu0 0
    %3278 = vmatpush1.bf16.msra.mxu0 0
    %3279 = vmatprep.subr.bf16.mxu0 0
    %3280 = vmatpush1.bf16.msra.mxu0 0
    %3281 = vmatprep.subr.bf16.mxu0 0
    %3282 = vmatpush1.bf16.msra.mxu0 0
    %3283 = vmatprep.subr.bf16.mxu0 0
    %3284 = vmatpush1.bf16.msra.mxu0 0
    %3285 = vmatprep.subr.bf16.mxu0 0
    %3286 = vmatpush1.bf16.msra.mxu0 0
    %3287 = vmatprep.subr.bf16.mxu0 0
    %3288 = vmatpush1.bf16.msra.mxu0 0
    %3289 = vmatprep.mubr.bf16.mxu0 0
    %3290 = vmatmul.mubr.bf16.gmra.mrb[0].mxu0 %v3255
    %v3291 = vpop.f32.mrb[0].mxu0
    %v3292 = vadd.f32 0.0, %v3291
    %v3293 = vpop.f32.mrb[0].mxu0
    %v3294 = vadd.f32 0.0, %v3293
    %v3295 = vpop.f32.mrb[0].mxu0
    %v3296 = vadd.f32 0.0, %v3295
    %v3297 = vpop.f32.mrb[0].mxu0
    %v3298 = vadd.f32 0.0, %v3297
    %3299 = vdwg.mxu0
    %3300 = vmatprep.subr.bf16.mxu0 0
    %3301 = vmatpush1.bf16.msra.mxu0 %v3232
    %3302 = vmatprep.subr.bf16.mxu0 0
    %3303 = vmatpush1.bf16.msra.mxu0 %v3235
    %3304 = vmatprep.subr.bf16.mxu0 0
    %3305 = vmatpush1.bf16.msra.mxu0 %v3238
    %3306 = vmatprep.subr.bf16.mxu0 0
    %3307 = vmatpush1.bf16.msra.mxu0 %v3241
    %3308 = vmatprep.subr.bf16.mxu0 0
    %3309 = vmatpush1.bf16.msra.mxu0 0
    %3310 = vmatprep.subr.bf16.mxu0 0
    %3311 = vmatpush1.bf16.msra.mxu0 0
    %3312 = vmatprep.subr.bf16.mxu0 0
    %3313 = vmatpush1.bf16.msra.mxu0 0
    %3314 = vmatprep.subr.bf16.mxu0 0
    %3315 = vmatpush1.bf16.msra.mxu0 0
    %3316 = vmatprep.subr.bf16.mxu0 0
    %3317 = vmatpush1.bf16.msra.mxu0 0
    %3318 = vmatprep.subr.bf16.mxu0 0
    %3319 = vmatpush1.bf16.msra.mxu0 0
    %3320 = vmatprep.subr.bf16.mxu0 0
    %3321 = vmatpush1.bf16.msra.mxu0 0
    %3322 = vmatprep.subr.bf16.mxu0 0
    %3323 = vmatpush1.bf16.msra.mxu0 0
    %3324 = vmatprep.subr.bf16.mxu0 0
    %3325 = vmatpush1.bf16.msra.mxu0 0
    %3326 = vmatprep.subr.bf16.mxu0 0
    %3327 = vmatpush1.bf16.msra.mxu0 0
    %3328 = vmatprep.subr.bf16.mxu0 0
    %3329 = vmatpush1.bf16.msra.mxu0 0
    %3330 = vmatprep.subr.bf16.mxu0 0
    %3331 = vmatpush1.bf16.msra.mxu0 0
    %3332 = vmatprep.mubr.bf16.mxu0 0
    %3333 = vmatmul.mubr.bf16.gmra.mrb[0].mxu0 %v3255
    %v3334 = vpop.f32.mrb[0].mxu0
    %v3335 = vadd.f32 0.0, %v3334
    %v3336 = vpop.f32.mrb[0].mxu0
    %v3337 = vpop.f32.mrb[0].mxu0
    %v3338 = vadd.f32 0.0, %v3337
    %v3339 = vpop.f32.mrb[0].mxu0
    %3340 = vdwg.mxu0
    %v3341 = vadd.f32 %v3166, %v3292
    %v3342 = vadd.f32 %v3167, %v3294
    %v3343 = vadd.f32 %v3168, %v3335
    %v3344 = vadd.f32 %v3169, %v3296
    %v3345 = vadd.f32 %v3170, %v3298
    %v3346 = vadd.f32 %v3171, %v3338
    %s3347 = scalar_lea.vmem [#allocation11], 288
    %v3348 = vld [vmem:[%s3347] sm:$0xff]
    %v3349 = vld [vmem:[%s3347 + $0x8] sm:$0xf]
    %v3350 = vld [vmem:[%s3347 + $0xc] sm:$0xff]
    %v3351 = vld [vmem:[%s3347 + $0x14] sm:$0xf]
    %v3352 = vld [vmem:[%s3347 + $0x18] sm:$0xff]
    %v3353 = vld [vmem:[%s3347 + $0x20] sm:$0xf]
    %v3354 = vld [vmem:[%s3347 + $0x24] sm:$0xff]
    %v3355 = vld [vmem:[%s3347 + $0x2c] sm:$0xf]
    %v3356 = vld [vmem:[%s3347 + $0x30] sm:$0xff]
    %v3357 = vld [vmem:[%s3347 + $0x38] sm:$0xf]
    %v3358 = vld [vmem:[%s3347 + $0x3c] sm:$0xff]
    %v3359 = vld [vmem:[%s3347 + $0x44] sm:$0xf]
    %v3360 = vld [vmem:[%s3347 + $0x48] sm:$0xff]
    %v3361 = vld [vmem:[%s3347 + $0x50] sm:$0xf]
    %v3362 = vld [vmem:[%s3347 + $0x54] sm:$0xff]
    %v3363 = vld [vmem:[%s3347 + $0x5c] sm:$0xf]
    %v3364 = vpack.c.bf16 %v2557, %v2556
    %v3381 = vunpack.c.l.b16 %v3348
    %v3382 = vunpack.c.h.b16 %v3348
    %v3383 = vunpack.c.l.b16 %v3349
    %v3384 = vunpack.c.l.b16 %v3350
    %v3385 = vunpack.c.h.b16 %v3350
    %v3386 = vunpack.c.l.b16 %v3351
    %v3387 = vunpack.c.l.b16 %v3352
    %v3388 = vunpack.c.h.b16 %v3352
    %v3389 = vunpack.c.l.b16 %v3353
    %v3390 = vunpack.c.l.b16 %v3354
    %v3391 = vunpack.c.h.b16 %v3354
    %v3392 = vunpack.c.l.b16 %v3355
    %v3393 = vunpack.c.l.b16 %v3356
    %v3394 = vunpack.c.h.b16 %v3356
    %v3395 = vunpack.c.l.b16 %v3357
    %v3396 = vunpack.c.l.b16 %v3358
    %v3397 = vunpack.c.h.b16 %v3358
    %v3398 = vunpack.c.l.b16 %v3359
    %v3399 = vunpack.c.l.b16 %v3360
    %v3400 = vunpack.c.h.b16 %v3360
    %v3401 = vunpack.c.l.b16 %v3361
    %v3402 = vunpack.c.l.b16 %v3362
    %v3403 = vunpack.c.h.b16 %v3362
    %v3404 = vunpack.c.l.b16 %v3363
    %v3405 = vpack.c.b16 %v3384, %v3381
    %v3406 = vpack.c.b16 %v3385, %v3382
    %v3407 = vpack.c.b16 %v3386, %v3383
    %v3408 = vpack.c.b16 %v3390, %v3387
    %v3409 = vpack.c.b16 %v3391, %v3388
    %v3410 = vpack.c.b16 %v3392, %v3389
    %v3411 = vpack.c.b16 %v3396, %v3393
    %v3412 = vpack.c.b16 %v3397, %v3394
    %v3413 = vpack.c.b16 %v3398, %v3395
    %v3414 = vpack.c.b16 %v3402, %v3399
    %v3415 = vpack.c.b16 %v3403, %v3400
    %v3416 = vpack.c.b16 %v3404, %v3401
    %v3430 = vsel %vm334, %v3364, 0
    %3432 = vmatprep.subr.bf16.mxu0 %v3406
    %3433 = vmatpush1.bf16.msra.mxu0 %v3405
    %3434 = vmatprep.subr.bf16.mxu0 %v3409
    %3435 = vmatpush1.bf16.msra.mxu0 %v3408
    %3436 = vmatprep.subr.bf16.mxu0 %v3412
    %3437 = vmatpush1.bf16.msra.mxu0 %v3411
    %3438 = vmatprep.subr.bf16.mxu0 %v3415
    %3439 = vmatpush1.bf16.msra.mxu0 %v3414
    %3440 = vmatprep.subr.bf16.mxu0 0
    %3441 = vmatpush1.bf16.msra.mxu0 0
    %3442 = vmatprep.subr.bf16.mxu0 0
    %3443 = vmatpush1.bf16.msra.mxu0 0
    %3444 = vmatprep.subr.bf16.mxu0 0
    %3445 = vmatpush1.bf16.msra.mxu0 0
    %3446 = vmatprep.subr.bf16.mxu0 0
    %3447 = vmatpush1.bf16.msra.mxu0 0
    %3448 = vmatprep.subr.bf16.mxu0 0
    %3449 = vmatpush1.bf16.msra.mxu0 0
    %3450 = vmatprep.subr.bf16.mxu0 0
    %3451 = vmatpush1.bf16.msra.mxu0 0
    %3452 = vmatprep.subr.bf16.mxu0 0
    %3453 = vmatpush1.bf16.msra.mxu0 0
    %3454 = vmatprep.subr.bf16.mxu0 0
    %3455 = vmatpush1.bf16.msra.mxu0 0
    %3456 = vmatprep.subr.bf16.mxu0 0
    %3457 = vmatpush1.bf16.msra.mxu0 0
    %3458 = vmatprep.subr.bf16.mxu0 0
    %3459 = vmatpush1.bf16.msra.mxu0 0
    %3460 = vmatprep.subr.bf16.mxu0 0
    %3461 = vmatpush1.bf16.msra.mxu0 0
    %3462 = vmatprep.subr.bf16.mxu0 0
    %3463 = vmatpush1.bf16.msra.mxu0 0
    %3464 = vmatprep.mubr.bf16.mxu0 0
    %3465 = vmatmul.mubr.bf16.gmra.mrb[0].mxu0 %v3430
    %v3466 = vpop.f32.mrb[0].mxu0
    %v3467 = vadd.f32 0.0, %v3466
    %v3468 = vpop.f32.mrb[0].mxu0
    %v3469 = vadd.f32 0.0, %v3468
    %v3470 = vpop.f32.mrb[0].mxu0
    %v3471 = vadd.f32 0.0, %v3470
    %v3472 = vpop.f32.mrb[0].mxu0
    %v3473 = vadd.f32 0.0, %v3472
    %3474 = vdwg.mxu0
    %3475 = vmatprep.subr.bf16.mxu0 0
    %3476 = vmatpush1.bf16.msra.mxu0 %v3407
    %3477 = vmatprep.subr.bf16.mxu0 0
    %3478 = vmatpush1.bf16.msra.mxu0 %v3410
    %3479 = vmatprep.subr.bf16.mxu0 0
    %3480 = vmatpush1.bf16.msra.mxu0 %v3413
    %3481 = vmatprep.subr.bf16.mxu0 0
    %3482 = vmatpush1.bf16.msra.mxu0 %v3416
    %3483 = vmatprep.subr.bf16.mxu0 0
    %3484 = vmatpush1.bf16.msra.mxu0 0
    %3485 = vmatprep.subr.bf16.mxu0 0
    %3486 = vmatpush1.bf16.msra.mxu0 0
    %3487 = vmatprep.subr.bf16.mxu0 0
    %3488 = vmatpush1.bf16.msra.mxu0 0
    %3489 = vmatprep.subr.bf16.mxu0 0
    %3490 = vmatpush1.bf16.msra.mxu0 0
    %3491 = vmatprep.subr.bf16.mxu0 0
    %3492 = vmatpush1.bf16.msra.mxu0 0
    %3493 = vmatprep.subr.bf16.mxu0 0
    %3494 = vmatpush1.bf16.msra.mxu0 0
    %3495 = vmatprep.subr.bf16.mxu0 0
    %3496 = vmatpush1.bf16.msra.mxu0 0
    %3497 = vmatprep.subr.bf16.mxu0 0
    %3498 = vmatpush1.bf16.msra.mxu0 0
    %3499 = vmatprep.subr.bf16.mxu0 0
    %3500 = vmatpush1.bf16.msra.mxu0 0
    %3501 = vmatprep.subr.bf16.mxu0 0
    %3502 = vmatpush1.bf16.msra.mxu0 0
    %3503 = vmatprep.subr.bf16.mxu0 0
    %3504 = vmatpush1.bf16.msra.mxu0 0
    %3505 = vmatprep.subr.bf16.mxu0 0
    %3506 = vmatpush1.bf16.msra.mxu0 0
    %3507 = vmatprep.mubr.bf16.mxu0 0
    %3508 = vmatmul.mubr.bf16.gmra.mrb[0].mxu0 %v3430
    %v3509 = vpop.f32.mrb[0].mxu0
    %v3510 = vadd.f32 0.0, %v3509
    %v3511 = vpop.f32.mrb[0].mxu0
    %v3512 = vpop.f32.mrb[0].mxu0
    %v3513 = vadd.f32 0.0, %v3512
    %v3514 = vpop.f32.mrb[0].mxu0
    %3515 = vdwg.mxu0
    %v3516 = vadd.f32 %v3341, %v3467
    %v3517 = vadd.f32 %v3342, %v3469
    %v3518 = vadd.f32 %v3343, %v3510
    %v3519 = vadd.f32 %v3344, %v3471
    %v3520 = vadd.f32 %v3345, %v3473
    %v3521 = vadd.f32 %v3346, %v3513
    %s3522 = scalar_lea.vmem [#allocation11], 384
    %v3523 = vld [vmem:[%s3522] sm:$0xff]
    %v3524 = vld [vmem:[%s3522 + $0x8] sm:$0xf]
    %v3525 = vld [vmem:[%s3522 + $0xc] sm:$0xff]
    %v3526 = vld [vmem:[%s3522 + $0x14] sm:$0xf]
    %v3527 = vld [vmem:[%s3522 + $0x18] sm:$0xff]
    %v3528 = vld [vmem:[%s3522 + $0x20] sm:$0xf]
    %v3529 = vld [vmem:[%s3522 + $0x24] sm:$0xff]
    %v3530 = vld [vmem:[%s3522 + $0x2c] sm:$0xf]
    %v3531 = vld [vmem:[%s3522 + $0x30] sm:$0xff]
    %v3532 = vld [vmem:[%s3522 + $0x38] sm:$0xf]
    %v3533 = vld [vmem:[%s3522 + $0x3c] sm:$0xff]
    %v3534 = vld [vmem:[%s3522 + $0x44] sm:$0xf]
    %v3535 = vld [vmem:[%s3522 + $0x48] sm:$0xff]
    %v3536 = vld [vmem:[%s3522 + $0x50] sm:$0xf]
    %v3537 = vld [vmem:[%s3522 + $0x54] sm:$0xff]
    %v3538 = vld [vmem:[%s3522 + $0x5c] sm:$0xf]
    %v3539 = vpack.c.bf16 %v2559, %v2558
    %v3556 = vunpack.c.l.b16 %v3523
    %v3557 = vunpack.c.h.b16 %v3523
    %v3558 = vunpack.c.l.b16 %v3524
    %v3559 = vunpack.c.l.b16 %v3525
    %v3560 = vunpack.c.h.b16 %v3525
    %v3561 = vunpack.c.l.b16 %v3526
    %v3562 = vunpack.c.l.b16 %v3527
    %v3563 = vunpack.c.h.b16 %v3527
    %v3564 = vunpack.c.l.b16 %v3528
    %v3565 = vunpack.c.l.b16 %v3529
    %v3566 = vunpack.c.h.b16 %v3529
    %v3567 = vunpack.c.l.b16 %v3530
    %v3568 = vunpack.c.l.b16 %v3531
    %v3569 = vunpack.c.h.b16 %v3531
    %v3570 = vunpack.c.l.b16 %v3532
    %v3571 = vunpack.c.l.b16 %v3533
    %v3572 = vunpack.c.h.b16 %v3533
    %v3573 = vunpack.c.l.b16 %v3534
    %v3574 = vunpack.c.l.b16 %v3535
    %v3575 = vunpack.c.h.b16 %v3535
    %v3576 = vunpack.c.l.b16 %v3536
    %v3577 = vunpack.c.l.b16 %v3537
    %v3578 = vunpack.c.h.b16 %v3537
    %v3579 = vunpack.c.l.b16 %v3538
    %v3580 = vpack.c.b16 %v3559, %v3556
    %v3581 = vpack.c.b16 %v3560, %v3557
    %v3582 = vpack.c.b16 %v3561, %v3558
    %v3583 = vpack.c.b16 %v3565, %v3562
    %v3584 = vpack.c.b16 %v3566, %v3563
    %v3585 = vpack.c.b16 %v3567, %v3564
    %v3586 = vpack.c.b16 %v3571, %v3568
    %v3587 = vpack.c.b16 %v3572, %v3569
    %v3588 = vpack.c.b16 %v3573, %v3570
    %v3589 = vpack.c.b16 %v3577, %v3574
    %v3590 = vpack.c.b16 %v3578, %v3575
    %v3591 = vpack.c.b16 %v3579, %v3576
    %v3605 = vsel %vm334, %v3539, 0
    %3607 = vmatprep.subr.bf16.mxu0 %v3581
    %3608 = vmatpush1.bf16.msra.mxu0 %v3580
    %3609 = vmatprep.subr.bf16.mxu0 %v3584
    %3610 = vmatpush1.bf16.msra.mxu0 %v3583
    %3611 = vmatprep.subr.bf16.mxu0 %v3587
    %3612 = vmatpush1.bf16.msra.mxu0 %v3586
    %3613 = vmatprep.subr.bf16.mxu0 %v3590
    %3614 = vmatpush1.bf16.msra.mxu0 %v3589
    %3615 = vmatprep.subr.bf16.mxu0 0
    %3616 = vmatpush1.bf16.msra.mxu0 0
    %3617 = vmatprep.subr.bf16.mxu0 0
    %3618 = vmatpush1.bf16.msra.mxu0 0
    %3619 = vmatprep.subr.bf16.mxu0 0
    %3620 = vmatpush1.bf16.msra.mxu0 0
    %3621 = vmatprep.subr.bf16.mxu0 0
    %3622 = vmatpush1.bf16.msra.mxu0 0
    %3623 = vmatprep.subr.bf16.mxu0 0
    %3624 = vmatpush1.bf16.msra.mxu0 0
    %3625 = vmatprep.subr.bf16.mxu0 0
    %3626 = vmatpush1.bf16.msra.mxu0 0
    %3627 = vmatprep.subr.bf16.mxu0 0
    %3628 = vmatpush1.bf16.msra.mxu0 0
    %3629 = vmatprep.subr.bf16.mxu0 0
    %3630 = vmatpush1.bf16.msra.mxu0 0
    %3631 = vmatprep.subr.bf16.mxu0 0
    %3632 = vmatpush1.bf16.msra.mxu0 0
    %3633 = vmatprep.subr.bf16.mxu0 0
    %3634 = vmatpush1.bf16.msra.mxu0 0
    %3635 = vmatprep.subr.bf16.mxu0 0
    %3636 = vmatpush1.bf16.msra.mxu0 0
    %3637 = vmatprep.subr.bf16.mxu0 0
    %3638 = vmatpush1.bf16.msra.mxu0 0
    %3639 = vmatprep.mubr.bf16.mxu0 0
    %3640 = vmatmul.mubr.bf16.gmra.mrb[0].mxu0 %v3605
    %v3641 = vpop.f32.mrb[0].mxu0
    %v3642 = vadd.f32 0.0, %v3641
    %v3643 = vpop.f32.mrb[0].mxu0
    %v3644 = vadd.f32 0.0, %v3643
    %v3645 = vpop.f32.mrb[0].mxu0
    %v3646 = vadd.f32 0.0, %v3645
    %v3647 = vpop.f32.mrb[0].mxu0
    %v3648 = vadd.f32 0.0, %v3647
    %3649 = vdwg.mxu0
    %3650 = vmatprep.subr.bf16.mxu0 0
    %3651 = vmatpush1.bf16.msra.mxu0 %v3582
    %3652 = vmatprep.subr.bf16.mxu0 0
    %3653 = vmatpush1.bf16.msra.mxu0 %v3585
    %3654 = vmatprep.subr.bf16.mxu0 0
    %3655 = vmatpush1.bf16.msra.mxu0 %v3588
    %3656 = vmatprep.subr.bf16.mxu0 0
    %3657 = vmatpush1.bf16.msra.mxu0 %v3591
    %3658 = vmatprep.subr.bf16.mxu0 0
    %3659 = vmatpush1.bf16.msra.mxu0 0
    %3660 = vmatprep.subr.bf16.mxu0 0
    %3661 = vmatpush1.bf16.msra.mxu0 0
    %3662 = vmatprep.subr.bf16.mxu0 0
    %3663 = vmatpush1.bf16.msra.mxu0 0
    %3664 = vmatprep.subr.bf16.mxu0 0
    %3665 = vmatpush1.bf16.msra.mxu0 0
    %3666 = vmatprep.subr.bf16.mxu0 0
    %3667 = vmatpush1.bf16.msra.mxu0 0
    %3668 = vmatprep.subr.bf16.mxu0 0
    %3669 = vmatpush1.bf16.msra.mxu0 0
    %3670 = vmatprep.subr.bf16.mxu0 0
    %3671 = vmatpush1.bf16.msra.mxu0 0
    %3672 = vmatprep.subr.bf16.mxu0 0
    %3673 = vmatpush1.bf16.msra.mxu0 0
    %3674 = vmatprep.subr.bf16.mxu0 0
    %3675 = vmatpush1.bf16.msra.mxu0 0
    %3676 = vmatprep.subr.bf16.mxu0 0
    %3677 = vmatpush1.bf16.msra.mxu0 0
    %3678 = vmatprep.subr.bf16.mxu0 0
    %3679 = vmatpush1.bf16.msra.mxu0 0
    %3680 = vmatprep.subr.bf16.mxu0 0
    %3681 = vmatpush1.bf16.msra.mxu0 0
    %3682 = vmatprep.mubr.bf16.mxu0 0
    %3683 = vmatmul.mubr.bf16.gmra.mrb[0].mxu0 %v3605
    %v3684 = vpop.f32.mrb[0].mxu0
    %v3685 = vadd.f32 0.0, %v3684
    %v3686 = vpop.f32.mrb[0].mxu0
    %v3687 = vpop.f32.mrb[0].mxu0
    %v3688 = vadd.f32 0.0, %v3687
    %v3689 = vpop.f32.mrb[0].mxu0
    %3690 = vdwg.mxu0
    %v3691 = vadd.f32 %v3516, %v3642
    %v3692 = vadd.f32 %v3517, %v3644
    %v3693 = vadd.f32 %v3518, %v3685
    %v3694 = vadd.f32 %v3519, %v3646
    %v3695 = vadd.f32 %v3520, %v3648
    %v3696 = vadd.f32 %v3521, %v3688
    %s3697 = scalar_lea.vmem [#allocation11], 480
    %v3698 = vld [vmem:[%s3697] sm:$0xff]
    %v3699 = vld [vmem:[%s3697 + $0x8] sm:$0xf]
    %v3700 = vld [vmem:[%s3697 + $0xc] sm:$0xff]
    %v3701 = vld [vmem:[%s3697 + $0x14] sm:$0xf]
    %v3702 = vld [vmem:[%s3697 + $0x18] sm:$0xff]
    %v3703 = vld [vmem:[%s3697 + $0x20] sm:$0xf]
    %v3704 = vld [vmem:[%s3697 + $0x24] sm:$0xff]
    %v3705 = vld [vmem:[%s3697 + $0x2c] sm:$0xf]
    %v3706 = vld [vmem:[%s3697 + $0x30] sm:$0xff]
    %v3707 = vld [vmem:[%s3697 + $0x38] sm:$0xf]
    %v3708 = vld [vmem:[%s3697 + $0x3c] sm:$0xff]
    %v3709 = vld [vmem:[%s3697 + $0x44] sm:$0xf]
    %v3710 = vld [vmem:[%s3697 + $0x48] sm:$0xff]
    %v3711 = vld [vmem:[%s3697 + $0x50] sm:$0xf]
    %v3712 = vld [vmem:[%s3697 + $0x54] sm:$0xff]
    %v3713 = vld [vmem:[%s3697 + $0x5c] sm:$0xf]
    %v3714 = vpack.c.bf16 %v2561, %v2560
    %v3731 = vunpack.c.l.b16 %v3698
    %v3732 = vunpack.c.h.b16 %v3698
    %v3733 = vunpack.c.l.b16 %v3699
    %v3734 = vunpack.c.l.b16 %v3700
    %v3735 = vunpack.c.h.b16 %v3700
    %v3736 = vunpack.c.l.b16 %v3701
    %v3737 = vunpack.c.l.b16 %v3702
    %v3738 = vunpack.c.h.b16 %v3702
    %v3739 = vunpack.c.l.b16 %v3703
    %v3740 = vunpack.c.l.b16 %v3704
    %v3741 = vunpack.c.h.b16 %v3704
    %v3742 = vunpack.c.l.b16 %v3705
    %v3743 = vunpack.c.l.b16 %v3706
    %v3744 = vunpack.c.h.b16 %v3706
    %v3745 = vunpack.c.l.b16 %v3707
    %v3746 = vunpack.c.l.b16 %v3708
    %v3747 = vunpack.c.h.b16 %v3708
    %v3748 = vunpack.c.l.b16 %v3709
    %v3749 = vunpack.c.l.b16 %v3710
    %v3750 = vunpack.c.h.b16 %v3710
    %v3751 = vunpack.c.l.b16 %v3711
    %v3752 = vunpack.c.l.b16 %v3712
    %v3753 = vunpack.c.h.b16 %v3712
    %v3754 = vunpack.c.l.b16 %v3713
    %v3755 = vpack.c.b16 %v3734, %v3731
    %v3756 = vpack.c.b16 %v3735, %v3732
    %v3757 = vpack.c.b16 %v3736, %v3733
    %v3758 = vpack.c.b16 %v3740, %v3737
    %v3759 = vpack.c.b16 %v3741, %v3738
    %v3760 = vpack.c.b16 %v3742, %v3739
    %v3761 = vpack.c.b16 %v3746, %v3743
    %v3762 = vpack.c.b16 %v3747, %v3744
    %v3763 = vpack.c.b16 %v3748, %v3745
    %v3764 = vpack.c.b16 %v3752, %v3749
    %v3765 = vpack.c.b16 %v3753, %v3750
    %v3766 = vpack.c.b16 %v3754, %v3751
    %v3780 = vsel %vm334, %v3714, 0
    %3782 = vmatprep.subr.bf16.mxu0 %v3756
    %3783 = vmatpush1.bf16.msra.mxu0 %v3755
    %3784 = vmatprep.subr.bf16.mxu0 %v3759
    %3785 = vmatpush1.bf16.msra.mxu0 %v3758
    %3786 = vmatprep.subr.bf16.mxu0 %v3762
    %3787 = vmatpush1.bf16.msra.mxu0 %v3761
    %3788 = vmatprep.subr.bf16.mxu0 %v3765
    %3789 = vmatpush1.bf16.msra.mxu0 %v3764
    %3790 = vmatprep.subr.bf16.mxu0 0
    %3791 = vmatpush1.bf16.msra.mxu0 0
    %3792 = vmatprep.subr.bf16.mxu0 0
    %3793 = vmatpush1.bf16.msra.mxu0 0
    %3794 = vmatprep.subr.bf16.mxu0 0
    %3795 = vmatpush1.bf16.msra.mxu0 0
    %3796 = vmatprep.subr.bf16.mxu0 0
    %3797 = vmatpush1.bf16.msra.mxu0 0
    %3798 = vmatprep.subr.bf16.mxu0 0
    %3799 = vmatpush1.bf16.msra.mxu0 0
    %3800 = vmatprep.subr.bf16.mxu0 0
    %3801 = vmatpush1.bf16.msra.mxu0 0
    %3802 = vmatprep.subr.bf16.mxu0 0
    %3803 = vmatpush1.bf16.msra.mxu0 0
    %3804 = vmatprep.subr.bf16.mxu0 0
    %3805 = vmatpush1.bf16.msra.mxu0 0
    %3806 = vmatprep.subr.bf16.mxu0 0
    %3807 = vmatpush1.bf16.msra.mxu0 0
    %3808 = vmatprep.subr.bf16.mxu0 0
    %3809 = vmatpush1.bf16.msra.mxu0 0
    %3810 = vmatprep.subr.bf16.mxu0 0
    %3811 = vmatpush1.bf16.msra.mxu0 0
    %3812 = vmatprep.subr.bf16.mxu0 0
    %3813 = vmatpush1.bf16.msra.mxu0 0
    %3814 = vmatprep.mubr.bf16.mxu0 0
    %3815 = vmatmul.mubr.bf16.gmra.mrb[0].mxu0 %v3780
    %v3816 = vpop.f32.mrb[0].mxu0
    %v3817 = vadd.f32 0.0, %v3816
    %v3818 = vpop.f32.mrb[0].mxu0
    %v3819 = vadd.f32 0.0, %v3818
    %v3820 = vpop.f32.mrb[0].mxu0
    %v3821 = vadd.f32 0.0, %v3820
    %v3822 = vpop.f32.mrb[0].mxu0
    %v3823 = vadd.f32 0.0, %v3822
    %3824 = vdwg.mxu0
    %3825 = vmatprep.subr.bf16.mxu0 0
    %3826 = vmatpush1.bf16.msra.mxu0 %v3757
    %3827 = vmatprep.subr.bf16.mxu0 0
    %3828 = vmatpush1.bf16.msra.mxu0 %v3760
    %3829 = vmatprep.subr.bf16.mxu0 0
    %3830 = vmatpush1.bf16.msra.mxu0 %v3763
    %3831 = vmatprep.subr.bf16.mxu0 0
    %3832 = vmatpush1.bf16.msra.mxu0 %v3766
    %3833 = vmatprep.subr.bf16.mxu0 0
    %3834 = vmatpush1.bf16.msra.mxu0 0
    %3835 = vmatprep.subr.bf16.mxu0 0
    %3836 = vmatpush1.bf16.msra.mxu0 0
    %3837 = vmatprep.subr.bf16.mxu0 0
    %3838 = vmatpush1.bf16.msra.mxu0 0
    %3839 = vmatprep.subr.bf16.mxu0 0
    %3840 = vmatpush1.bf16.msra.mxu0 0
    %3841 = vmatprep.subr.bf16.mxu0 0
    %3842 = vmatpush1.bf16.msra.mxu0 0
    %3843 = vmatprep.subr.bf16.mxu0 0
    %3844 = vmatpush1.bf16.msra.mxu0 0
    %3845 = vmatprep.subr.bf16.mxu0 0
    %3846 = vmatpush1.bf16.msra.mxu0 0
    %3847 = vmatprep.subr.bf16.mxu0 0
    %3848 = vmatpush1.bf16.msra.mxu0 0
    %3849 = vmatprep.subr.bf16.mxu0 0
    %3850 = vmatpush1.bf16.msra.mxu0 0
    %3851 = vmatprep.subr.bf16.mxu0 0
    %3852 = vmatpush1.bf16.msra.mxu0 0
    %3853 = vmatprep.subr.bf16.mxu0 0
    %3854 = vmatpush1.bf16.msra.mxu0 0
    %3855 = vmatprep.subr.bf16.mxu0 0
    %3856 = vmatpush1.bf16.msra.mxu0 0
    %3857 = vmatprep.mubr.bf16.mxu0 0
    %3858 = vmatmul.mubr.bf16.gmra.mrb[0].mxu0 %v3780
    %v3859 = vpop.f32.mrb[0].mxu0
    %v3860 = vadd.f32 0.0, %v3859
    %v3861 = vpop.f32.mrb[0].mxu0
    %v3862 = vpop.f32.mrb[0].mxu0
    %v3863 = vadd.f32 0.0, %v3862
    %v3864 = vpop.f32.mrb[0].mxu0
    %3865 = vdwg.mxu0
    %v3866 = vadd.f32 %v3691, %v3817
    %v3867 = vadd.f32 %v3692, %v3819
    %v3868 = vadd.f32 %v3693, %v3860
    %v3869 = vadd.f32 %v3694, %v3821
    %v3870 = vadd.f32 %v3695, %v3823
    %v3871 = vadd.f32 %v3696, %v3863
    %s3872 = scalar_lea.vmem [#allocation11], 576
    %v3873 = vld [vmem:[%s3872] sm:$0xff]
    %v3874 = vld [vmem:[%s3872 + $0x8] sm:$0xf]
    %v3875 = vld [vmem:[%s3872 + $0xc] sm:$0xff]
    %v3876 = vld [vmem:[%s3872 + $0x14] sm:$0xf]
    %v3877 = vld [vmem:[%s3872 + $0x18] sm:$0xff]
    %v3878 = vld [vmem:[%s3872 + $0x20] sm:$0xf]
    %v3879 = vld [vmem:[%s3872 + $0x24] sm:$0xff]
    %v3880 = vld [vmem:[%s3872 + $0x2c] sm:$0xf]
    %v3881 = vld [vmem:[%s3872 + $0x30] sm:$0xff]
    %v3882 = vld [vmem:[%s3872 + $0x38] sm:$0xf]
    %v3883 = vld [vmem:[%s3872 + $0x3c] sm:$0xff]
    %v3884 = vld [vmem:[%s3872 + $0x44] sm:$0xf]
    %v3885 = vld [vmem:[%s3872 + $0x48] sm:$0xff]
    %v3886 = vld [vmem:[%s3872 + $0x50] sm:$0xf]
    %v3887 = vld [vmem:[%s3872 + $0x54] sm:$0xff]
    %v3888 = vld [vmem:[%s3872 + $0x5c] sm:$0xf]
    %v3889 = vpack.c.bf16 %v2563, %v2562
    %v3906 = vunpack.c.l.b16 %v3873
    %v3907 = vunpack.c.h.b16 %v3873
    %v3908 = vunpack.c.l.b16 %v3874
    %v3909 = vunpack.c.l.b16 %v3875
    %v3910 = vunpack.c.h.b16 %v3875
    %v3911 = vunpack.c.l.b16 %v3876
    %v3912 = vunpack.c.l.b16 %v3877
    %v3913 = vunpack.c.h.b16 %v3877
    %v3914 = vunpack.c.l.b16 %v3878
    %v3915 = vunpack.c.l.b16 %v3879
    %v3916 = vunpack.c.h.b16 %v3879
    %v3917 = vunpack.c.l.b16 %v3880
    %v3918 = vunpack.c.l.b16 %v3881
    %v3919 = vunpack.c.h.b16 %v3881
    %v3920 = vunpack.c.l.b16 %v3882
    %v3921 = vunpack.c.l.b16 %v3883
    %v3922 = vunpack.c.h.b16 %v3883
    %v3923 = vunpack.c.l.b16 %v3884
    %v3924 = vunpack.c.l.b16 %v3885
    %v3925 = vunpack.c.h.b16 %v3885
    %v3926 = vunpack.c.l.b16 %v3886
    %v3927 = vunpack.c.l.b16 %v3887
    %v3928 = vunpack.c.h.b16 %v3887
    %v3929 = vunpack.c.l.b16 %v3888
    %v3930 = vpack.c.b16 %v3909, %v3906
    %v3931 = vpack.c.b16 %v3910, %v3907
    %v3932 = vpack.c.b16 %v3911, %v3908
    %v3933 = vpack.c.b16 %v3915, %v3912
    %v3934 = vpack.c.b16 %v3916, %v3913
    %v3935 = vpack.c.b16 %v3917, %v3914
    %v3936 = vpack.c.b16 %v3921, %v3918
    %v3937 = vpack.c.b16 %v3922, %v3919
    %v3938 = vpack.c.b16 %v3923, %v3920
    %v3939 = vpack.c.b16 %v3927, %v3924
    %v3940 = vpack.c.b16 %v3928, %v3925
    %v3941 = vpack.c.b16 %v3929, %v3926
    %v3955 = vsel %vm334, %v3889, 0
    %3957 = vmatprep.subr.bf16.mxu0 %v3931
    %3958 = vmatpush1.bf16.msra.mxu0 %v3930
    %3959 = vmatprep.subr.bf16.mxu0 %v3934
    %3960 = vmatpush1.bf16.msra.mxu0 %v3933
    %3961 = vmatprep.subr.bf16.mxu0 %v3937
    %3962 = vmatpush1.bf16.msra.mxu0 %v3936
    %3963 = vmatprep.subr.bf16.mxu0 %v3940
    %3964 = vmatpush1.bf16.msra.mxu0 %v3939
    %3965 = vmatprep.subr.bf16.mxu0 0
    %3966 = vmatpush1.bf16.msra.mxu0 0
    %3967 = vmatprep.subr.bf16.mxu0 0
    %3968 = vmatpush1.bf16.msra.mxu0 0
    %3969 = vmatprep.subr.bf16.mxu0 0
    %3970 = vmatpush1.bf16.msra.mxu0 0
    %3971 = vmatprep.subr.bf16.mxu0 0
    %3972 = vmatpush1.bf16.msra.mxu0 0
    %3973 = vmatprep.subr.bf16.mxu0 0
    %3974 = vmatpush1.bf16.msra.mxu0 0
    %3975 = vmatprep.subr.bf16.mxu0 0
    %3976 = vmatpush1.bf16.msra.mxu0 0
    %3977 = vmatprep.subr.bf16.mxu0 0
    %3978 = vmatpush1.bf16.msra.mxu0 0
    %3979 = vmatprep.subr.bf16.mxu0 0
    %3980 = vmatpush1.bf16.msra.mxu0 0
    %3981 = vmatprep.subr.bf16.mxu0 0
    %3982 = vmatpush1.bf16.msra.mxu0 0
    %3983 = vmatprep.subr.bf16.mxu0 0
    %3984 = vmatpush1.bf16.msra.mxu0 0
    %3985 = vmatprep.subr.bf16.mxu0 0
    %3986 = vmatpush1.bf16.msra.mxu0 0
    %3987 = vmatprep.subr.bf16.mxu0 0
    %3988 = vmatpush1.bf16.msra.mxu0 0
    %3989 = vmatprep.mubr.bf16.mxu0 0
    %3990 = vmatmul.mubr.bf16.gmra.mrb[0].mxu0 %v3955
    %v3991 = vpop.f32.mrb[0].mxu0
    %v3992 = vadd.f32 0.0, %v3991
    %v3993 = vpop.f32.mrb[0].mxu0
    %v3994 = vadd.f32 0.0, %v3993
    %v3995 = vpop.f32.mrb[0].mxu0
    %v3996 = vadd.f32 0.0, %v3995
    %v3997 = vpop.f32.mrb[0].mxu0
    %v3998 = vadd.f32 0.0, %v3997
    %3999 = vdwg.mxu0
    %4000 = vmatprep.subr.bf16.mxu0 0
    %4001 = vmatpush1.bf16.msra.mxu0 %v3932
    %4002 = vmatprep.subr.bf16.mxu0 0
    %4003 = vmatpush1.bf16.msra.mxu0 %v3935
    %4004 = vmatprep.subr.bf16.mxu0 0
    %4005 = vmatpush1.bf16.msra.mxu0 %v3938
    %4006 = vmatprep.subr.bf16.mxu0 0
    %4007 = vmatpush1.bf16.msra.mxu0 %v3941
    %4008 = vmatprep.subr.bf16.mxu0 0
    %4009 = vmatpush1.bf16.msra.mxu0 0
    %4010 = vmatprep.subr.bf16.mxu0 0
    %4011 = vmatpush1.bf16.msra.mxu0 0
    %4012 = vmatprep.subr.bf16.mxu0 0
    %4013 = vmatpush1.bf16.msra.mxu0 0
    %4014 = vmatprep.subr.bf16.mxu0 0
    %4015 = vmatpush1.bf16.msra.mxu0 0
    %4016 = vmatprep.subr.bf16.mxu0 0
    %4017 = vmatpush1.bf16.msra.mxu0 0
    %4018 = vmatprep.subr.bf16.mxu0 0
    %4019 = vmatpush1.bf16.msra.mxu0 0
    %4020 = vmatprep.subr.bf16.mxu0 0
    %4021 = vmatpush1.bf16.msra.mxu0 0
    %4022 = vmatprep.subr.bf16.mxu0 0
    %4023 = vmatpush1.bf16.msra.mxu0 0
    %4024 = vmatprep.subr.bf16.mxu0 0
    %4025 = vmatpush1.bf16.msra.mxu0 0
    %4026 = vmatprep.subr.bf16.mxu0 0
    %4027 = vmatpush1.bf16.msra.mxu0 0
    %4028 = vmatprep.subr.bf16.mxu0 0
    %4029 = vmatpush1.bf16.msra.mxu0 0
    %4030 = vmatprep.subr.bf16.mxu0 0
    %4031 = vmatpush1.bf16.msra.mxu0 0
    %4032 = vmatprep.mubr.bf16.mxu0 0
    %4033 = vmatmul.mubr.bf16.gmra.mrb[0].mxu0 %v3955
    %v4034 = vpop.f32.mrb[0].mxu0
    %v4035 = vadd.f32 0.0, %v4034
    %v4036 = vpop.f32.mrb[0].mxu0
    %v4037 = vpop.f32.mrb[0].mxu0
    %v4038 = vadd.f32 0.0, %v4037
    %v4039 = vpop.f32.mrb[0].mxu0
    %4040 = vdwg.mxu0
    %v4041 = vadd.f32 %v3866, %v3992
    %v4042 = vadd.f32 %v3867, %v3994
    %v4043 = vadd.f32 %v3868, %v4035
    %v4044 = vadd.f32 %v3869, %v3996
    %v4045 = vadd.f32 %v3870, %v3998
    %v4046 = vadd.f32 %v3871, %v4038
    %vm4047 = vcmp.ge.f32.partialorder %v4041, 0.0
    %vm4048 = vcmp.ge.f32.partialorder %v4042, 0.0
    %vm4049 = vcmp.ge.f32.partialorder %v4043, 0.0
    %vm4050 = vcmp.ge.f32.partialorder %v4044, 0.0
    %vm4051 = vcmp.ge.f32.partialorder %v4045, 0.0
    %vm4052 = vcmp.ge.f32.partialorder %v4046, 0.0
    %v4053 = vmul.f32 %v4041, 0.2
    %v4054 = vmul.f32 %v4042, 0.2
    %v4055 = vmul.f32 %v4043, 0.2
    %v4056 = vmul.f32 %v4044, 0.2
    %v4057 = vmul.f32 %v4045, 0.2
    %v4058 = vmul.f32 %v4046, 0.2
    %v4059 = vsel %vm4047, %v4041, %v4053
    %v4060 = vsel %vm4048, %v4042, %v4054
    %v4061 = vsel %vm4049, %v4043, %v4055
    %v4062 = vsel %vm4050, %v4044, %v4056
    %v4063 = vsel %vm4051, %v4045, %v4057
    %v4064 = vsel %vm4052, %v4046, %v4058
    %v4065 = vld [vmem:[#allocation14] sm:$0xff]
    %v4066 = vld [vmem:[#allocation14 + $0x8] sm:$0xf]
    %v4067 = vld [vmem:[#allocation14 + $0xc] sm:$0xff]
    %v4068 = vld [vmem:[#allocation14 + $0x14] sm:$0xf]
    %v4069 = vld [vmem:[#allocation14 + $0x18] sm:$0xff]
    %v4070 = vld [vmem:[#allocation14 + $0x20] sm:$0xf]
    %v4071 = vld [vmem:[#allocation14 + $0x24] sm:$0xff]
    %v4072 = vld [vmem:[#allocation14 + $0x2c] sm:$0xf]
    %v4073 = vld [vmem:[#allocation14 + $0x30] sm:$0xff]
    %v4074 = vld [vmem:[#allocation14 + $0x38] sm:$0xf]
    %v4075 = vld [vmem:[#allocation14 + $0x3c] sm:$0xff]
    %v4076 = vld [vmem:[#allocation14 + $0x44] sm:$0xf]
    %v4077 = vld [vmem:[#allocation14 + $0x48] sm:$0xff]
    %v4078 = vld [vmem:[#allocation14 + $0x50] sm:$0xf]
    %v4079 = vld [vmem:[#allocation14 + $0x54] sm:$0xff]
    %v4080 = vld [vmem:[#allocation14 + $0x5c] sm:$0xf]
    %v4081 = vld [vmem:[#allocation14 + $0x60] sm:$0xff]
    %v4082 = vld [vmem:[#allocation14 + $0x68] sm:$0xf]
    %v4083 = vld [vmem:[#allocation14 + $0x6c] sm:$0xff]
    %v4084 = vld [vmem:[#allocation14 + $0x74] sm:$0xf]
    %v4085 = vld [vmem:[#allocation14 + $0x78] sm:$0xff]
    %v4086 = vld [vmem:[#allocation14 + $0x80] sm:$0xf]
    %v4087 = vld [vmem:[#allocation14 + $0x84] sm:$0xff]
    %v4088 = vld [vmem:[#allocation14 + $0x8c] sm:$0xf]
    %v4089 = vld [vmem:[#allocation14 + $0x90] sm:$0xff]
    %v4090 = vld [vmem:[#allocation14 + $0x98] sm:$0xf]
    %v4091 = vld [vmem:[#allocation14 + $0x9c] sm:$0xff]
    %v4092 = vld [vmem:[#allocation14 + $0xa4] sm:$0xf]
    %v4093 = vld [vmem:[#allocation14 + $0xa8] sm:$0xff]
    %v4094 = vld [vmem:[#allocation14 + $0xb0] sm:$0xf]
    %v4095 = vld [vmem:[#allocation14 + $0xb4] sm:$0xff]
    %v4096 = vld [vmem:[#allocation14 + $0xbc] sm:$0xf]
    %v4097 = vld [vmem:[#allocation14 + $0xc0] sm:$0xff]
    %v4098 = vld [vmem:[#allocation14 + $0xc8] sm:$0xf]
    %v4099 = vld [vmem:[#allocation14 + $0xcc] sm:$0xff]
    %v4100 = vld [vmem:[#allocation14 + $0xd4] sm:$0xf]
    %v4101 = vld [vmem:[#allocation14 + $0xd8] sm:$0xff]
    %v4102 = vld [vmem:[#allocation14 + $0xe0] sm:$0xf]
    %v4103 = vld [vmem:[#allocation14 + $0xe4] sm:$0xff]
    %v4104 = vld [vmem:[#allocation14 + $0xec] sm:$0xf]
    %v4105 = vld [vmem:[#allocation14 + $0xf0] sm:$0xff]
    %v4106 = vld [vmem:[#allocation14 + $0xf8] sm:$0xf]
    %v4107 = vld [vmem:[#allocation14 + $0xfc] sm:$0xff]
    %v4108 = vld [vmem:[#allocation14 + $0x104] sm:$0xf]
    %v4109 = vld [vmem:[#allocation14 + $0x108] sm:$0xff]
    %v4110 = vld [vmem:[#allocation14 + $0x110] sm:$0xf]
    %v4111 = vld [vmem:[#allocation14 + $0x114] sm:$0xff]
    %v4112 = vld [vmem:[#allocation14 + $0x11c] sm:$0xf]
    %v4113 = vld [vmem:[#allocation14 + $0x120] sm:$0xff]
    %v4114 = vld [vmem:[#allocation14 + $0x128] sm:$0xf]
    %v4115 = vld [vmem:[#allocation14 + $0x12c] sm:$0xff]
    %v4116 = vld [vmem:[#allocation14 + $0x134] sm:$0xf]
    %v4117 = vld [vmem:[#allocation14 + $0x138] sm:$0xff]
    %v4118 = vld [vmem:[#allocation14 + $0x140] sm:$0xf]
    %v4119 = vld [vmem:[#allocation14 + $0x144] sm:$0xff]
    %v4120 = vld [vmem:[#allocation14 + $0x14c] sm:$0xf]
    %v4121 = vld [vmem:[#allocation14 + $0x150] sm:$0xff]
    %v4122 = vld [vmem:[#allocation14 + $0x158] sm:$0xf]
    %v4123 = vld [vmem:[#allocation14 + $0x15c] sm:$0xff]
    %v4124 = vld [vmem:[#allocation14 + $0x164] sm:$0xf]
    %v4125 = vld [vmem:[#allocation14 + $0x168] sm:$0xff]
    %v4126 = vld [vmem:[#allocation14 + $0x170] sm:$0xf]
    %v4127 = vld [vmem:[#allocation14 + $0x174] sm:$0xff]
    %v4128 = vld [vmem:[#allocation14 + $0x17c] sm:$0xf]
    %v4129 = vld [vmem:[#allocation14 + $0x180] sm:$0xff]
    %v4130 = vld [vmem:[#allocation14 + $0x188] sm:$0xf]
    %v4131 = vld [vmem:[#allocation14 + $0x18c] sm:$0xff]
    %v4132 = vld [vmem:[#allocation14 + $0x194] sm:$0xf]
    %v4133 = vld [vmem:[#allocation14 + $0x198] sm:$0xff]
    %v4134 = vld [vmem:[#allocation14 + $0x1a0] sm:$0xf]
    %v4135 = vld [vmem:[#allocation14 + $0x1a4] sm:$0xff]
    %v4136 = vld [vmem:[#allocation14 + $0x1ac] sm:$0xf]
    %v4137 = vld [vmem:[#allocation14 + $0x1b0] sm:$0xff]
    %v4138 = vld [vmem:[#allocation14 + $0x1b8] sm:$0xf]
    %v4139 = vld [vmem:[#allocation14 + $0x1bc] sm:$0xff]
    %v4140 = vld [vmem:[#allocation14 + $0x1c4] sm:$0xf]
    %v4141 = vld [vmem:[#allocation14 + $0x1c8] sm:$0xff]
    %v4142 = vld [vmem:[#allocation14 + $0x1d0] sm:$0xf]
    %v4143 = vld [vmem:[#allocation14 + $0x1d4] sm:$0xff]
    %v4144 = vld [vmem:[#allocation14 + $0x1dc] sm:$0xf]
    %v4145 = vld [vmem:[#allocation14 + $0x1e0] sm:$0xff]
    %v4146 = vld [vmem:[#allocation14 + $0x1e8] sm:$0xf]
    %v4147 = vld [vmem:[#allocation14 + $0x1ec] sm:$0xff]
    %v4148 = vld [vmem:[#allocation14 + $0x1f4] sm:$0xf]
    %v4149 = vld [vmem:[#allocation14 + $0x1f8] sm:$0xff]
    %v4150 = vld [vmem:[#allocation14 + $0x200] sm:$0xf]
    %v4151 = vld [vmem:[#allocation14 + $0x204] sm:$0xff]
    %v4152 = vld [vmem:[#allocation14 + $0x20c] sm:$0xf]
    %v4153 = vld [vmem:[#allocation14 + $0x210] sm:$0xff]
    %v4154 = vld [vmem:[#allocation14 + $0x218] sm:$0xf]
    %v4155 = vld [vmem:[#allocation14 + $0x21c] sm:$0xff]
    %v4156 = vld [vmem:[#allocation14 + $0x224] sm:$0xf]
    %v4157 = vld [vmem:[#allocation14 + $0x228] sm:$0xff]
    %v4158 = vld [vmem:[#allocation14 + $0x230] sm:$0xf]
    %v4159 = vld [vmem:[#allocation14 + $0x234] sm:$0xff]
    %v4160 = vld [vmem:[#allocation14 + $0x23c] sm:$0xf]
    %v4161 = vpack.c.bf16 %v4062, %v4059
    %v4162 = vpack.c.bf16 %v4063, %v4060
    %v4163 = vpack.c.bf16 %v4064, %v4061
    %v4164 = vlaneseq
    %v4165 = vshrl.u32 %v4164, 7
    %v4166 = vsub.s32 5, %v4165
    %v4167 = vrot.slane %v225, %v4166
    %v4168 = vlaneseq
    %v4169 = vshrl.u32 %v4168, 7
    %v4170 = vsub.s32 5, %v4169
    %v4171 = vrot.slane %v226, %v4170
    %v4172 = vlaneseq
    %v4173 = vshrl.u32 %v4172, 7
    %v4174 = vsub.s32 5, %v4173
    %v4175 = vrot.slane %v227, %v4174
    %v4272 = vunpack.c.l.b16 %v4065
    %v4273 = vunpack.c.h.b16 %v4065
    %v4274 = vunpack.c.l.b16 %v4066
    %v4275 = vunpack.c.l.b16 %v4067
    %v4276 = vunpack.c.h.b16 %v4067
    %v4277 = vunpack.c.l.b16 %v4068
    %v4278 = vunpack.c.l.b16 %v4069
    %v4279 = vunpack.c.h.b16 %v4069
    %v4280 = vunpack.c.l.b16 %v4070
    %v4281 = vunpack.c.l.b16 %v4071
    %v4282 = vunpack.c.h.b16 %v4071
    %v4283 = vunpack.c.l.b16 %v4072
    %v4284 = vunpack.c.l.b16 %v4073
    %v4285 = vunpack.c.h.b16 %v4073
    %v4286 = vunpack.c.l.b16 %v4074
    %v4287 = vunpack.c.l.b16 %v4075
    %v4288 = vunpack.c.h.b16 %v4075
    %v4289 = vunpack.c.l.b16 %v4076
    %v4290 = vunpack.c.l.b16 %v4077
    %v4291 = vunpack.c.h.b16 %v4077
    %v4292 = vunpack.c.l.b16 %v4078
    %v4293 = vunpack.c.l.b16 %v4079
    %v4294 = vunpack.c.h.b16 %v4079
    %v4295 = vunpack.c.l.b16 %v4080
    %v4296 = vunpack.c.l.b16 %v4081
    %v4297 = vunpack.c.h.b16 %v4081
    %v4298 = vunpack.c.l.b16 %v4082
    %v4299 = vunpack.c.l.b16 %v4083
    %v4300 = vunpack.c.h.b16 %v4083
    %v4301 = vunpack.c.l.b16 %v4084
    %v4302 = vunpack.c.l.b16 %v4085
    %v4303 = vunpack.c.h.b16 %v4085
    %v4304 = vunpack.c.l.b16 %v4086
    %v4305 = vunpack.c.l.b16 %v4087
    %v4306 = vunpack.c.h.b16 %v4087
    %v4307 = vunpack.c.l.b16 %v4088
    %v4308 = vunpack.c.l.b16 %v4089
    %v4309 = vunpack.c.h.b16 %v4089
    %v4310 = vunpack.c.l.b16 %v4090
    %v4311 = vunpack.c.l.b16 %v4091
    %v4312 = vunpack.c.h.b16 %v4091
    %v4313 = vunpack.c.l.b16 %v4092
    %v4314 = vunpack.c.l.b16 %v4093
    %v4315 = vunpack.c.h.b16 %v4093
    %v4316 = vunpack.c.l.b16 %v4094
    %v4317 = vunpack.c.l.b16 %v4095
    %v4318 = vunpack.c.h.b16 %v4095
    %v4319 = vunpack.c.l.b16 %v4096
    %v4320 = vunpack.c.l.b16 %v4097
    %v4321 = vunpack.c.h.b16 %v4097
    %v4322 = vunpack.c.l.b16 %v4098
    %v4323 = vunpack.c.l.b16 %v4099
    %v4324 = vunpack.c.h.b16 %v4099
    %v4325 = vunpack.c.l.b16 %v4100
    %v4326 = vunpack.c.l.b16 %v4101
    %v4327 = vunpack.c.h.b16 %v4101
    %v4328 = vunpack.c.l.b16 %v4102
    %v4329 = vunpack.c.l.b16 %v4103
    %v4330 = vunpack.c.h.b16 %v4103
    %v4331 = vunpack.c.l.b16 %v4104
    %v4332 = vunpack.c.l.b16 %v4105
    %v4333 = vunpack.c.h.b16 %v4105
    %v4334 = vunpack.c.l.b16 %v4106
    %v4335 = vunpack.c.l.b16 %v4107
    %v4336 = vunpack.c.h.b16 %v4107
    %v4337 = vunpack.c.l.b16 %v4108
    %v4338 = vunpack.c.l.b16 %v4109
    %v4339 = vunpack.c.h.b16 %v4109
    %v4340 = vunpack.c.l.b16 %v4110
    %v4341 = vunpack.c.l.b16 %v4111
    %v4342 = vunpack.c.h.b16 %v4111
    %v4343 = vunpack.c.l.b16 %v4112
    %v4344 = vunpack.c.l.b16 %v4113
    %v4345 = vunpack.c.h.b16 %v4113
    %v4346 = vunpack.c.l.b16 %v4114
    %v4347 = vunpack.c.l.b16 %v4115
    %v4348 = vunpack.c.h.b16 %v4115
    %v4349 = vunpack.c.l.b16 %v4116
    %v4350 = vunpack.c.l.b16 %v4117
    %v4351 = vunpack.c.h.b16 %v4117
    %v4352 = vunpack.c.l.b16 %v4118
    %v4353 = vunpack.c.l.b16 %v4119
    %v4354 = vunpack.c.h.b16 %v4119
    %v4355 = vunpack.c.l.b16 %v4120
    %v4356 = vunpack.c.l.b16 %v4121
    %v4357 = vunpack.c.h.b16 %v4121
    %v4358 = vunpack.c.l.b16 %v4122
    %v4359 = vunpack.c.l.b16 %v4123
    %v4360 = vunpack.c.h.b16 %v4123
    %v4361 = vunpack.c.l.b16 %v4124
    %v4362 = vunpack.c.l.b16 %v4125
    %v4363 = vunpack.c.h.b16 %v4125
    %v4364 = vunpack.c.l.b16 %v4126
    %v4365 = vunpack.c.l.b16 %v4127
    %v4366 = vunpack.c.h.b16 %v4127
    %v4367 = vunpack.c.l.b16 %v4128
    %v4368 = vunpack.c.l.b16 %v4129
    %v4369 = vunpack.c.h.b16 %v4129
    %v4370 = vunpack.c.l.b16 %v4130
    %v4371 = vunpack.c.l.b16 %v4131
    %v4372 = vunpack.c.h.b16 %v4131
    %v4373 = vunpack.c.l.b16 %v4132
    %v4374 = vunpack.c.l.b16 %v4133
    %v4375 = vunpack.c.h.b16 %v4133
    %v4376 = vunpack.c.l.b16 %v4134
    %v4377 = vunpack.c.l.b16 %v4135
    %v4378 = vunpack.c.h.b16 %v4135
    %v4379 = vunpack.c.l.b16 %v4136
    %v4380 = vunpack.c.l.b16 %v4137
    %v4381 = vunpack.c.h.b16 %v4137
    %v4382 = vunpack.c.l.b16 %v4138
    %v4383 = vunpack.c.l.b16 %v4139
    %v4384 = vunpack.c.h.b16 %v4139
    %v4385 = vunpack.c.l.b16 %v4140
    %v4386 = vunpack.c.l.b16 %v4141
    %v4387 = vunpack.c.h.b16 %v4141
    %v4388 = vunpack.c.l.b16 %v4142
    %v4389 = vunpack.c.l.b16 %v4143
    %v4390 = vunpack.c.h.b16 %v4143
    %v4391 = vunpack.c.l.b16 %v4144
    %v4392 = vunpack.c.l.b16 %v4145
    %v4393 = vunpack.c.h.b16 %v4145
    %v4394 = vunpack.c.l.b16 %v4146
    %v4395 = vunpack.c.l.b16 %v4147
    %v4396 = vunpack.c.h.b16 %v4147
    %v4397 = vunpack.c.l.b16 %v4148
    %v4398 = vunpack.c.l.b16 %v4149
    %v4399 = vunpack.c.h.b16 %v4149
    %v4400 = vunpack.c.l.b16 %v4150
    %v4401 = vunpack.c.l.b16 %v4151
    %v4402 = vunpack.c.h.b16 %v4151
    %v4403 = vunpack.c.l.b16 %v4152
    %v4404 = vunpack.c.l.b16 %v4153
    %v4405 = vunpack.c.h.b16 %v4153
    %v4406 = vunpack.c.l.b16 %v4154
    %v4407 = vunpack.c.l.b16 %v4155
    %v4408 = vunpack.c.h.b16 %v4155
    %v4409 = vunpack.c.l.b16 %v4156
    %v4410 = vunpack.c.l.b16 %v4157
    %v4411 = vunpack.c.h.b16 %v4157
    %v4412 = vunpack.c.l.b16 %v4158
    %v4413 = vunpack.c.l.b16 %v4159
    %v4414 = vunpack.c.h.b16 %v4159
    %v4415 = vunpack.c.l.b16 %v4160
    %v4416 = vpack.c.b16 %v4275, %v4272
    %v4417 = vpack.c.b16 %v4276, %v4273
    %v4418 = vpack.c.b16 %v4277, %v4274
    %v4419 = vpack.c.b16 %v4281, %v4278
    %v4420 = vpack.c.b16 %v4282, %v4279
    %v4421 = vpack.c.b16 %v4283, %v4280
    %v4422 = vpack.c.b16 %v4287, %v4284
    %v4423 = vpack.c.b16 %v4288, %v4285
    %v4424 = vpack.c.b16 %v4289, %v4286
    %v4425 = vpack.c.b16 %v4293, %v4290
    %v4426 = vpack.c.b16 %v4294, %v4291
    %v4427 = vpack.c.b16 %v4295, %v4292
    %v4428 = vpack.c.b16 %v4299, %v4296
    %v4429 = vpack.c.b16 %v4300, %v4297
    %v4430 = vpack.c.b16 %v4301, %v4298
    %v4431 = vpack.c.b16 %v4305, %v4302
    %v4432 = vpack.c.b16 %v4306, %v4303
    %v4433 = vpack.c.b16 %v4307, %v4304
    %v4434 = vpack.c.b16 %v4311, %v4308
    %v4435 = vpack.c.b16 %v4312, %v4309
    %v4436 = vpack.c.b16 %v4313, %v4310
    %v4437 = vpack.c.b16 %v4317, %v4314
    %v4438 = vpack.c.b16 %v4318, %v4315
    %v4439 = vpack.c.b16 %v4319, %v4316
    %v4440 = vpack.c.b16 %v4323, %v4320
    %v4441 = vpack.c.b16 %v4324, %v4321
    %v4442 = vpack.c.b16 %v4325, %v4322
    %v4443 = vpack.c.b16 %v4329, %v4326
    %v4444 = vpack.c.b16 %v4330, %v4327
    %v4445 = vpack.c.b16 %v4331, %v4328
    %v4446 = vpack.c.b16 %v4335, %v4332
    %v4447 = vpack.c.b16 %v4336, %v4333
    %v4448 = vpack.c.b16 %v4337, %v4334
    %v4449 = vpack.c.b16 %v4341, %v4338
    %v4450 = vpack.c.b16 %v4342, %v4339
    %v4451 = vpack.c.b16 %v4343, %v4340
    %v4452 = vpack.c.b16 %v4347, %v4344
    %v4453 = vpack.c.b16 %v4348, %v4345
    %v4454 = vpack.c.b16 %v4349, %v4346
    %v4455 = vpack.c.b16 %v4353, %v4350
    %v4456 = vpack.c.b16 %v4354, %v4351
    %v4457 = vpack.c.b16 %v4355, %v4352
    %v4458 = vpack.c.b16 %v4359, %v4356
    %v4459 = vpack.c.b16 %v4360, %v4357
    %v4460 = vpack.c.b16 %v4361, %v4358
    %v4461 = vpack.c.b16 %v4365, %v4362
    %v4462 = vpack.c.b16 %v4366, %v4363
    %v4463 = vpack.c.b16 %v4367, %v4364
    %v4464 = vpack.c.b16 %v4371, %v4368
    %v4465 = vpack.c.b16 %v4372, %v4369
    %v4466 = vpack.c.b16 %v4373, %v4370
    %v4467 = vpack.c.b16 %v4377, %v4374
    %v4468 = vpack.c.b16 %v4378, %v4375
    %v4469 = vpack.c.b16 %v4379, %v4376
    %v4470 = vpack.c.b16 %v4383, %v4380
    %v4471 = vpack.c.b16 %v4384, %v4381
    %v4472 = vpack.c.b16 %v4385, %v4382
    %v4473 = vpack.c.b16 %v4389, %v4386
    %v4474 = vpack.c.b16 %v4390, %v4387
    %v4475 = vpack.c.b16 %v4391, %v4388
    %v4476 = vpack.c.b16 %v4395, %v4392
    %v4477 = vpack.c.b16 %v4396, %v4393
    %v4478 = vpack.c.b16 %v4397, %v4394
    %v4479 = vpack.c.b16 %v4401, %v4398
    %v4480 = vpack.c.b16 %v4402, %v4399
    %v4481 = vpack.c.b16 %v4403, %v4400
    %v4482 = vpack.c.b16 %v4407, %v4404
    %v4483 = vpack.c.b16 %v4408, %v4405
    %v4484 = vpack.c.b16 %v4409, %v4406
    %v4485 = vpack.c.b16 %v4413, %v4410
    %v4486 = vpack.c.b16 %v4414, %v4411
    %v4487 = vpack.c.b16 %v4415, %v4412
    %4560 = vmatprep.subr.bf16.mxu0 %v4417
    %4561 = vmatpush1.bf16.msra.mxu0 %v4416
    %4562 = vmatprep.subr.bf16.mxu0 %v4420
    %4563 = vmatpush1.bf16.msra.mxu0 %v4419
    %4564 = vmatprep.subr.bf16.mxu0 %v4423
    %4565 = vmatpush1.bf16.msra.mxu0 %v4422
    %4566 = vmatprep.subr.bf16.mxu0 %v4426
    %4567 = vmatpush1.bf16.msra.mxu0 %v4425
    %4568 = vmatprep.subr.bf16.mxu0 %v4429
    %4569 = vmatpush1.bf16.msra.mxu0 %v4428
    %4570 = vmatprep.subr.bf16.mxu0 %v4432
    %4571 = vmatpush1.bf16.msra.mxu0 %v4431
    %4572 = vmatprep.subr.bf16.mxu0 %v4435
    %4573 = vmatpush1.bf16.msra.mxu0 %v4434
    %4574 = vmatprep.subr.bf16.mxu0 %v4438
    %4575 = vmatpush1.bf16.msra.mxu0 %v4437
    %4576 = vmatprep.subr.bf16.mxu0 %v4441
    %4577 = vmatpush1.bf16.msra.mxu0 %v4440
    %4578 = vmatprep.subr.bf16.mxu0 %v4444
    %4579 = vmatpush1.bf16.msra.mxu0 %v4443
    %4580 = vmatprep.subr.bf16.mxu0 %v4447
    %4581 = vmatpush1.bf16.msra.mxu0 %v4446
    %4582 = vmatprep.subr.bf16.mxu0 %v4450
    %4583 = vmatpush1.bf16.msra.mxu0 %v4449
    %4584 = vmatprep.subr.bf16.mxu0 %v4453
    %4585 = vmatpush1.bf16.msra.mxu0 %v4452
    %4586 = vmatprep.subr.bf16.mxu0 %v4456
    %4587 = vmatpush1.bf16.msra.mxu0 %v4455
    %4588 = vmatprep.subr.bf16.mxu0 %v4459
    %4589 = vmatpush1.bf16.msra.mxu0 %v4458
    %4590 = vmatprep.subr.bf16.mxu0 %v4462
    %4591 = vmatpush1.bf16.msra.mxu0 %v4461
    %4592 = vmatprep.mubr.bf16.mxu0 %v4162
    %4593 = vmatmul.mubr.bf16.gmra.mrb[0].mxu0 %v4161
    %v4594 = vpop.f32.mrb[0].mxu0
    %v4595 = vadd.f32 %v4167, %v4594
    %v4596 = vpop.f32.mrb[0].mxu0
    %v4597 = vadd.f32 %v4171, %v4596
    %v4598 = vpop.f32.mrb[0].mxu0
    %v4599 = vadd.f32 %v4167, %v4598
    %v4600 = vpop.f32.mrb[0].mxu0
    %v4601 = vadd.f32 %v4171, %v4600
    %4602 = vdwg.mxu0
    %4603 = vmatprep.subr.bf16.mxu0 %v4465
    %4604 = vmatpush1.bf16.msra.mxu0 %v4464
    %4605 = vmatprep.subr.bf16.mxu0 %v4468
    %4606 = vmatpush1.bf16.msra.mxu0 %v4467
    %4607 = vmatprep.subr.bf16.mxu0 %v4471
    %4608 = vmatpush1.bf16.msra.mxu0 %v4470
    %4609 = vmatprep.subr.bf16.mxu0 %v4474
    %4610 = vmatpush1.bf16.msra.mxu0 %v4473
    %4611 = vmatprep.subr.bf16.mxu0 %v4477
    %4612 = vmatpush1.bf16.msra.mxu0 %v4476
    %4613 = vmatprep.subr.bf16.mxu0 %v4480
    %4614 = vmatpush1.bf16.msra.mxu0 %v4479
    %4615 = vmatprep.subr.bf16.mxu0 %v4483
    %4616 = vmatpush1.bf16.msra.mxu0 %v4482
    %4617 = vmatprep.subr.bf16.mxu0 %v4486
    %4618 = vmatpush1.bf16.msra.mxu0 %v4485
    %4619 = vmatprep.subr.bf16.mxu0 0
    %4620 = vmatpush1.bf16.msra.mxu0 0
    %4621 = vmatprep.subr.bf16.mxu0 0
    %4622 = vmatpush1.bf16.msra.mxu0 0
    %4623 = vmatprep.subr.bf16.mxu0 0
    %4624 = vmatpush1.bf16.msra.mxu0 0
    %4625 = vmatprep.subr.bf16.mxu0 0
    %4626 = vmatpush1.bf16.msra.mxu0 0
    %4627 = vmatprep.subr.bf16.mxu0 0
    %4628 = vmatpush1.bf16.msra.mxu0 0
    %4629 = vmatprep.subr.bf16.mxu0 0
    %4630 = vmatpush1.bf16.msra.mxu0 0
    %4631 = vmatprep.subr.bf16.mxu0 0
    %4632 = vmatpush1.bf16.msra.mxu0 0
    %4633 = vmatprep.subr.bf16.mxu0 0
    %4634 = vmatpush1.bf16.msra.mxu0 0
    %4635 = vmatprep.mubr.bf16.mxu0 0
    %4636 = vmatmul.mubr.bf16.gmra.mrb[0].mxu0 %v4163
    %v4637 = vpop.f32.mrb[0].mxu0
    %v4638 = vadd.f32 %v4595, %v4637
    %v4639 = vpop.f32.mrb[0].mxu0
    %v4640 = vadd.f32 %v4597, %v4639
    %v4641 = vpop.f32.mrb[0].mxu0
    %v4642 = vadd.f32 %v4599, %v4641
    %v4643 = vpop.f32.mrb[0].mxu0
    %v4644 = vadd.f32 %v4601, %v4643
    %4645 = vdwg.mxu0
    %4646 = vmatprep.subr.bf16.mxu0 0
    %4647 = vmatpush1.bf16.msra.mxu0 %v4418
    %4648 = vmatprep.subr.bf16.mxu0 0
    %4649 = vmatpush1.bf16.msra.mxu0 %v4421
    %4650 = vmatprep.subr.bf16.mxu0 0
    %4651 = vmatpush1.bf16.msra.mxu0 %v4424
    %4652 = vmatprep.subr.bf16.mxu0 0
    %4653 = vmatpush1.bf16.msra.mxu0 %v4427
    %4654 = vmatprep.subr.bf16.mxu0 0
    %4655 = vmatpush1.bf16.msra.mxu0 %v4430
    %4656 = vmatprep.subr.bf16.mxu0 0
    %4657 = vmatpush1.bf16.msra.mxu0 %v4433
    %4658 = vmatprep.subr.bf16.mxu0 0
    %4659 = vmatpush1.bf16.msra.mxu0 %v4436
    %4660 = vmatprep.subr.bf16.mxu0 0
    %4661 = vmatpush1.bf16.msra.mxu0 %v4439
    %4662 = vmatprep.subr.bf16.mxu0 0
    %4663 = vmatpush1.bf16.msra.mxu0 %v4442
    %4664 = vmatprep.subr.bf16.mxu0 0
    %4665 = vmatpush1.bf16.msra.mxu0 %v4445
    %4666 = vmatprep.subr.bf16.mxu0 0
    %4667 = vmatpush1.bf16.msra.mxu0 %v4448
    %4668 = vmatprep.subr.bf16.mxu0 0
    %4669 = vmatpush1.bf16.msra.mxu0 %v4451
    %4670 = vmatprep.subr.bf16.mxu0 0
    %4671 = vmatpush1.bf16.msra.mxu0 %v4454
    %4672 = vmatprep.subr.bf16.mxu0 0
    %4673 = vmatpush1.bf16.msra.mxu0 %v4457
    %4674 = vmatprep.subr.bf16.mxu0 0
    %4675 = vmatpush1.bf16.msra.mxu0 %v4460
    %4676 = vmatprep.subr.bf16.mxu0 0
    %4677 = vmatpush1.bf16.msra.mxu0 %v4463
    %4678 = vmatprep.mubr.bf16.mxu0 %v4162
    %4679 = vmatmul.mubr.bf16.gmra.mrb[0].mxu0 %v4161
    %v4680 = vpop.f32.mrb[0].mxu0
    %v4681 = vadd.f32 %v4175, %v4680
    %v4682 = vpop.f32.mrb[0].mxu0
    %v4683 = vpop.f32.mrb[0].mxu0
    %v4684 = vadd.f32 %v4175, %v4683
    %v4685 = vpop.f32.mrb[0].mxu0
    %4686 = vdwg.mxu0
    %4687 = vmatprep.subr.bf16.mxu0 0
    %4688 = vmatpush1.bf16.msra.mxu0 %v4466
    %4689 = vmatprep.subr.bf16.mxu0 0
    %4690 = vmatpush1.bf16.msra.mxu0 %v4469
    %4691 = vmatprep.subr.bf16.mxu0 0
    %4692 = vmatpush1.bf16.msra.mxu0 %v4472
    %4693 = vmatprep.subr.bf16.mxu0 0
    %4694 = vmatpush1.bf16.msra.mxu0 %v4475
    %4695 = vmatprep.subr.bf16.mxu0 0
    %4696 = vmatpush1.bf16.msra.mxu0 %v4478
    %4697 = vmatprep.subr.bf16.mxu0 0
    %4698 = vmatpush1.bf16.msra.mxu0 %v4481
    %4699 = vmatprep.subr.bf16.mxu0 0
    %4700 = vmatpush1.bf16.msra.mxu0 %v4484
    %4701 = vmatprep.subr.bf16.mxu0 0
    %4702 = vmatpush1.bf16.msra.mxu0 %v4487
    %4703 = vmatprep.subr.bf16.mxu0 0
    %4704 = vmatpush1.bf16.msra.mxu0 0
    %4705 = vmatprep.subr.bf16.mxu0 0
    %4706 = vmatpush1.bf16.msra.mxu0 0
    %4707 = vmatprep.subr.bf16.mxu0 0
    %4708 = vmatpush1.bf16.msra.mxu0 0
    %4709 = vmatprep.subr.bf16.mxu0 0
    %4710 = vmatpush1.bf16.msra.mxu0 0
    %4711 = vmatprep.subr.bf16.mxu0 0
    %4712 = vmatpush1.bf16.msra.mxu0 0
    %4713 = vmatprep.subr.bf16.mxu0 0
    %4714 = vmatpush1.bf16.msra.mxu0 0
    %4715 = vmatprep.subr.bf16.mxu0 0
    %4716 = vmatpush1.bf16.msra.mxu0 0
    %4717 = vmatprep.subr.bf16.mxu0 0
    %4718 = vmatpush1.bf16.msra.mxu0 0
    %4719 = vmatprep.mubr.bf16.mxu0 0
    %4720 = vmatmul.mubr.bf16.gmra.mrb[0].mxu0 %v4163
    %v4721 = vpop.f32.mrb[0].mxu0
    %v4722 = vadd.f32 %v4681, %v4721
    %v4723 = vpop.f32.mrb[0].mxu0
    %v4724 = vpop.f32.mrb[0].mxu0
    %v4725 = vadd.f32 %v4684, %v4724
    %v4726 = vpop.f32.mrb[0].mxu0
    %4727 = vdwg.mxu0
    %vm4728 = vcmp.ge.f32.partialorder %v4638, 0.0
    %vm4729 = vcmp.ge.f32.partialorder %v4640, 0.0
    %vm4730 = vcmp.ge.f32.partialorder %v4722, 0.0
    %vm4731 = vcmp.ge.f32.partialorder %v4642, 0.0
    %vm4732 = vcmp.ge.f32.partialorder %v4644, 0.0
    %vm4733 = vcmp.ge.f32.partialorder %v4725, 0.0
    %v4734 = vmul.f32 %v4638, 0.2
    %v4735 = vmul.f32 %v4640, 0.2
    %v4736 = vmul.f32 %v4722, 0.2
    %v4737 = vmul.f32 %v4642, 0.2
    %v4738 = vmul.f32 %v4644, 0.2
    %v4739 = vmul.f32 %v4725, 0.2
    %v4740 = vsel %vm4728, %v4638, %v4734
    %v4741 = vsel %vm4729, %v4640, %v4735
    %v4742 = vsel %vm4730, %v4722, %v4736
    %v4743 = vsel %vm4731, %v4642, %v4737
    %v4744 = vsel %vm4732, %v4644, %v4738
    %v4745 = vsel %vm4733, %v4725, %v4739
    %v4746 = vld [vmem:[#allocation16] sm:$0xff]
    %v4747 = vld [vmem:[#allocation16 + $0x8] sm:$0xff]
    %v4748 = vld [vmem:[#allocation16 + $0x10] sm:$0xff]
    %v4749 = vld [vmem:[#allocation16 + $0x18] sm:$0xff]
    %v4750 = vld [vmem:[#allocation16 + $0x20] sm:$0xff]
    %v4751 = vld [vmem:[#allocation16 + $0x28] sm:$0xff]
    %v4752 = vld [vmem:[#allocation16 + $0x30] sm:$0xff]
    %v4753 = vld [vmem:[#allocation16 + $0x38] sm:$0xff]
    %v4754 = vld [vmem:[#allocation16 + $0x40] sm:$0xff]
    %v4755 = vld [vmem:[#allocation16 + $0x48] sm:$0xff]
    %v4756 = vld [vmem:[#allocation16 + $0x50] sm:$0xff]
    %v4757 = vld [vmem:[#allocation16 + $0x58] sm:$0xff]
    %v4758 = vld [vmem:[#allocation16 + $0x60] sm:$0xff]
    %v4759 = vld [vmem:[#allocation16 + $0x68] sm:$0xff]
    %v4760 = vld [vmem:[#allocation16 + $0x70] sm:$0xff]
    %v4761 = vld [vmem:[#allocation16 + $0x78] sm:$0xff]
    %v4762 = vld [vmem:[#allocation16 + $0x80] sm:$0xff]
    %v4763 = vld [vmem:[#allocation16 + $0x88] sm:$0xff]
    %v4764 = vld [vmem:[#allocation16 + $0x90] sm:$0xff]
    %v4765 = vld [vmem:[#allocation16 + $0x98] sm:$0xff]
    %v4766 = vld [vmem:[#allocation16 + $0xa0] sm:$0xff]
    %v4767 = vld [vmem:[#allocation16 + $0xa8] sm:$0xff]
    %v4768 = vld [vmem:[#allocation16 + $0xb0] sm:$0xff]
    %v4769 = vld [vmem:[#allocation16 + $0xb8] sm:$0xff]
    %v4770 = vld [vmem:[#allocation16 + $0xc0] sm:$0xff]
    %v4771 = vld [vmem:[#allocation16 + $0xc8] sm:$0xff]
    %v4772 = vld [vmem:[#allocation16 + $0xd0] sm:$0xff]
    %v4773 = vld [vmem:[#allocation16 + $0xd8] sm:$0xff]
    %v4774 = vld [vmem:[#allocation16 + $0xe0] sm:$0xff]
    %v4775 = vld [vmem:[#allocation16 + $0xe8] sm:$0xff]
    %v4776 = vld [vmem:[#allocation16 + $0xf0] sm:$0xff]
    %v4777 = vld [vmem:[#allocation16 + $0xf8] sm:$0xff]
    %v4778 = vld [vmem:[#allocation16 + $0x100] sm:$0xff]
    %v4779 = vld [vmem:[#allocation16 + $0x108] sm:$0xff]
    %v4780 = vld [vmem:[#allocation16 + $0x110] sm:$0xff]
    %v4781 = vld [vmem:[#allocation16 + $0x118] sm:$0xff]
    %v4782 = vld [vmem:[#allocation16 + $0x120] sm:$0xff]
    %v4783 = vld [vmem:[#allocation16 + $0x128] sm:$0xff]
    %v4784 = vld [vmem:[#allocation16 + $0x130] sm:$0xff]
    %v4785 = vld [vmem:[#allocation16 + $0x138] sm:$0xff]
    %v4786 = vld [vmem:[#allocation16 + $0x140] sm:$0xff]
    %v4787 = vld [vmem:[#allocation16 + $0x148] sm:$0xff]
    %v4788 = vld [vmem:[#allocation16 + $0x150] sm:$0xff]
    %v4789 = vld [vmem:[#allocation16 + $0x158] sm:$0xff]
    %v4790 = vld [vmem:[#allocation16 + $0x160] sm:$0xff]
    %v4791 = vld [vmem:[#allocation16 + $0x168] sm:$0xff]
    %v4792 = vld [vmem:[#allocation16 + $0x170] sm:$0xff]
    %v4793 = vld [vmem:[#allocation16 + $0x178] sm:$0xff]
    %v4794 = vpack.c.bf16 %v4743, %v4740
    %v4795 = vpack.c.bf16 %v4744, %v4741
    %v4796 = vpack.c.bf16 %v4745, %v4742
    %v4797 = vlaneseq
    %v4798 = vshrl.u32 %v4797, 7
    %v4799 = vsub.s32 6, %v4798
    %v4800 = vrot.slane %v225, %v4799
    %v4801 = vlaneseq
    %v4802 = vshrl.u32 %v4801, 7
    %v4803 = vsub.s32 6, %v4802
    %v4804 = vrot.slane %v226, %v4803
    %v4853 = vunpack.c.l.b16 %v4746
    %v4854 = vunpack.c.h.b16 %v4746
    %v4855 = vunpack.c.l.b16 %v4747
    %v4856 = vunpack.c.h.b16 %v4747
    %v4857 = vunpack.c.l.b16 %v4748
    %v4858 = vunpack.c.h.b16 %v4748
    %v4859 = vunpack.c.l.b16 %v4749
    %v4860 = vunpack.c.h.b16 %v4749
    %v4861 = vunpack.c.l.b16 %v4750
    %v4862 = vunpack.c.h.b16 %v4750
    %v4863 = vunpack.c.l.b16 %v4751
    %v4864 = vunpack.c.h.b16 %v4751
    %v4865 = vunpack.c.l.b16 %v4752
    %v4866 = vunpack.c.h.b16 %v4752
    %v4867 = vunpack.c.l.b16 %v4753
    %v4868 = vunpack.c.h.b16 %v4753
    %v4869 = vunpack.c.l.b16 %v4754
    %v4870 = vunpack.c.h.b16 %v4754
    %v4871 = vunpack.c.l.b16 %v4755
    %v4872 = vunpack.c.h.b16 %v4755
    %v4873 = vunpack.c.l.b16 %v4756
    %v4874 = vunpack.c.h.b16 %v4756
    %v4875 = vunpack.c.l.b16 %v4757
    %v4876 = vunpack.c.h.b16 %v4757
    %v4877 = vunpack.c.l.b16 %v4758
    %v4878 = vunpack.c.h.b16 %v4758
    %v4879 = vunpack.c.l.b16 %v4759
    %v4880 = vunpack.c.h.b16 %v4759
    %v4881 = vunpack.c.l.b16 %v4760
    %v4882 = vunpack.c.h.b16 %v4760
    %v4883 = vunpack.c.l.b16 %v4761
    %v4884 = vunpack.c.h.b16 %v4761
    %v4885 = vunpack.c.l.b16 %v4762
    %v4886 = vunpack.c.h.b16 %v4762
    %v4887 = vunpack.c.l.b16 %v4763
    %v4888 = vunpack.c.h.b16 %v4763
    %v4889 = vunpack.c.l.b16 %v4764
    %v4890 = vunpack.c.h.b16 %v4764
    %v4891 = vunpack.c.l.b16 %v4765
    %v4892 = vunpack.c.h.b16 %v4765
    %v4893 = vunpack.c.l.b16 %v4766
    %v4894 = vunpack.c.h.b16 %v4766
    %v4895 = vunpack.c.l.b16 %v4767
    %v4896 = vunpack.c.h.b16 %v4767
    %v4897 = vunpack.c.l.b16 %v4768
    %v4898 = vunpack.c.h.b16 %v4768
    %v4899 = vunpack.c.l.b16 %v4769
    %v4900 = vunpack.c.h.b16 %v4769
    %v4901 = vunpack.c.l.b16 %v4770
    %v4902 = vunpack.c.h.b16 %v4770
    %v4903 = vunpack.c.l.b16 %v4771
    %v4904 = vunpack.c.h.b16 %v4771
    %v4905 = vunpack.c.l.b16 %v4772
    %v4906 = vunpack.c.h.b16 %v4772
    %v4907 = vunpack.c.l.b16 %v4773
    %v4908 = vunpack.c.h.b16 %v4773
    %v4909 = vunpack.c.l.b16 %v4774
    %v4910 = vunpack.c.h.b16 %v4774
    %v4911 = vunpack.c.l.b16 %v4775
    %v4912 = vunpack.c.h.b16 %v4775
    %v4913 = vunpack.c.l.b16 %v4776
    %v4914 = vunpack.c.h.b16 %v4776
    %v4915 = vunpack.c.l.b16 %v4777
    %v4916 = vunpack.c.h.b16 %v4777
    %v4917 = vunpack.c.l.b16 %v4778
    %v4918 = vunpack.c.h.b16 %v4778
    %v4919 = vunpack.c.l.b16 %v4779
    %v4920 = vunpack.c.h.b16 %v4779
    %v4921 = vunpack.c.l.b16 %v4780
    %v4922 = vunpack.c.h.b16 %v4780
    %v4923 = vunpack.c.l.b16 %v4781
    %v4924 = vunpack.c.h.b16 %v4781
    %v4925 = vunpack.c.l.b16 %v4782
    %v4926 = vunpack.c.h.b16 %v4782
    %v4927 = vunpack.c.l.b16 %v4783
    %v4928 = vunpack.c.h.b16 %v4783
    %v4929 = vunpack.c.l.b16 %v4784
    %v4930 = vunpack.c.h.b16 %v4784
    %v4931 = vunpack.c.l.b16 %v4785
    %v4932 = vunpack.c.h.b16 %v4785
    %v4933 = vunpack.c.l.b16 %v4786
    %v4934 = vunpack.c.h.b16 %v4786
    %v4935 = vunpack.c.l.b16 %v4787
    %v4936 = vunpack.c.h.b16 %v4787
    %v4937 = vunpack.c.l.b16 %v4788
    %v4938 = vunpack.c.h.b16 %v4788
    %v4939 = vunpack.c.l.b16 %v4789
    %v4940 = vunpack.c.h.b16 %v4789
    %v4941 = vunpack.c.l.b16 %v4790
    %v4942 = vunpack.c.h.b16 %v4790
    %v4943 = vunpack.c.l.b16 %v4791
    %v4944 = vunpack.c.h.b16 %v4791
    %v4945 = vunpack.c.l.b16 %v4792
    %v4946 = vunpack.c.h.b16 %v4792
    %v4947 = vunpack.c.l.b16 %v4793
    %v4948 = vunpack.c.h.b16 %v4793
    %v4949 = vpack.c.b16 %v4855, %v4853
    %v4950 = vpack.c.b16 %v4856, %v4854
    %v4951 = vpack.c.b16 %v4859, %v4857
    %v4952 = vpack.c.b16 %v4860, %v4858
    %v4953 = vpack.c.b16 %v4863, %v4861
    %v4954 = vpack.c.b16 %v4864, %v4862
    %v4955 = vpack.c.b16 %v4867, %v4865
    %v4956 = vpack.c.b16 %v4868, %v4866
    %v4957 = vpack.c.b16 %v4871, %v4869
    %v4958 = vpack.c.b16 %v4872, %v4870
    %v4959 = vpack.c.b16 %v4875, %v4873
    %v4960 = vpack.c.b16 %v4876, %v4874
    %v4961 = vpack.c.b16 %v4879, %v4877
    %v4962 = vpack.c.b16 %v4880, %v4878
    %v4963 = vpack.c.b16 %v4883, %v4881
    %v4964 = vpack.c.b16 %v4884, %v4882
    %v4965 = vpack.c.b16 %v4887, %v4885
    %v4966 = vpack.c.b16 %v4888, %v4886
    %v4967 = vpack.c.b16 %v4891, %v4889
    %v4968 = vpack.c.b16 %v4892, %v4890
    %v4969 = vpack.c.b16 %v4895, %v4893
    %v4970 = vpack.c.b16 %v4896, %v4894
    %v4971 = vpack.c.b16 %v4899, %v4897
    %v4972 = vpack.c.b16 %v4900, %v4898
    %v4973 = vpack.c.b16 %v4903, %v4901
    %v4974 = vpack.c.b16 %v4904, %v4902
    %v4975 = vpack.c.b16 %v4907, %v4905
    %v4976 = vpack.c.b16 %v4908, %v4906
    %v4977 = vpack.c.b16 %v4911, %v4909
    %v4978 = vpack.c.b16 %v4912, %v4910
    %v4979 = vpack.c.b16 %v4915, %v4913
    %v4980 = vpack.c.b16 %v4916, %v4914
    %v4981 = vpack.c.b16 %v4919, %v4917
    %v4982 = vpack.c.b16 %v4920, %v4918
    %v4983 = vpack.c.b16 %v4923, %v4921
    %v4984 = vpack.c.b16 %v4924, %v4922
    %v4985 = vpack.c.b16 %v4927, %v4925
    %v4986 = vpack.c.b16 %v4928, %v4926
    %v4987 = vpack.c.b16 %v4931, %v4929
    %v4988 = vpack.c.b16 %v4932, %v4930
    %v4989 = vpack.c.b16 %v4935, %v4933
    %v4990 = vpack.c.b16 %v4936, %v4934
    %v4991 = vpack.c.b16 %v4939, %v4937
    %v4992 = vpack.c.b16 %v4940, %v4938
    %v4993 = vpack.c.b16 %v4943, %v4941
    %v4994 = vpack.c.b16 %v4944, %v4942
    %v4995 = vpack.c.b16 %v4947, %v4945
    %v4996 = vpack.c.b16 %v4948, %v4946
    %5045 = vmatprep.subr.bf16.mxu0 %v4950
    %5046 = vmatpush1.bf16.msra.mxu0 %v4949
    %5047 = vmatprep.subr.bf16.mxu0 %v4952
    %5048 = vmatpush1.bf16.msra.mxu0 %v4951
    %5049 = vmatprep.subr.bf16.mxu0 %v4954
    %5050 = vmatpush1.bf16.msra.mxu0 %v4953
    %5051 = vmatprep.subr.bf16.mxu0 %v4956
    %5052 = vmatpush1.bf16.msra.mxu0 %v4955
    %5053 = vmatprep.subr.bf16.mxu0 %v4958
    %5054 = vmatpush1.bf16.msra.mxu0 %v4957
    %5055 = vmatprep.subr.bf16.mxu0 %v4960
    %5056 = vmatpush1.bf16.msra.mxu0 %v4959
    %5057 = vmatprep.subr.bf16.mxu0 %v4962
    %5058 = vmatpush1.bf16.msra.mxu0 %v4961
    %5059 = vmatprep.subr.bf16.mxu0 %v4964
    %5060 = vmatpush1.bf16.msra.mxu0 %v4963
    %5061 = vmatprep.subr.bf16.mxu0 %v4966
    %5062 = vmatpush1.bf16.msra.mxu0 %v4965
    %5063 = vmatprep.subr.bf16.mxu0 %v4968
    %5064 = vmatpush1.bf16.msra.mxu0 %v4967
    %5065 = vmatprep.subr.bf16.mxu0 %v4970
    %5066 = vmatpush1.bf16.msra.mxu0 %v4969
    %5067 = vmatprep.subr.bf16.mxu0 %v4972
    %5068 = vmatpush1.bf16.msra.mxu0 %v4971
    %5069 = vmatprep.subr.bf16.mxu0 %v4974
    %5070 = vmatpush1.bf16.msra.mxu0 %v4973
    %5071 = vmatprep.subr.bf16.mxu0 %v4976
    %5072 = vmatpush1.bf16.msra.mxu0 %v4975
    %5073 = vmatprep.subr.bf16.mxu0 %v4978
    %5074 = vmatpush1.bf16.msra.mxu0 %v4977
    %5075 = vmatprep.subr.bf16.mxu0 %v4980
    %5076 = vmatpush1.bf16.msra.mxu0 %v4979
    %5077 = vmatprep.mubr.bf16.mxu0 %v4795
    %5078 = vmatmul.mubr.bf16.gmra.mrb[0].mxu0 %v4794
    %v5079 = vpop.f32.mrb[0].mxu0
    %v5080 = vadd.f32 %v4800, %v5079
    %v5081 = vpop.f32.mrb[0].mxu0
    %v5082 = vadd.f32 %v4804, %v5081
    %v5083 = vpop.f32.mrb[0].mxu0
    %v5084 = vadd.f32 %v4800, %v5083
    %v5085 = vpop.f32.mrb[0].mxu0
    %v5086 = vadd.f32 %v4804, %v5085
    %5087 = vdwg.mxu0
    %5088 = vmatprep.subr.bf16.mxu0 %v4982
    %5089 = vmatpush1.bf16.msra.mxu0 %v4981
    %5090 = vmatprep.subr.bf16.mxu0 %v4984
    %5091 = vmatpush1.bf16.msra.mxu0 %v4983
    %5092 = vmatprep.subr.bf16.mxu0 %v4986
    %5093 = vmatpush1.bf16.msra.mxu0 %v4985
    %5094 = vmatprep.subr.bf16.mxu0 %v4988
    %5095 = vmatpush1.bf16.msra.mxu0 %v4987
    %5096 = vmatprep.subr.bf16.mxu0 %v4990
    %5097 = vmatpush1.bf16.msra.mxu0 %v4989
    %5098 = vmatprep.subr.bf16.mxu0 %v4992
    %5099 = vmatpush1.bf16.msra.mxu0 %v4991
    %5100 = vmatprep.subr.bf16.mxu0 %v4994
    %5101 = vmatpush1.bf16.msra.mxu0 %v4993
    %5102 = vmatprep.subr.bf16.mxu0 %v4996
    %5103 = vmatpush1.bf16.msra.mxu0 %v4995
    %5104 = vmatprep.subr.bf16.mxu0 0
    %5105 = vmatpush1.bf16.msra.mxu0 0
    %5106 = vmatprep.subr.bf16.mxu0 0
    %5107 = vmatpush1.bf16.msra.mxu0 0
    %5108 = vmatprep.subr.bf16.mxu0 0
    %5109 = vmatpush1.bf16.msra.mxu0 0
    %5110 = vmatprep.subr.bf16.mxu0 0
    %5111 = vmatpush1.bf16.msra.mxu0 0
    %5112 = vmatprep.subr.bf16.mxu0 0
    %5113 = vmatpush1.bf16.msra.mxu0 0
    %5114 = vmatprep.subr.bf16.mxu0 0
    %5115 = vmatpush1.bf16.msra.mxu0 0
    %5116 = vmatprep.subr.bf16.mxu0 0
    %5117 = vmatpush1.bf16.msra.mxu0 0
    %5118 = vmatprep.subr.bf16.mxu0 0
    %5119 = vmatpush1.bf16.msra.mxu0 0
    %5120 = vmatprep.mubr.bf16.mxu0 0
    %5121 = vmatmul.mubr.bf16.gmra.mrb[0].mxu0 %v4796
    %v5122 = vpop.f32.mrb[0].mxu0
    %v5123 = vadd.f32 %v5080, %v5122
    %v5124 = vpop.f32.mrb[0].mxu0
    %v5125 = vadd.f32 %v5082, %v5124
    %v5126 = vpop.f32.mrb[0].mxu0
    %v5127 = vadd.f32 %v5084, %v5126
    %v5128 = vpop.f32.mrb[0].mxu0
    %v5129 = vadd.f32 %v5086, %v5128
    %5130 = vdwg.mxu0
    %vm5131 = vcmp.ge.f32.partialorder %v5123, 0.0
    %vm5132 = vcmp.ge.f32.partialorder %v5125, 0.0
    %vm5133 = vcmp.ge.f32.partialorder %v5127, 0.0
    %vm5134 = vcmp.ge.f32.partialorder %v5129, 0.0
    %v5135 = vmul.f32 %v5123, 0.2
    %v5136 = vmul.f32 %v5125, 0.2
    %v5137 = vmul.f32 %v5127, 0.2
    %v5138 = vmul.f32 %v5129, 0.2
    %v5139 = vsel %vm5131, %v5123, %v5135
    %v5140 = vsel %vm5132, %v5125, %v5136
    %v5141 = vsel %vm5133, %v5127, %v5137
    %v5142 = vsel %vm5134, %v5129, %v5138
    %v5143 = vld [vmem:[#allocation17] sm:$0xf]
    %v5144 = vld [vmem:[#allocation17 + $0x4] sm:$0xf]
    %v5145 = vld [vmem:[#allocation17 + $0x8] sm:$0xf]
    %v5146 = vld [vmem:[#allocation17 + $0xc] sm:$0xf]
    %v5147 = vld [vmem:[#allocation17 + $0x10] sm:$0xf]
    %v5148 = vld [vmem:[#allocation17 + $0x14] sm:$0xf]
    %v5149 = vld [vmem:[#allocation17 + $0x18] sm:$0xf]
    %v5150 = vld [vmem:[#allocation17 + $0x1c] sm:$0xf]
    %v5151 = vld [vmem:[#allocation17 + $0x20] sm:$0xf]
    %v5152 = vld [vmem:[#allocation17 + $0x24] sm:$0xf]
    %v5153 = vld [vmem:[#allocation17 + $0x28] sm:$0xf]
    %v5154 = vld [vmem:[#allocation17 + $0x2c] sm:$0xf]
    %v5155 = vld [vmem:[#allocation17 + $0x30] sm:$0xf]
    %v5156 = vld [vmem:[#allocation17 + $0x34] sm:$0xf]
    %v5157 = vld [vmem:[#allocation17 + $0x38] sm:$0xf]
    %v5158 = vld [vmem:[#allocation17 + $0x3c] sm:$0xf]
    %v5159 = vld [vmem:[#allocation17 + $0x40] sm:$0xf]
    %v5160 = vld [vmem:[#allocation17 + $0x44] sm:$0xf]
    %v5161 = vld [vmem:[#allocation17 + $0x48] sm:$0xf]
    %v5162 = vld [vmem:[#allocation17 + $0x4c] sm:$0xf]
    %v5163 = vld [vmem:[#allocation17 + $0x50] sm:$0xf]
    %v5164 = vld [vmem:[#allocation17 + $0x54] sm:$0xf]
    %v5165 = vld [vmem:[#allocation17 + $0x58] sm:$0xf]
    %v5166 = vld [vmem:[#allocation17 + $0x5c] sm:$0xf]
    %v5167 = vld [vmem:[#allocation17 + $0x60] sm:$0xf]
    %v5168 = vld [vmem:[#allocation17 + $0x64] sm:$0xf]
    %v5169 = vld [vmem:[#allocation17 + $0x68] sm:$0xf]
    %v5170 = vld [vmem:[#allocation17 + $0x6c] sm:$0xf]
    %v5171 = vld [vmem:[#allocation17 + $0x70] sm:$0xf]
    %v5172 = vld [vmem:[#allocation17 + $0x74] sm:$0xf]
    %v5173 = vld [vmem:[#allocation17 + $0x78] sm:$0xf]
    %v5174 = vld [vmem:[#allocation17 + $0x7c] sm:$0xf]
    %v5175 = vpack.c.bf16 %v5141, %v5139
    %v5176 = vpack.c.bf16 %v5142, %v5140
    %v5177 = vlaneseq
    %v5178 = vshrl.u32 %v5177, 7
    %v5179 = vsub.s32 7, %v5178
    %v5180 = vrot.slane %v225, %v5179
    %v5213 = vunpack.c.l.b16 %v5143
    %v5214 = vunpack.c.l.b16 %v5144
    %v5215 = vunpack.c.l.b16 %v5145
    %v5216 = vunpack.c.l.b16 %v5146
    %v5217 = vunpack.c.l.b16 %v5147
    %v5218 = vunpack.c.l.b16 %v5148
    %v5219 = vunpack.c.l.b16 %v5149
    %v5220 = vunpack.c.l.b16 %v5150
    %v5221 = vunpack.c.l.b16 %v5151
    %v5222 = vunpack.c.l.b16 %v5152
    %v5223 = vunpack.c.l.b16 %v5153
    %v5224 = vunpack.c.l.b16 %v5154
    %v5225 = vunpack.c.l.b16 %v5155
    %v5226 = vunpack.c.l.b16 %v5156
    %v5227 = vunpack.c.l.b16 %v5157
    %v5228 = vunpack.c.l.b16 %v5158
    %v5229 = vunpack.c.l.b16 %v5159
    %v5230 = vunpack.c.l.b16 %v5160
    %v5231 = vunpack.c.l.b16 %v5161
    %v5232 = vunpack.c.l.b16 %v5162
    %v5233 = vunpack.c.l.b16 %v5163
    %v5234 = vunpack.c.l.b16 %v5164
    %v5235 = vunpack.c.l.b16 %v5165
    %v5236 = vunpack.c.l.b16 %v5166
    %v5237 = vunpack.c.l.b16 %v5167
    %v5238 = vunpack.c.l.b16 %v5168
    %v5239 = vunpack.c.l.b16 %v5169
    %v5240 = vunpack.c.l.b16 %v5170
    %v5241 = vunpack.c.l.b16 %v5171
    %v5242 = vunpack.c.l.b16 %v5172
    %v5243 = vunpack.c.l.b16 %v5173
    %v5244 = vunpack.c.l.b16 %v5174
    %v5245 = vpack.c.b16 %v5214, %v5213
    %v5246 = vpack.c.b16 %v5216, %v5215
    %v5247 = vpack.c.b16 %v5218, %v5217
    %v5248 = vpack.c.b16 %v5220, %v5219
    %v5249 = vpack.c.b16 %v5222, %v5221
    %v5250 = vpack.c.b16 %v5224, %v5223
    %v5251 = vpack.c.b16 %v5226, %v5225
    %v5252 = vpack.c.b16 %v5228, %v5227
    %v5253 = vpack.c.b16 %v5230, %v5229
    %v5254 = vpack.c.b16 %v5232, %v5231
    %v5255 = vpack.c.b16 %v5234, %v5233
    %v5256 = vpack.c.b16 %v5236, %v5235
    %v5257 = vpack.c.b16 %v5238, %v5237
    %v5258 = vpack.c.b16 %v5240, %v5239
    %v5259 = vpack.c.b16 %v5242, %v5241
    %v5260 = vpack.c.b16 %v5244, %v5243
    %5277 = vmatprep.subr.bf16.mxu0 0
    %5278 = vmatpush1.bf16.msra.mxu0 %v5245
    %5279 = vmatprep.subr.bf16.mxu0 0
    %5280 = vmatpush1.bf16.msra.mxu0 %v5246
    %5281 = vmatprep.subr.bf16.mxu0 0
    %5282 = vmatpush1.bf16.msra.mxu0 %v5247
    %5283 = vmatprep.subr.bf16.mxu0 0
    %5284 = vmatpush1.bf16.msra.mxu0 %v5248
    %5285 = vmatprep.subr.bf16.mxu0 0
    %5286 = vmatpush1.bf16.msra.mxu0 %v5249
    %5287 = vmatprep.subr.bf16.mxu0 0
    %5288 = vmatpush1.bf16.msra.mxu0 %v5250
    %5289 = vmatprep.subr.bf16.mxu0 0
    %5290 = vmatpush1.bf16.msra.mxu0 %v5251
    %5291 = vmatprep.subr.bf16.mxu0 0
    %5292 = vmatpush1.bf16.msra.mxu0 %v5252
    %5293 = vmatprep.subr.bf16.mxu0 0
    %5294 = vmatpush1.bf16.msra.mxu0 %v5253
    %5295 = vmatprep.subr.bf16.mxu0 0
    %5296 = vmatpush1.bf16.msra.mxu0 %v5254
    %5297 = vmatprep.subr.bf16.mxu0 0
    %5298 = vmatpush1.bf16.msra.mxu0 %v5255
    %5299 = vmatprep.subr.bf16.mxu0 0
    %5300 = vmatpush1.bf16.msra.mxu0 %v5256
    %5301 = vmatprep.subr.bf16.mxu0 0
    %5302 = vmatpush1.bf16.msra.mxu0 %v5257
    %5303 = vmatprep.subr.bf16.mxu0 0
    %5304 = vmatpush1.bf16.msra.mxu0 %v5258
    %5305 = vmatprep.subr.bf16.mxu0 0
    %5306 = vmatpush1.bf16.msra.mxu0 %v5259
    %5307 = vmatprep.subr.bf16.mxu0 0
    %5308 = vmatpush1.bf16.msra.mxu0 %v5260
    %5309 = vmatprep.mubr.bf16.mxu0 %v5176
    %5310 = vmatmul.mubr.bf16.gmra.mrb[0].mxu0 %v5175
    %v5311 = vpop.f32.mrb[0].mxu0
    %v5312 = vadd.f32 %v5180, %v5311
    %v5313 = vpop.f32.mrb[0].mxu0
    %v5314 = vpop.f32.mrb[0].mxu0
    %v5315 = vadd.f32 %v5180, %v5314
    %v5316 = vpop.f32.mrb[0].mxu0
    %5317 = vdwg.mxu0
    %vm5318 = vcmp.ge.f32.partialorder %v5312, 0.0
    %vm5319 = vcmp.ge.f32.partialorder %v5315, 0.0
    %v5320 = vmul.f32 %v5312, 0.2
    %v5321 = vmul.f32 %v5315, 0.2
    %v5322 = vsel %vm5318, %v5312, %v5320
    %v5323 = vsel %vm5319, %v5315, %v5321
    %v5324 = vld [vmem:[#allocation19] sm:$0xf]
    %v5325 = vld [vmem:[#allocation19 + $0x4] sm:$0xf]
    %v5326 = vld [vmem:[#allocation19 + $0x8] sm:$0xf]
    %v5327 = vld [vmem:[#allocation19 + $0xc] sm:$0xf]
    %v5328 = vld [vmem:[#allocation19 + $0x10] sm:$0xf]
    %v5329 = vld [vmem:[#allocation19 + $0x14] sm:$0xf]
    %v5330 = vld [vmem:[#allocation19 + $0x18] sm:$0xf]
    %v5331 = vld [vmem:[#allocation19 + $0x1c] sm:$0xf]
    %v5332 = vld [vmem:[#allocation19 + $0x20] sm:$0xf]
    %v5333 = vld [vmem:[#allocation19 + $0x24] sm:$0xf]
    %v5334 = vld [vmem:[#allocation19 + $0x28] sm:$0xf]
    %v5335 = vld [vmem:[#allocation19 + $0x2c] sm:$0xf]
    %v5336 = vld [vmem:[#allocation19 + $0x30] sm:$0xf]
    %v5337 = vld [vmem:[#allocation19 + $0x34] sm:$0xf]
    %v5338 = vld [vmem:[#allocation19 + $0x38] sm:$0xf]
    %v5339 = vld [vmem:[#allocation19 + $0x3c] sm:$0xf]
    %v5340 = vpack.c.bf16 %v5323, %v5322
    %v5341 = vlaneseq
    %v5342 = vshrl.u32 %v5341, 7
    %v5343 = vsub.s32 0, %v5342
    %v5344 = vrot.slane %v228, %v5343
    %v5361 = vunpack.c.l.b16 %v5324
    %v5362 = vunpack.c.l.b16 %v5325
    %v5363 = vunpack.c.l.b16 %v5326
    %v5364 = vunpack.c.l.b16 %v5327
    %v5365 = vunpack.c.l.b16 %v5328
    %v5366 = vunpack.c.l.b16 %v5329
    %v5367 = vunpack.c.l.b16 %v5330
    %v5368 = vunpack.c.l.b16 %v5331
    %v5369 = vunpack.c.l.b16 %v5332
    %v5370 = vunpack.c.l.b16 %v5333
    %v5371 = vunpack.c.l.b16 %v5334
    %v5372 = vunpack.c.l.b16 %v5335
    %v5373 = vunpack.c.l.b16 %v5336
    %v5374 = vunpack.c.l.b16 %v5337
    %v5375 = vunpack.c.l.b16 %v5338
    %v5376 = vunpack.c.l.b16 %v5339
    %v5377 = vpack.c.b16 %v5362, %v5361
    %v5378 = vpack.c.b16 %v5364, %v5363
    %v5379 = vpack.c.b16 %v5366, %v5365
    %v5380 = vpack.c.b16 %v5368, %v5367
    %v5381 = vpack.c.b16 %v5370, %v5369
    %v5382 = vpack.c.b16 %v5372, %v5371
    %v5383 = vpack.c.b16 %v5374, %v5373
    %v5384 = vpack.c.b16 %v5376, %v5375
    %5393 = vmatprep.subr.bf16.mxu0 0
    %5394 = vmatpush1.bf16.msra.mxu0 %v5377
    %5395 = vmatprep.subr.bf16.mxu0 0
    %5396 = vmatpush1.bf16.msra.mxu0 %v5378
    %5397 = vmatprep.subr.bf16.mxu0 0
    %5398 = vmatpush1.bf16.msra.mxu0 %v5379
    %5399 = vmatprep.subr.bf16.mxu0 0
    %5400 = vmatpush1.bf16.msra.mxu0 %v5380
    %5401 = vmatprep.subr.bf16.mxu0 0
    %5402 = vmatpush1.bf16.msra.mxu0 %v5381
    %5403 = vmatprep.subr.bf16.mxu0 0
    %5404 = vmatpush1.bf16.msra.mxu0 %v5382
    %5405 = vmatprep.subr.bf16.mxu0 0
    %5406 = vmatpush1.bf16.msra.mxu0 %v5383
    %5407 = vmatprep.subr.bf16.mxu0 0
    %5408 = vmatpush1.bf16.msra.mxu0 %v5384
    %5409 = vmatprep.subr.bf16.mxu0 0
    %5410 = vmatpush1.bf16.msra.mxu0 0
    %5411 = vmatprep.subr.bf16.mxu0 0
    %5412 = vmatpush1.bf16.msra.mxu0 0
    %5413 = vmatprep.subr.bf16.mxu0 0
    %5414 = vmatpush1.bf16.msra.mxu0 0
    %5415 = vmatprep.subr.bf16.mxu0 0
    %5416 = vmatpush1.bf16.msra.mxu0 0
    %5417 = vmatprep.subr.bf16.mxu0 0
    %5418 = vmatpush1.bf16.msra.mxu0 0
    %5419 = vmatprep.subr.bf16.mxu0 0
    %5420 = vmatpush1.bf16.msra.mxu0 0
    %5421 = vmatprep.subr.bf16.mxu0 0
    %5422 = vmatpush1.bf16.msra.mxu0 0
    %5423 = vmatprep.subr.bf16.mxu0 0
    %5424 = vmatpush1.bf16.msra.mxu0 0
    %5425 = vmatprep.mubr.bf16.mxu0 0
    %5426 = vmatmul.mubr.bf16.gmra.mrb[0].mxu0 %v5340
    %v5427 = vpop.f32.mrb[0].mxu0
    %v5428 = vadd.f32 %v5344, %v5427
    %v5429 = vpop.f32.mrb[0].mxu0
    %v5430 = vpop.f32.mrb[0].mxu0
    %v5431 = vadd.f32 %v5344, %v5430
    %v5432 = vpop.f32.mrb[0].mxu0
    %5433 = vdwg.mxu0
    %vm5434 = vcmp.ge.f32.partialorder %v5428, 0.0
    %vm5435 = vcmp.ge.f32.partialorder %v5431, 0.0
    %v5436 = vmul.f32 %v5428, 0.2
    %v5437 = vmul.f32 %v5431, 0.2
    %v5438 = vsel %vm5434, %v5428, %v5436
    %v5439 = vsel %vm5435, %v5431, %v5437
    %v5440 = vld [vmem:[#allocation20] sm:$0xf]
    %v5441 = vld [vmem:[#allocation20 + $0x4] sm:$0xf]
    %v5442 = vld [vmem:[#allocation20 + $0x8] sm:$0xf]
    %v5443 = vld [vmem:[#allocation20 + $0xc] sm:$0xf]
    %v5444 = vld [vmem:[#allocation20 + $0x10] sm:$0xf]
    %v5445 = vld [vmem:[#allocation20 + $0x14] sm:$0xf]
    %v5446 = vld [vmem:[#allocation20 + $0x18] sm:$0xf]
    %v5447 = vld [vmem:[#allocation20 + $0x1c] sm:$0xf]
    %v5448 = vld [vmem:[#allocation20 + $0x20] sm:$0xf]
    %v5449 = vld [vmem:[#allocation20 + $0x24] sm:$0xf]
    %v5450 = vld [vmem:[#allocation20 + $0x28] sm:$0xf]
    %v5451 = vld [vmem:[#allocation20 + $0x2c] sm:$0xf]
    %v5452 = vld [vmem:[#allocation20 + $0x30] sm:$0xf]
    %v5453 = vld [vmem:[#allocation20 + $0x34] sm:$0xf]
    %v5454 = vld [vmem:[#allocation20 + $0x38] sm:$0xf]
    %v5455 = vld [vmem:[#allocation20 + $0x3c] sm:$0xf]
    %v5456 = vpack.c.bf16 %v5439, %v5438
    %v5457 = vlaneseq
    %v5458 = vshrl.u32 %v5457, 7
    %v5459 = vsub.s32 1, %v5458
    %v5460 = vrot.slane %v228, %v5459
    %v5477 = vunpack.c.l.b16 %v5440
    %v5478 = vunpack.c.l.b16 %v5441
    %v5479 = vunpack.c.l.b16 %v5442
    %v5480 = vunpack.c.l.b16 %v5443
    %v5481 = vunpack.c.l.b16 %v5444
    %v5482 = vunpack.c.l.b16 %v5445
    %v5483 = vunpack.c.l.b16 %v5446
    %v5484 = vunpack.c.l.b16 %v5447
    %v5485 = vunpack.c.l.b16 %v5448
    %v5486 = vunpack.c.l.b16 %v5449
    %v5487 = vunpack.c.l.b16 %v5450
    %v5488 = vunpack.c.l.b16 %v5451
    %v5489 = vunpack.c.l.b16 %v5452
    %v5490 = vunpack.c.l.b16 %v5453
    %v5491 = vunpack.c.l.b16 %v5454
    %v5492 = vunpack.c.l.b16 %v5455
    %v5493 = vpack.c.b16 %v5478, %v5477
    %v5494 = vpack.c.b16 %v5480, %v5479
    %v5495 = vpack.c.b16 %v5482, %v5481
    %v5496 = vpack.c.b16 %v5484, %v5483
    %v5497 = vpack.c.b16 %v5486, %v5485
    %v5498 = vpack.c.b16 %v5488, %v5487
    %v5499 = vpack.c.b16 %v5490, %v5489
    %v5500 = vpack.c.b16 %v5492, %v5491
    %5509 = vmatprep.subr.bf16.mxu0 0
    %5510 = vmatpush1.bf16.msra.mxu0 %v5493
    %5511 = vmatprep.subr.bf16.mxu0 0
    %5512 = vmatpush1.bf16.msra.mxu0 %v5494
    %5513 = vmatprep.subr.bf16.mxu0 0
    %5514 = vmatpush1.bf16.msra.mxu0 %v5495
    %5515 = vmatprep.subr.bf16.mxu0 0
    %5516 = vmatpush1.bf16.msra.mxu0 %v5496
    %5517 = vmatprep.subr.bf16.mxu0 0
    %5518 = vmatpush1.bf16.msra.mxu0 %v5497
    %5519 = vmatprep.subr.bf16.mxu0 0
    %5520 = vmatpush1.bf16.msra.mxu0 %v5498
    %5521 = vmatprep.subr.bf16.mxu0 0
    %5522 = vmatpush1.bf16.msra.mxu0 %v5499
    %5523 = vmatprep.subr.bf16.mxu0 0
    %5524 = vmatpush1.bf16.msra.mxu0 %v5500
    %5525 = vmatprep.subr.bf16.mxu0 0
    %5526 = vmatpush1.bf16.msra.mxu0 0
    %5527 = vmatprep.subr.bf16.mxu0 0
    %5528 = vmatpush1.bf16.msra.mxu0 0
    %5529 = vmatprep.subr.bf16.mxu0 0
    %5530 = vmatpush1.bf16.msra.mxu0 0
    %5531 = vmatprep.subr.bf16.mxu0 0
    %5532 = vmatpush1.bf16.msra.mxu0 0
    %5533 = vmatprep.subr.bf16.mxu0 0
    %5534 = vmatpush1.bf16.msra.mxu0 0
    %5535 = vmatprep.subr.bf16.mxu0 0
    %5536 = vmatpush1.bf16.msra.mxu0 0
    %5537 = vmatprep.subr.bf16.mxu0 0
    %5538 = vmatpush1.bf16.msra.mxu0 0
    %5539 = vmatprep.subr.bf16.mxu0 0
    %5540 = vmatpush1.bf16.msra.mxu0 0
    %5541 = vmatprep.mubr.bf16.mxu0 0
    %5542 = vmatmul.mubr.bf16.gmra.mrb[0].mxu0 %v5456
    %v5543 = vpop.f32.mrb[0].mxu0
    %v5544 = vadd.f32 %v5460, %v5543
    %v5545 = vpop.f32.mrb[0].mxu0
    %v5546 = vpop.f32.mrb[0].mxu0
    %v5547 = vadd.f32 %v5460, %v5546
    %v5548 = vpop.f32.mrb[0].mxu0
    %5549 = vdwg.mxu0
    %vm5550 = vcmp.ge.f32.partialorder %v5544, 0.0
    %vm5551 = vcmp.ge.f32.partialorder %v5547, 0.0
    %v5552 = vmul.f32 %v5544, 0.2
    %v5553 = vmul.f32 %v5547, 0.2
    %v5554 = vsel %vm5550, %v5544, %v5552
    %v5555 = vsel %vm5551, %v5547, %v5553
    %v5556 = vld [vmem:[#allocation22] sm:$0xf]
    %v5557 = vld [vmem:[#allocation22 + $0x4] sm:$0xf]
    %v5558 = vld [vmem:[#allocation22 + $0x8] sm:$0xf]
    %v5559 = vld [vmem:[#allocation22 + $0xc] sm:$0xf]
    %v5560 = vld [vmem:[#allocation22 + $0x10] sm:$0xf]
    %v5561 = vld [vmem:[#allocation22 + $0x14] sm:$0xf]
    %v5562 = vld [vmem:[#allocation22 + $0x18] sm:$0xf]
    %v5563 = vld [vmem:[#allocation22 + $0x1c] sm:$0xf]
    %v5564 = vld [vmem:[#allocation22 + $0x20] sm:$0xf]
    %v5565 = vld [vmem:[#allocation22 + $0x24] sm:$0xf]
    %v5566 = vld [vmem:[#allocation22 + $0x28] sm:$0xf]
    %v5567 = vld [vmem:[#allocation22 + $0x2c] sm:$0xf]
    %v5568 = vld [vmem:[#allocation22 + $0x30] sm:$0xf]
    %v5569 = vld [vmem:[#allocation22 + $0x34] sm:$0xf]
    %v5570 = vld [vmem:[#allocation22 + $0x38] sm:$0xf]
    %v5571 = vld [vmem:[#allocation22 + $0x3c] sm:$0xf]
    %v5572 = vpack.c.bf16 %v5555, %v5554
    %v5573 = vlaneseq
    %v5574 = vshrl.u32 %v5573, 7
    %v5575 = vsub.s32 2, %v5574
    %v5576 = vrot.slane %v228, %v5575
    %v5593 = vunpack.c.l.b16 %v5556
    %v5594 = vunpack.c.l.b16 %v5557
    %v5595 = vunpack.c.l.b16 %v5558
    %v5596 = vunpack.c.l.b16 %v5559
    %v5597 = vunpack.c.l.b16 %v5560
    %v5598 = vunpack.c.l.b16 %v5561
    %v5599 = vunpack.c.l.b16 %v5562
    %v5600 = vunpack.c.l.b16 %v5563
    %v5601 = vunpack.c.l.b16 %v5564
    %v5602 = vunpack.c.l.b16 %v5565
    %v5603 = vunpack.c.l.b16 %v5566
    %v5604 = vunpack.c.l.b16 %v5567
    %v5605 = vunpack.c.l.b16 %v5568
    %v5606 = vunpack.c.l.b16 %v5569
    %v5607 = vunpack.c.l.b16 %v5570
    %v5608 = vunpack.c.l.b16 %v5571
    %v5609 = vpack.c.b16 %v5594, %v5593
    %v5610 = vpack.c.b16 %v5596, %v5595
    %v5611 = vpack.c.b16 %v5598, %v5597
    %v5612 = vpack.c.b16 %v5600, %v5599
    %v5613 = vpack.c.b16 %v5602, %v5601
    %v5614 = vpack.c.b16 %v5604, %v5603
    %v5615 = vpack.c.b16 %v5606, %v5605
    %v5616 = vpack.c.b16 %v5608, %v5607
    %5625 = vmatprep.subr.bf16.mxu0 0
    %5626 = vmatpush1.bf16.msra.mxu0 %v5609
    %5627 = vmatprep.subr.bf16.mxu0 0
    %5628 = vmatpush1.bf16.msra.mxu0 %v5610
    %5629 = vmatprep.subr.bf16.mxu0 0
    %5630 = vmatpush1.bf16.msra.mxu0 %v5611
    %5631 = vmatprep.subr.bf16.mxu0 0
    %5632 = vmatpush1.bf16.msra.mxu0 %v5612
    %5633 = vmatprep.subr.bf16.mxu0 0
    %5634 = vmatpush1.bf16.msra.mxu0 %v5613
    %5635 = vmatprep.subr.bf16.mxu0 0
    %5636 = vmatpush1.bf16.msra.mxu0 %v5614
    %5637 = vmatprep.subr.bf16.mxu0 0
    %5638 = vmatpush1.bf16.msra.mxu0 %v5615
    %5639 = vmatprep.subr.bf16.mxu0 0
    %5640 = vmatpush1.bf16.msra.mxu0 %v5616
    %5641 = vmatprep.subr.bf16.mxu0 0
    %5642 = vmatpush1.bf16.msra.mxu0 0
    %5643 = vmatprep.subr.bf16.mxu0 0
    %5644 = vmatpush1.bf16.msra.mxu0 0
    %5645 = vmatprep.subr.bf16.mxu0 0
    %5646 = vmatpush1.bf16.msra.mxu0 0
    %5647 = vmatprep.subr.bf16.mxu0 0
    %5648 = vmatpush1.bf16.msra.mxu0 0
    %5649 = vmatprep.subr.bf16.mxu0 0
    %5650 = vmatpush1.bf16.msra.mxu0 0
    %5651 = vmatprep.subr.bf16.mxu0 0
    %5652 = vmatpush1.bf16.msra.mxu0 0
    %5653 = vmatprep.subr.bf16.mxu0 0
    %5654 = vmatpush1.bf16.msra.mxu0 0
    %5655 = vmatprep.subr.bf16.mxu0 0
    %5656 = vmatpush1.bf16.msra.mxu0 0
    %5657 = vmatprep.mubr.bf16.mxu0 0
    %5658 = vmatmul.mubr.bf16.gmra.mrb[0].mxu0 %v5572
    %v5659 = vpop.f32.mrb[0].mxu0
    %v5660 = vadd.f32 %v5576, %v5659
    %v5661 = vpop.f32.mrb[0].mxu0
    %v5662 = vpop.f32.mrb[0].mxu0
    %v5663 = vadd.f32 %v5576, %v5662
    %v5664 = vpop.f32.mrb[0].mxu0
    %5665 = vdwg.mxu0
    %5666 = vst [vmem:[#allocation23] sm:$0xff] %v5660
    %5667 = vst [vmem:[#allocation23 + $0x8] sm:$0xff] %v5663
    // Predicated region
    $region110: #{tpu_custom_call.1} parent=1 // pred_check
      _
    $region111: #{tpu_custom_call.1} parent=1 // pred_check_branch
      %5669 = sbr.rel (0) target = $region113
    $region112: #{tpu_custom_call.1} parent=1 // pred_region
      %s5671 = ssub.s32 256, 256
      %5672 = vsyncadd [#allocation4], %s5671
      %s5673 = sshll.u32 [#allocation23], 4
      %s5674 = int_to_ptr.vmem [resolvable:$true] %s5673
      %5679 = dma.vmem_to_hbm [thread:$0]  %s5674, 256, %s14, [#allocation4], 128, 128, 8
    $region113: #{tpu_custom_call.1} parent=1 // pred_fallthru
      _
    // Predicated region
    $region114: #{tpu_custom_call.1} parent=1 // pred_check
      _
    $region115: #{tpu_custom_call.1} parent=1 // pred_check_branch
      %5681 = sbr.rel (0) target = $region117
    $region116: #{tpu_custom_call.1} parent=1 // pred_region
      %5682 = dma.done [#allocation4], 256
    $region117: #{tpu_custom_call.1} parent=1 // pred_fallthru
      _
    %5683 = vsyncpa [#allocation3], 1
    %5684 = vsyncpa [#allocation6], 1
    %5685 = vsyncpa [#allocation9], 1
    %5686 = vsyncpa [#allocation12], 1
    %5687 = vsyncpa [#allocation15], 1
    %5688 = vsyncpa [#allocation18], 1
    %5689 = vsyncpa [#allocation21], 1
    %5690 = vsyncpa [#allocation4], 1

</llo_original>
